<compile_context>
chip_gen: v7x
topology: tpu7x:2x2x1
jax: 0.10.0
libtpu: 0.0.40
codegen_flags: <defaults>
</compile_context>

<pallas_src>
import functools

import jax
import jax.numpy as jnp
import numpy as np
from jax.experimental import pallas as pl
from jax.experimental.pallas import tpu as pltpu


# ----------------------------------------------------------------------------
# In-kernel im2col: build (H*W, 9*Cin) from a zero-padded (H+2, W+2, Cin)
# VMEM scratch using static slices only (lane dim untouched, cheap relayout).
# ----------------------------------------------------------------------------
def _im2col_3x3(src_ref, out_h, out_w):
    cin = src_ref.shape[-1]
    taps = []
    for ky in range(3):
        for kx in range(3):
            taps.append(src_ref[ky:ky + out_h, kx:kx + out_w, :])
    return jnp.concatenate(taps, axis=-1).reshape(out_h * out_w, 9 * cin)


# ----------------------------------------------------------------------------
# Fused UpConv kernel (one batch image per grid step).
#   x1_ref : (1, H1*W1, C1)       low-res input (NHWC, spatial flattened)
#   x2_ref : (1, H2, W2, C2)      skip connection (NHWC)
#   a2_ref : (Hu*Wu, H1*W1)       constant bilinear x2 (align_corners) matrix
#   wred   : (C1, Cmid)           1x1 conv weight, BN scale folded
#   sred   : (1, Cmid)            folded bias+BN shift
#   wc1    : (9*(C2+Cmid), Cout)  conv1 weight, BN folded (im2col order)
#   sc1    : (1, Cout)
#   wc2t   : (Cout, 9*Cout)       conv2 weight, BN folded, pre-transposed
#   sc2    : (Cout, 1)
#   o_ref  : (1, Cout, H2*W2)     lane-dense output (== NCHW flattened)
# ----------------------------------------------------------------------------
def upconv_fused_kernel(x1_ref, x2_ref, a2_ref, wred_ref, sred_ref,
                        wc1_ref, sc1_ref, wc2t_ref, sc2_ref,
                        o_ref, cat_scr, mid_scr, *,
                        up_h, up_w, pad_top, pad_left):
    _, H2, W2, C2 = x2_ref.shape
    cmid = wred_ref.shape[1]
    cout = o_ref.shape[1]

    # ---- 1x1 reduce conv + (folded) BN + ReLU: one small matmul ----
    r = jnp.dot(x1_ref[0], wred_ref[...], preferred_element_type=jnp.float32)
    r = jnp.maximum(r + sred_ref[...], 0.0)                    # (H1*W1, cmid) f32

    # ---- bilinear x2 upsample (align_corners=True) as one constant matmul ----
    u = jnp.dot(a2_ref[...], r.astype(a2_ref.dtype),
                preferred_element_type=jnp.float32)            # (up_h*up_w, cmid)

    # ---- zero-padded concat([x2, up(x1)]) built directly in VMEM scratch ----
    # (the zero border doubles as the conv "SAME" halo and the F.pad region)
    cat_scr[...] = jnp.zeros_like(cat_scr)
    cat_scr[1:1 + H2, 1:1 + W2, :C2] = x2_ref[0]
    cat_scr[1 + pad_top:1 + pad_top + up_h,
            1 + pad_left:1 + pad_left + up_w, C2:] = (
        u.reshape(up_h, up_w, cmid).astype(cat_scr.dtype))

    # ---- conv1 3x3 + BN + ReLU: in-kernel im2col, single 9*Cin-deep matmul ----
    xt1 = _im2col_3x3(cat_scr, H2, W2)                         # (H2*W2, 9*(C2+cmid))
    y1 = jnp.dot(xt1, wc1_ref[...], preferred_element_type=jnp.float32)
    y1 = jnp.maximum(y1 + sc1_ref[...], 0.0)                   # (H2*W2, cout)

    mid_scr[...] = jnp.zeros_like(mid_scr)
    mid_scr[1:1 + H2, 1:1 + W2, :] = (
        y1.reshape(H2, W2, cout).astype(mid_scr.dtype))

    # ---- conv2 3x3 + BN + ReLU, contracted last-dim x last-dim so the result
    #      is (cout, H2*W2): lane-dense store, already NCHW ordered ----
    xt2 = _im2col_3x3(mid_scr, H2, W2)                         # (H2*W2, 9*cout)
    y2 = jax.lax.dot_general(
        wc2t_ref[...], xt2,
        dimension_numbers=(((1,), (1,)), ((), ())),
        preferred_element_type=jnp.float32)                    # (cout, H2*W2)
    y2 = jnp.maximum(y2 + sc2_ref[...], 0.0)
    o_ref[0] = y2.astype(o_ref.dtype)


# ----------------------------------------------------------------------------
# Glue helpers
# ----------------------------------------------------------------------------
def _interp_matrix(out_size, in_size):
    """Row-interpolation matrix for bilinear resize, align_corners=True."""
    if in_size == 1:
        return jnp.ones((out_size, 1), jnp.float32)
    idx = jnp.arange(out_size, dtype=jnp.float32) * (in_size - 1) / (out_size - 1)
    lo = jnp.clip(jnp.floor(idx).astype(jnp.int32), 0, in_size - 2)
    frac = idx - lo.astype(jnp.float32)
    mat = jnp.zeros((out_size, in_size), jnp.float32)
    rows = jnp.arange(out_size)
    mat = mat.at[rows, lo].set(1.0 - frac)
    mat = mat.at[rows, lo + 1].add(frac)
    return mat


def _fold_conv_bn(w_hwio, b, bn, eps=1e-5):
    """Fold inference-mode BatchNorm into the conv weight; return flat weight
    (kh*kw*cin, cout) in im2col (ky, kx, cin) order and per-cout shift."""
    s = bn["gamma"] / jnp.sqrt(bn["var"] + eps)
    w_f = w_hwio * s                         # BN scale folded into weights
    shift = (b - bn["mean"]) * s + bn["beta"]
    kh, kw, cin, cout = w_hwio.shape
    return w_f.reshape(kh * kw * cin, cout), shift


# ----------------------------------------------------------------------------
# Forward pass (Pallas path). External API is NCHW float32 (PyTorch layout).
# ----------------------------------------------------------------------------
@functools.partial(jax.jit, static_argnames=("compute_dtype",))
def upconv_forward(params, x1_nchw, x2_nchw, *, compute_dtype=jnp.float32):
    x1 = jnp.transpose(x1_nchw, (0, 2, 3, 1))   # NHWC
    x2 = jnp.transpose(x2_nchw, (0, 2, 3, 1))
    N, H1, W1, C1 = x1.shape
    _, H2, W2, C2 = x2.shape

    wred, sred = _fold_conv_bn(params["w_red"], params["b_red"], params["bn_red"])
    wc1, sc1 = _fold_conv_bn(params["w_c1"], params["b_c1"], params["bn_c1"])
    wc2, sc2 = _fold_conv_bn(params["w_c2"], params["b_c2"], params["bn_c2"])
    cmid = wred.shape[1]
    cout = wc2.shape[1]
    ctot = C2 + cmid
    assert wc1.shape[0] == 9 * ctot

    hu, wu = 2 * H1, 2 * W1
    dy, dx = H2 - hu, W2 - wu
    if dy < 0 or dx < 0:
        # TODO(synk): negative diffs (cropping) not handled; UNet usage keeps diffs >= 0.
        raise NotImplementedError("upsampled x1 larger than x2 (crop) unsupported")

    # Constant bilinear x2 (align_corners=True) matrix, flattened over both
    # spatial dims so the kernel applies it as a single matmul.
    ah = _interp_matrix(hu, H1)
    aw = _interp_matrix(wu, W1)
    a2 = (ah[:, None, :, None] * aw[None, :, None, :]).reshape(hu * wu, H1 * W1)

    cd = compute_dtype
    x1_flat = x1.reshape(N, H1 * W1, C1).astype(cd)
    x2_c = x2.astype(cd)
    a2_c = a2.astype(cd)
    wred_c = wred.astype(cd)
    wc1_c = wc1.astype(cd)
    wc2t_c = wc2.T.astype(cd)                         # (cout, 9*cout)
    sred_r = sred.reshape(1, cmid).astype(jnp.float32)
    sc1_r = sc1.reshape(1, cout).astype(jnp.float32)
    sc2_r = sc2.reshape(cout, 1).astype(jnp.float32)  # broadcasts along lanes

    kernel = functools.partial(upconv_fused_kernel, up_h=hu, up_w=wu,
                               pad_top=dy // 2, pad_left=dx // 2)

    flops = 2 * N * (H1 * W1 * C1 * cmid
                     + hu * wu * H1 * W1 * cmid
                     + H2 * W2 * 9 * ctot * cout
                     + H2 * W2 * 9 * cout * cout)
    in_bytes = sum(int(a.size) * a.dtype.itemsize for a in
                   (x1_flat, x2_c, a2_c, wred_c, sred_r, wc1_c, sc1_r,
                    wc2t_c, sc2_r))
    out_bytes = N * cout * H2 * W2 * 4

    out = pl.pallas_call(
        kernel,
        out_shape=jax.ShapeDtypeStruct((N, cout, H2 * W2), jnp.float32),
        grid=(N,),
        in_specs=[
            pl.BlockSpec((1, H1 * W1, C1), lambda n: (n, 0, 0)),
            pl.BlockSpec((1, H2, W2, C2), lambda n: (n, 0, 0, 0)),
            pl.BlockSpec((hu * wu, H1 * W1), lambda n: (0, 0)),
            pl.BlockSpec((C1, cmid), lambda n: (0, 0)),
            pl.BlockSpec((1, cmid), lambda n: (0, 0)),
            pl.BlockSpec((9 * ctot, cout), lambda n: (0, 0)),
            pl.BlockSpec((1, cout), lambda n: (0, 0)),
            pl.BlockSpec((cout, 9 * cout), lambda n: (0, 0)),
            pl.BlockSpec((cout, 1), lambda n: (0, 0)),
        ],
        out_specs=pl.BlockSpec((1, cout, H2 * W2), lambda n: (n, 0, 0)),
        scratch_shapes=[
            pltpu.VMEM((H2 + 2, W2 + 2, ctot), cd),   # padded concat input
            pltpu.VMEM((H2 + 2, W2 + 2, cout), cd),   # padded conv1 output
        ],
        compiler_params=pltpu.CompilerParams(
            dimension_semantics=("parallel",),
            vmem_limit_bytes=32 * 1024 * 1024,
        ),
        cost_estimate=pl.CostEstimate(flops=flops, transcendentals=0,
                                      bytes_accessed=in_bytes + out_bytes),
    )(x1_flat, x2_c, a2_c, wred_c, sred_r, wc1_c, sc1_r, wc2t_c, sc2_r)

    # (N, Cout, H2*W2) is already NCHW ordered -> reshape is free.
    return out.reshape(N, cout, H2, W2)


# ----------------------------------------------------------------------------
# Parameters (deterministic, synthetic)
# ----------------------------------------------------------------------------
def init_params(key, in_channels, out_channels):
    mid = in_channels // 2
    ks = jax.random.split(key, 12)

    def conv_w(k, kh, kw, cin, cout):
        return 0.2 * jax.random.normal(k, (kh, kw, cin, cout), jnp.float32)

    def bn(k, c):
        k1, k2, k3, k4 = jax.random.split(k, 4)
        return dict(
            gamma=1.0 + 0.1 * jax.random.normal(k1, (c,), jnp.float32),
            beta=0.1 * jax.random.normal(k2, (c,), jnp.float32),
            mean=0.1 * jax.random.normal(k3, (c,), jnp.float32),
            var=jnp.abs(jax.random.normal(k4, (c,), jnp.float32)) + 0.5,
        )

    return dict(
        w_red=conv_w(ks[0], 1, 1, in_channels, mid),
        b_red=0.1 * jax.random.normal(ks[1], (mid,), jnp.float32),
        bn_red=bn(ks[2], mid),
        w_c1=conv_w(ks[3], 3, 3, in_channels, out_channels),
        b_c1=0.1 * jax.random.normal(ks[4], (out_channels,), jnp.float32),
        bn_c1=bn(ks[5], out_channels),
        w_c2=conv_w(ks[6], 3, 3, out_channels, out_channels),
        b_c2=0.1 * jax.random.normal(ks[7], (out_channels,), jnp.float32),
        bn_c2=bn(ks[8], out_channels),
    )


# ----------------------------------------------------------------------------
# Pure-JAX reference (correctness check; BN in inference mode, like the kernel)
# ----------------------------------------------------------------------------
def _conv_bn_relu_ref(x, w, b, bn, ksize, eps=1e-5):
    pad = "SAME" if ksize == 3 else "VALID"
    y = jax.lax.conv_general_dilated(x, w, (1, 1), pad,
                                     dimension_numbers=("NHWC", "HWIO", "NHWC"))
    y = y + b
    y = (y - bn["mean"]) * (bn["gamma"] / jnp.sqrt(bn["var"] + eps)) + bn["beta"]
    return jnp.maximum(y, 0.0)


def bilinear_upsample_x2_align_corners(x):  # NHWC
    N, H, W, C = x.shape
    Ah = _interp_matrix(2 * H, H)
    Aw = _interp_matrix(2 * W, W)
    y = jnp.einsum("oh,nhwc->nowc", Ah, x)
    y = jnp.einsum("pw,nowc->nopc", Aw, y)
    return y


def upconv_reference(params, x1_nchw, x2_nchw):
    x1 = jnp.transpose(x1_nchw, (0, 2, 3, 1))
    x2 = jnp.transpose(x2_nchw, (0, 2, 3, 1))
    r = _conv_bn_relu_ref(x1, params["w_red"], params["b_red"], params["bn_red"], 1)
    u = bilinear_upsample_x2_align_corners(r)
    dy = x2.shape[1] - u.shape[1]
    dx = x2.shape[2] - u.shape[2]
    u = jnp.pad(u, ((0, 0), (dy // 2, dy - dy // 2), (dx // 2, dx - dx // 2), (0, 0)))
    x = jnp.concatenate([x2, u], axis=-1)
    y = _conv_bn_relu_ref(x, params["w_c1"], params["b_c1"], params["bn_c1"], 3)
    y = _conv_bn_relu_ref(y, params["w_c2"], params["b_c2"], params["bn_c2"], 3)
    return jnp.transpose(y, (0, 3, 1, 2))


if __name__ == "__main__":
    key = jax.random.PRNGKey(0)
    k_x1, k_x2, k_p = jax.random.split(key, 3)

    in_channels, out_channels = 8, 4
    N, H1, W1 = 2, 8, 8
    H2, W2 = 16, 16

    x1 = jax.random.normal(k_x1, (N, in_channels, H1, W1), jnp.float32)
    x2 = jax.random.normal(k_x2, (N, in_channels // 2, H2, W2), jnp.float32)
    params = init_params(k_p, in_channels, out_channels)

    out = upconv_forward(params, x1, x2)
    out = jax.block_until_ready(out)
    assert out.shape == (N, out_channels, H2, W2), out.shape

    ref = jax.block_until_ready(upconv_reference(params, x1, x2))
    np.testing.assert_allclose(np.asarray(out), np.asarray(ref), rtol=2e-2, atol=2e-2)

    print("KERNEL_OK")
</pallas_src>

<mosaic_0001>
module attributes {stable_mosaic.version = 11 : i64} {
  func.func private @main(%arg0: i32) attributes {dimension_semantics = [#tpu.dimension_semantics<core_parallel>], iteration_bounds = array<i64: 2>, tpu.core_type = #tpu.core_type<sc_scalar_subcore>, window_params = []} {
    return
  }
}

module attributes {stable_mosaic.version = 11 : i64} {
  func.func private @main(%arg0: i32) attributes {dimension_semantics = [#tpu.dimension_semantics<core_parallel>], iteration_bounds = array<i64: 2>, tpu.core_type = #tpu.core_type<sc_scalar_subcore>, window_params = []} {
    return
  }
}

module attributes {stable_mosaic.version = 11 : i64} {
  func.func @upconv_fused_kernel(%arg0: i32, %arg1: memref<1x64x8xf32, #tpu.memory_space<vmem>>, %arg2: memref<1x16x16x4xf32, #tpu.memory_space<vmem>>, %arg3: memref<256x64xf32, #tpu.memory_space<vmem>>, %arg4: memref<8x4xf32, #tpu.memory_space<vmem>>, %arg5: memref<1x4xf32, #tpu.memory_space<vmem>>, %arg6: memref<72x4xf32, #tpu.memory_space<vmem>>, %arg7: memref<1x4xf32, #tpu.memory_space<vmem>>, %arg8: memref<4x36xf32, #tpu.memory_space<vmem>>, %arg9: memref<4x1xf32, #tpu.memory_space<vmem>>, %arg10: memref<1x4x256xf32, #tpu.memory_space<vmem>>, %arg11: memref<18x18x8xf32, #tpu.memory_space<vmem>>, %arg12: memref<18x18x4xf32, #tpu.memory_space<vmem>>) attributes {dimension_semantics = [#tpu.dimension_semantics<parallel>], iteration_bounds = array<i64: 2>, scalar_prefetch = 0 : i64, scratch_operands = 2 : i64, tpu.core_type = #tpu.core_type<tc>, window_params = [{transform_indices = @transform_0, window_bounds = array<i64: 1, 64, 8>}, {transform_indices = @transform_1, window_bounds = array<i64: 1, 16, 16, 4>}, {pipeline_mode = #tpu.pipeline_mode<synchronous>, transform_indices = @transform_2, window_bounds = array<i64: 256, 64>}, {pipeline_mode = #tpu.pipeline_mode<synchronous>, transform_indices = @transform_3, window_bounds = array<i64: 8, 4>}, {pipeline_mode = #tpu.pipeline_mode<synchronous>, transform_indices = @transform_4, window_bounds = array<i64: 1, 4>}, {pipeline_mode = #tpu.pipeline_mode<synchronous>, transform_indices = @transform_5, window_bounds = array<i64: 72, 4>}, {pipeline_mode = #tpu.pipeline_mode<synchronous>, transform_indices = @transform_6, window_bounds = array<i64: 1, 4>}, {pipeline_mode = #tpu.pipeline_mode<synchronous>, transform_indices = @transform_7, window_bounds = array<i64: 4, 36>}, {pipeline_mode = #tpu.pipeline_mode<synchronous>, transform_indices = @transform_8, window_bounds = array<i64: 4, 1>}, {transform_indices = @transform_9, window_bounds = array<i64: 1, 4, 256>}]} {
    %c0 = arith.constant 0 : index
    %c0_0 = arith.constant 0 : index
    %c0_1 = arith.constant 0 : index
    %0 = vector.load %arg1[%c0, %c0_0, %c0_1] : memref<1x64x8xf32, #tpu.memory_space<vmem>>, vector<1x64x8xf32>
    %1 = vector.shape_cast %0 : vector<1x64x8xf32> to vector<64x8xf32>
    %c0_2 = arith.constant 0 : index
    %c0_3 = arith.constant 0 : index
    %2 = vector.load %arg4[%c0_2, %c0_3] : memref<8x4xf32, #tpu.memory_space<vmem>>, vector<8x4xf32>
    %cst = arith.constant dense<0.000000e+00> : vector<64x4xf32>
    %3 = tpu.matmul %1, %2, %cst {dimension_numbers = #tpu.dot_dimension_numbers<[1], [0], [0], [1], [0, 0, 1, 1], [], []>} : vector<64x8xf32>, vector<8x4xf32>, vector<64x4xf32> -> vector<64x4xf32>
    %c0_4 = arith.constant 0 : index
    %c0_5 = arith.constant 0 : index
    %4 = vector.load %arg5[%c0_4, %c0_5] : memref<1x4xf32, #tpu.memory_space<vmem>>, vector<1x4xf32>
    %5 = vector.broadcast %4 : vector<1x4xf32> to vector<64x4xf32>
    %6 = arith.addf %3, %5 : vector<64x4xf32>
    %cst_6 = arith.constant 0.000000e+00 : f32
    %7 = vector.broadcast %cst_6 : f32 to vector<64x4xf32>
    %8 = arith.maximumf %6, %7 : vector<64x4xf32>
    %c0_7 = arith.constant 0 : index
    %c0_8 = arith.constant 0 : index
    %9 = vector.load %arg3[%c0_7, %c0_8] : memref<256x64xf32, #tpu.memory_space<vmem>>, vector<256x64xf32>
    %cst_9 = arith.constant dense<0.000000e+00> : vector<256x4xf32>
    %10 = tpu.matmul %9, %8, %cst_9 {dimension_numbers = #tpu.dot_dimension_numbers<[1], [0], [0], [1], [0, 0, 1, 1], [], []>} : vector<256x64xf32>, vector<64x4xf32>, vector<256x4xf32> -> vector<256x4xf32>
    %cst_10 = arith.constant 0.000000e+00 : f32
    %11 = vector.broadcast %cst_10 : f32 to vector<18x18x8xf32>
    %c0_11 = arith.constant 0 : index
    %c0_12 = arith.constant 0 : index
    %c0_13 = arith.constant 0 : index
    %12 = vector.load %arg11[%c0_11, %c0_12, %c0_13] : memref<18x18x8xf32, #tpu.memory_space<vmem>>, vector<18x18x8xf32>
    tpu.vector_store %arg11[%c0_11, %c0_12, %c0_13], %11 {strides = array<i32>} : memref<18x18x8xf32, #tpu.memory_space<vmem>>, vector<18x18x8xf32>,
    %c0_14 = arith.constant 0 : index
    %c0_15 = arith.constant 0 : index
    %c0_16 = arith.constant 0 : index
    %c0_17 = arith.constant 0 : index
    %13 = vector.load %arg2[%c0_14, %c0_15, %c0_16, %c0_17] : memref<1x16x16x4xf32, #tpu.memory_space<vmem>>, vector<1x16x16x4xf32>
    %14 = vector.shape_cast %13 : vector<1x16x16x4xf32> to vector<16x16x4xf32>
    %c1 = arith.constant 1 : index
    %c1_18 = arith.constant 1 : index
    %c0_19 = arith.constant 0 : index
    %15 = vector.load %arg11[%c1, %c1_18, %c0_19] : memref<18x18x8xf32, #tpu.memory_space<vmem>>, vector<16x16x4xf32>
    tpu.vector_store %arg11[%c1, %c1_18, %c0_19], %14 {strides = array<i32>} : memref<18x18x8xf32, #tpu.memory_space<vmem>>, vector<16x16x4xf32>,
    %16 = vector.shape_cast %10 : vector<256x4xf32> to vector<16x16x4xf32>
    %c1_20 = arith.constant 1 : index
    %c1_21 = arith.constant 1 : index
    %c4 = arith.constant 4 : index
    %17 = vector.load %arg11[%c1_20, %c1_21, %c4] : memref<18x18x8xf32, #tpu.memory_space<vmem>>, vector<16x16x4xf32>
    tpu.vector_store %arg11[%c1_20, %c1_21, %c4], %16 {strides = array<i32>} : memref<18x18x8xf32, #tpu.memory_space<vmem>>, vector<16x16x4xf32>,
    %c0_22 = arith.constant 0 : index
    %c0_23 = arith.constant 0 : index
    %c0_24 = arith.constant 0 : index
    %18 = vector.load %arg11[%c0_22, %c0_23, %c0_24] : memref<18x18x8xf32, #tpu.memory_space<vmem>>, vector<16x16x8xf32>
    %c0_25 = arith.constant 0 : index
    %c1_26 = arith.constant 1 : index
    %c0_27 = arith.constant 0 : index
    %19 = vector.load %arg11[%c0_25, %c1_26, %c0_27] : memref<18x18x8xf32, #tpu.memory_space<vmem>>, vector<16x16x8xf32>
    %c0_28 = arith.constant 0 : index
    %c2 = arith.constant 2 : index
    %c0_29 = arith.constant 0 : index
    %20 = vector.load %arg11[%c0_28, %c2, %c0_29] : memref<18x18x8xf32, #tpu.memory_space<vmem>>, vector<16x16x8xf32>
    %c1_30 = arith.constant 1 : index
    %c0_31 = arith.constant 0 : index
    %c0_32 = arith.constant 0 : index
    %21 = vector.load %arg11[%c1_30, %c0_31, %c0_32] : memref<18x18x8xf32, #tpu.memory_space<vmem>>, vector<16x16x8xf32>
    %c1_33 = arith.constant 1 : index
    %c1_34 = arith.constant 1 : index
    %c0_35 = arith.constant 0 : index
    %22 = vector.load %arg11[%c1_33, %c1_34, %c0_35] : memref<18x18x8xf32, #tpu.memory_space<vmem>>, vector<16x16x8xf32>
    %c1_36 = arith.constant 1 : index
    %c2_37 = arith.constant 2 : index
    %c0_38 = arith.constant 0 : index
    %23 = vector.load %arg11[%c1_36, %c2_37, %c0_38] : memref<18x18x8xf32, #tpu.memory_space<vmem>>, vector<16x16x8xf32>
    %c2_39 = arith.constant 2 : index
    %c0_40 = arith.constant 0 : index
    %c0_41 = arith.constant 0 : index
    %24 = vector.load %arg11[%c2_39, %c0_40, %c0_41] : memref<18x18x8xf32, #tpu.memory_space<vmem>>, vector<16x16x8xf32>
    %c2_42 = arith.constant 2 : index
    %c1_43 = arith.constant 1 : index
    %c0_44 = arith.constant 0 : index
    %25 = vector.load %arg11[%c2_42, %c1_43, %c0_44] : memref<18x18x8xf32, #tpu.memory_space<vmem>>, vector<16x16x8xf32>
    %c2_45 = arith.constant 2 : index
    %c2_46 = arith.constant 2 : index
    %c0_47 = arith.constant 0 : index
    %26 = vector.load %arg11[%c2_45, %c2_46, %c0_47] : memref<18x18x8xf32, #tpu.memory_space<vmem>>, vector<16x16x8xf32>
    %27 = tpu.concatenate %18, %19, %20, %21, %22, %23, %24, %25, %26 in 2 : vector<16x16x8xf32>, vector<16x16x8xf32>, vector<16x16x8xf32>, vector<16x16x8xf32>, vector<16x16x8xf32>, vector<16x16x8xf32>, vector<16x16x8xf32>, vector<16x16x8xf32>, vector<16x16x8xf32> -> vector<16x16x72xf32>
    %28 = vector.shape_cast %27 : vector<16x16x72xf32> to vector<256x72xf32>
    %c0_48 = arith.constant 0 : index
    %c0_49 = arith.constant 0 : index
    %29 = vector.load %arg6[%c0_48, %c0_49] : memref<72x4xf32, #tpu.memory_space<vmem>>, vector<72x4xf32>
    %cst_50 = arith.constant dense<0.000000e+00> : vector<256x4xf32>
    %30 = tpu.matmul %28, %29, %cst_50 {dimension_numbers = #tpu.dot_dimension_numbers<[1], [0], [0], [1], [0, 0, 1, 1], [], []>} : vector<256x72xf32>, vector<72x4xf32>, vector<256x4xf32> -> vector<256x4xf32>
    %c0_51 = arith.constant 0 : index
    %c0_52 = arith.constant 0 : index
    %31 = vector.load %arg7[%c0_51, %c0_52] : memref<1x4xf32, #tpu.memory_space<vmem>>, vector<1x4xf32>
    %32 = vector.broadcast %31 : vector<1x4xf32> to vector<256x4xf32>
    %33 = arith.addf %30, %32 : vector<256x4xf32>
    %cst_53 = arith.constant 0.000000e+00 : f32
    %34 = vector.broadcast %cst_53 : f32 to vector<256x4xf32>
    %35 = arith.maximumf %33, %34 : vector<256x4xf32>
    %cst_54 = arith.constant 0.000000e+00 : f32
    %36 = vector.broadcast %cst_54 : f32 to vector<18x18x4xf32>
    %c0_55 = arith.constant 0 : index
    %c0_56 = arith.constant 0 : index
    %c0_57 = arith.constant 0 : index
    %37 = vector.load %arg12[%c0_55, %c0_56, %c0_57] : memref<18x18x4xf32, #tpu.memory_space<vmem>>, vector<18x18x4xf32>
    tpu.vector_store %arg12[%c0_55, %c0_56, %c0_57], %36 {strides = array<i32>} : memref<18x18x4xf32, #tpu.memory_space<vmem>>, vector<18x18x4xf32>,
    %38 = vector.shape_cast %35 : vector<256x4xf32> to vector<16x16x4xf32>
    %c1_58 = arith.constant 1 : index
    %c1_59 = arith.constant 1 : index
    %c0_60 = arith.constant 0 : index
    %39 = vector.load %arg12[%c1_58, %c1_59, %c0_60] : memref<18x18x4xf32, #tpu.memory_space<vmem>>, vector<16x16x4xf32>
    tpu.vector_store %arg12[%c1_58, %c1_59, %c0_60], %38 {strides = array<i32>} : memref<18x18x4xf32, #tpu.memory_space<vmem>>, vector<16x16x4xf32>,
    %c0_61 = arith.constant 0 : index
    %c0_62 = arith.constant 0 : index
    %c0_63 = arith.constant 0 : index
    %40 = vector.load %arg12[%c0_61, %c0_62, %c0_63] : memref<18x18x4xf32, #tpu.memory_space<vmem>>, vector<16x16x4xf32>
    %c0_64 = arith.constant 0 : index
    %c1_65 = arith.constant 1 : index
    %c0_66 = arith.constant 0 : index
    %41 = vector.load %arg12[%c0_64, %c1_65, %c0_66] : memref<18x18x4xf32, #tpu.memory_space<vmem>>, vector<16x16x4xf32>
    %c0_67 = arith.constant 0 : index
    %c2_68 = arith.constant 2 : index
    %c0_69 = arith.constant 0 : index
    %42 = vector.load %arg12[%c0_67, %c2_68, %c0_69] : memref<18x18x4xf32, #tpu.memory_space<vmem>>, vector<16x16x4xf32>
    %c1_70 = arith.constant 1 : index
    %c0_71 = arith.constant 0 : index
    %c0_72 = arith.constant 0 : index
    %43 = vector.load %arg12[%c1_70, %c0_71, %c0_72] : memref<18x18x4xf32, #tpu.memory_space<vmem>>, vector<16x16x4xf32>
    %c1_73 = arith.constant 1 : index
    %c1_74 = arith.constant 1 : index
    %c0_75 = arith.constant 0 : index
    %44 = vector.load %arg12[%c1_73, %c1_74, %c0_75] : memref<18x18x4xf32, #tpu.memory_space<vmem>>, vector<16x16x4xf32>
    %c1_76 = arith.constant 1 : index
    %c2_77 = arith.constant 2 : index
    %c0_78 = arith.constant 0 : index
    %45 = vector.load %arg12[%c1_76, %c2_77, %c0_78] : memref<18x18x4xf32, #tpu.memory_space<vmem>>, vector<16x16x4xf32>
    %c2_79 = arith.constant 2 : index
    %c0_80 = arith.constant 0 : index
    %c0_81 = arith.constant 0 : index
    %46 = vector.load %arg12[%c2_79, %c0_80, %c0_81] : memref<18x18x4xf32, #tpu.memory_space<vmem>>, vector<16x16x4xf32>
    %c2_82 = arith.constant 2 : index
    %c1_83 = arith.constant 1 : index
    %c0_84 = arith.constant 0 : index
    %47 = vector.load %arg12[%c2_82, %c1_83, %c0_84] : memref<18x18x4xf32, #tpu.memory_space<vmem>>, vector<16x16x4xf32>
    %c2_85 = arith.constant 2 : index
    %c2_86 = arith.constant 2 : index
    %c0_87 = arith.constant 0 : index
    %48 = vector.load %arg12[%c2_85, %c2_86, %c0_87] : memref<18x18x4xf32, #tpu.memory_space<vmem>>, vector<16x16x4xf32>
    %49 = tpu.concatenate %40, %41, %42, %43, %44, %45, %46, %47, %48 in 2 : vector<16x16x4xf32>, vector<16x16x4xf32>, vector<16x16x4xf32>, vector<16x16x4xf32>, vector<16x16x4xf32>, vector<16x16x4xf32>, vector<16x16x4xf32>, vector<16x16x4xf32>, vector<16x16x4xf32> -> vector<16x16x36xf32>
    %50 = vector.shape_cast %49 : vector<16x16x36xf32> to vector<256x36xf32>
    %c0_88 = arith.constant 0 : index
    %c0_89 = arith.constant 0 : index
    %51 = vector.load %arg8[%c0_88, %c0_89] : memref<4x36xf32, #tpu.memory_space<vmem>>, vector<4x36xf32>
    %cst_90 = arith.constant dense<0.000000e+00> : vector<4x256xf32>
    %52 = tpu.matmul %51, %50, %cst_90 {dimension_numbers = #tpu.dot_dimension_numbers<[1], [1], [0], [0], [0, 0, 1, 0], [], []>} : vector<4x36xf32>, vector<256x36xf32>, vector<4x256xf32> -> vector<4x256xf32>
    %c0_91 = arith.constant 0 : index
    %c0_92 = arith.constant 0 : index
    %53 = vector.load %arg9[%c0_91, %c0_92] : memref<4x1xf32, #tpu.memory_space<vmem>>, vector<4x1xf32>
    %54 = vector.broadcast %53 : vector<4x1xf32> to vector<4x256xf32>
    %55 = arith.addf %52, %54 : vector<4x256xf32>
    %cst_93 = arith.constant 0.000000e+00 : f32
    %56 = vector.broadcast %cst_93 : f32 to vector<4x256xf32>
    %57 = arith.maximumf %55, %56 : vector<4x256xf32>
    %c0_94 = arith.constant 0 : index
    %c0_95 = arith.constant 0 : index
    %c0_96 = arith.constant 0 : index
    %58 = vector.load %arg10[%c0_94, %c0_95, %c0_96] : memref<1x4x256xf32, #tpu.memory_space<vmem>>, vector<1x4x256xf32>
    %59 = vector.shape_cast %58 : vector<1x4x256xf32> to vector<4x256xf32>
    %60 = vector.shape_cast %57 : vector<4x256xf32> to vector<1x4x256xf32>
    tpu.vector_store %arg10[%c0_94, %c0_95, %c0_96], %60 {strides = array<i32>} : memref<1x4x256xf32, #tpu.memory_space<vmem>>, vector<1x4x256xf32>,
    return
  }
  func.func @transform_0(%arg0: i32) -> (i32, i32, i32) {
    %c0_i32 = arith.constant 0 : i32
    %c0_i32_0 = arith.constant 0 : i32
    %c0_i32_1 = arith.constant 0 : i32
    return %arg0, %c0_i32, %c0_i32_0 : i32, i32, i32
  }
  func.func @transform_1(%arg0: i32) -> (i32, i32, i32, i32) {
    %c0_i32 = arith.constant 0 : i32
    %c0_i32_0 = arith.constant 0 : i32
    %c0_i32_1 = arith.constant 0 : i32
    %c0_i32_2 = arith.constant 0 : i32
    return %arg0, %c0_i32, %c0_i32_0, %c0_i32_1 : i32, i32, i32, i32
  }
  func.func @transform_2(%arg0: i32) -> (i32, i32) {
    %c0_i32 = arith.constant 0 : i32
    %c0_i32_0 = arith.constant 0 : i32
    %c0_i32_1 = arith.constant 0 : i32
    return %c0_i32, %c0_i32_0 : i32, i32
  }
  func.func @transform_3(%arg0: i32) -> (i32, i32) {
    %c0_i32 = arith.constant 0 : i32
    %c0_i32_0 = arith.constant 0 : i32
    %c0_i32_1 = arith.constant 0 : i32
    return %c0_i32, %c0_i32_0 : i32, i32
  }
  func.func @transform_4(%arg0: i32) -> (i32, i32) {
    %c0_i32 = arith.constant 0 : i32
    %c0_i32_0 = arith.constant 0 : i32
    %c0_i32_1 = arith.constant 0 : i32
    return %c0_i32, %c0_i32_0 : i32, i32
  }
  func.func @transform_5(%arg0: i32) -> (i32, i32) {
    %c0_i32 = arith.constant 0 : i32
    %c0_i32_0 = arith.constant 0 : i32
    %c0_i32_1 = arith.constant 0 : i32
    return %c0_i32, %c0_i32_0 : i32, i32
  }
  func.func @transform_6(%arg0: i32) -> (i32, i32) {
    %c0_i32 = arith.constant 0 : i32
    %c0_i32_0 = arith.constant 0 : i32
    %c0_i32_1 = arith.constant 0 : i32
    return %c0_i32, %c0_i32_0 : i32, i32
  }
  func.func @transform_7(%arg0: i32) -> (i32, i32) {
    %c0_i32 = arith.constant 0 : i32
    %c0_i32_0 = arith.constant 0 : i32
    %c0_i32_1 = arith.constant 0 : i32
    return %c0_i32, %c0_i32_0 : i32, i32
  }
  func.func @transform_8(%arg0: i32) -> (i32, i32) {
    %c0_i32 = arith.constant 0 : i32
    %c0_i32_0 = arith.constant 0 : i32
    %c0_i32_1 = arith.constant 0 : i32
    return %c0_i32, %c0_i32_0 : i32, i32
  }
  func.func @transform_9(%arg0: i32) -> (i32, i32, i32) {
    %c0_i32 = arith.constant 0 : i32
    %c0_i32_0 = arith.constant 0 : i32
    %c0_i32_1 = arith.constant 0 : i32
    return %arg0, %c0_i32, %c0_i32_0 : i32, i32, i32
  }
}

</mosaic_0001>

<llo_original>
// kernel: upconv_forward.1
$region0: #{upconv_forward.1}
  #allocation0 [shape = 'u32[]', space=smem, size = 0x4, offset = 0x4, fixed_abs, tag = 'smem constant byte address 0x4 - core index']
  #allocation1 [shape = 'u32[144,128]{1,0:T(1,128)}', space=vmem, size = 0x12000, scoped, tag = 'internal scratch']
  #allocation2 [shape = 'f32[18,18,8]{2,1,0:T(8,128)}', space=vmem, size = 0x36000, scoped, tag = 'scratch operand']
  #allocation3 [shape = 'f32[18,18,4]{2,1,0:T(8,128)}', space=vmem, size = 0x36000, scoped, tag = 'scratch operand']
  %s0 = inlined_call_operand.vmem [shape: f32[2,64,8], index: 0, kind: input, shape index: {}]
  %s1 = inlined_call_operand.vmem [shape: f32[2,16,16,4], index: 1, kind: input, shape index: {}]
  %s2 = inlined_call_operand.vmem [shape: f32[256,64], index: 2, kind: input, shape index: {}]
  %s3 = inlined_call_operand.vmem [shape: f32[8,4], index: 3, kind: input, shape index: {}]
  %s4 = inlined_call_operand.vmem [shape: f32[1,4], index: 4, kind: input, shape index: {}]
  %s5 = inlined_call_operand.vmem [shape: f32[72,4], index: 5, kind: input, shape index: {}]
  %s6 = inlined_call_operand.vmem [shape: f32[1,4], index: 6, kind: input, shape index: {}]
  %s7 = inlined_call_operand.vmem [shape: f32[4,36], index: 7, kind: input, shape index: {}]
  %s8 = inlined_call_operand.vmem [shape: f32[4,1], index: 8, kind: input, shape index: {}]
  %s9 = inlined_call_operand.vmem [shape: f32[2,4,256], index: 9, kind: output, shape index: {}]
  %s10 = sld [smem:[#allocation0]]
  $region69: #{upconv_forward.1} parent=0
    _
  %s12 = ssub.s32 1, %s10
  %s13 = scalar_select 0, %s12, %s10
  loop: start=0, step=1, limit=4
  $region2: #{upconv_forward.1} parent=0 // loop_pre_header
    _
  $region3: #{upconv_forward.1} parent=0 // loop_header
    %s15 = sphi 0, %s19
    %p16 = scmp.ge.s32.totalorder %s15, 4
    %s25 = sphi 0, %s27
    %s28 = sphi 0, %s25
    %s29 = sphi 0, %s28
    %s45 = sphi 0, %s29
    %s51 = sphi 0, %s53
    %s54 = sphi 0, %s51
    %s55 = sphi 0, %s54
    %s71 = sphi 0, %s55
    %s75 = sphi 0, %s75
    %s77 = sphi 0, %s75
    %s78 = sphi 0, %s77
    %s92 = sphi 0, %s78
    %s96 = sphi 0, %s96
    %s98 = sphi 0, %s96
    %s99 = sphi 0, %s98
    %s113 = sphi 0, %s99
    %s117 = sphi 0, %s117
    %s119 = sphi 0, %s117
    %s120 = sphi 0, %s119
    %s134 = sphi 0, %s120
    %s138 = sphi 0, %s138
    %s140 = sphi 0, %s138
    %s141 = sphi 0, %s140
    %s155 = sphi 0, %s141
    %s159 = sphi 0, %s159
    %s161 = sphi 0, %s159
    %s162 = sphi 0, %s161
    %s176 = sphi 0, %s162
    %s180 = sphi 0, %s180
    %s182 = sphi 0, %s180
    %s183 = sphi 0, %s182
    %s197 = sphi 0, %s183
    %s201 = sphi 0, %s201
    %s203 = sphi 0, %s201
    %s204 = sphi 0, %s203
    %s218 = sphi 0, %s204
    %s224 = sphi 0, %s226
    %s227 = sphi 0, %s224
    %s228 = sphi 0, %s227
    %s244 = sphi 0, %s228
  $region4: #{upconv_forward.1} parent=0 // loop_header_branch
    %18 = sbr.rel (%p16) target = $region8
  $region5: #{upconv_forward.1} parent=0 // loop_body
    %s20 = ssub.s32 %s15, 1
    %s21 = ssub.s32 %s15, 2
    %s22 = sadd.s32 %s15, 1
    %s23 = ssub.s32 %s15, %s22
    %p24 = scmp.eq.s32.totalorder %s23, 0
    %s26 = sadd.s32 %s25, 1
    %s27 = scalar_select %p24, %s25, %s26
    %p30 = pneg %p24
    %p31 = scmp.eq.s32.totalorder %s15, 1
    %p32 = por %p30, %p31
    %p33 = scmp.ne.s32.totalorder %s25, %s28
    %p34 = scmp.eq.s32.totalorder %s15, 0
    %p35 = por %p33, %p34
    %p36 = scmp.ne.s32.totalorder %s25, %s28
    %p37 = scmp.eq.s32.totalorder %s20, 1
    %p38 = por %p36, %p37
    %p39 = scmp.ne.s32.totalorder %s28, %s29
    %p40 = scmp.eq.s32.totalorder %s20, 0
    %p41 = por %p39, %p40
    %p42 = scmp.ne.s32.totalorder %s28, %s29
    %p43 = scmp.eq.s32.totalorder %s21, 1
    %p44 = por %p42, %p43
    %p46 = scmp.ne.s32.totalorder %s29, %s45
    %p47 = scmp.eq.s32.totalorder %s21, 0
    %p48 = por %p46, %p47
    %s49 = ssub.s32 %s15, %s22
    %p50 = scmp.eq.s32.totalorder %s49, 0
    %s52 = sadd.s32 %s51, 1
    %s53 = scalar_select %p50, %s51, %s52
    %p56 = pneg %p50
    %p57 = scmp.eq.s32.totalorder %s15, 1
    %p58 = por %p56, %p57
    %p59 = scmp.ne.s32.totalorder %s51, %s54
    %p60 = scmp.eq.s32.totalorder %s15, 0
    %p61 = por %p59, %p60
    %p62 = scmp.ne.s32.totalorder %s51, %s54
    %p63 = scmp.eq.s32.totalorder %s20, 1
    %p64 = por %p62, %p63
    %p65 = scmp.ne.s32.totalorder %s54, %s55
    %p66 = scmp.eq.s32.totalorder %s20, 0
    %p67 = por %p65, %p66
    %p68 = scmp.ne.s32.totalorder %s54, %s55
    %p69 = scmp.eq.s32.totalorder %s21, 1
    %p70 = por %p68, %p69
    %p72 = scmp.ne.s32.totalorder %s55, %s71
    %p73 = scmp.eq.s32.totalorder %s21, 0
    %p74 = por %p72, %p73
    %s76 = sadd.s32 %s75, 1
    %p79 = scmp.eq.s32.totalorder %s15, 1
    %p80 = scmp.ne.s32.totalorder %s75, %s77
    %p81 = scmp.eq.s32.totalorder %s15, 0
    %p82 = por %p80, %p81
    %p83 = scmp.ne.s32.totalorder %s75, %s77
    %p84 = scmp.eq.s32.totalorder %s20, 1
    %p85 = por %p83, %p84
    %p86 = scmp.ne.s32.totalorder %s77, %s78
    %p87 = scmp.eq.s32.totalorder %s20, 0
    %p88 = por %p86, %p87
    %p89 = scmp.ne.s32.totalorder %s77, %s78
    %p90 = scmp.eq.s32.totalorder %s21, 1
    %p91 = por %p89, %p90
    %p93 = scmp.ne.s32.totalorder %s78, %s92
    %p94 = scmp.eq.s32.totalorder %s21, 0
    %p95 = por %p93, %p94
    %s97 = sadd.s32 %s96, 1
    %p100 = scmp.eq.s32.totalorder %s15, 1
    %p101 = scmp.ne.s32.totalorder %s96, %s98
    %p102 = scmp.eq.s32.totalorder %s15, 0
    %p103 = por %p101, %p102
    %p104 = scmp.ne.s32.totalorder %s96, %s98
    %p105 = scmp.eq.s32.totalorder %s20, 1
    %p106 = por %p104, %p105
    %p107 = scmp.ne.s32.totalorder %s98, %s99
    %p108 = scmp.eq.s32.totalorder %s20, 0
    %p109 = por %p107, %p108
    %p110 = scmp.ne.s32.totalorder %s98, %s99
    %p111 = scmp.eq.s32.totalorder %s21, 1
    %p112 = por %p110, %p111
    %p114 = scmp.ne.s32.totalorder %s99, %s113
    %p115 = scmp.eq.s32.totalorder %s21, 0
    %p116 = por %p114, %p115
    %s118 = sadd.s32 %s117, 1
    %p121 = scmp.eq.s32.totalorder %s15, 1
    %p122 = scmp.ne.s32.totalorder %s117, %s119
    %p123 = scmp.eq.s32.totalorder %s15, 0
    %p124 = por %p122, %p123
    %p125 = scmp.ne.s32.totalorder %s117, %s119
    %p126 = scmp.eq.s32.totalorder %s20, 1
    %p127 = por %p125, %p126
    %p128 = scmp.ne.s32.totalorder %s119, %s120
    %p129 = scmp.eq.s32.totalorder %s20, 0
    %p130 = por %p128, %p129
    %p131 = scmp.ne.s32.totalorder %s119, %s120
    %p132 = scmp.eq.s32.totalorder %s21, 1
    %p133 = por %p131, %p132
    %p135 = scmp.ne.s32.totalorder %s120, %s134
    %p136 = scmp.eq.s32.totalorder %s21, 0
    %p137 = por %p135, %p136
    %s139 = sadd.s32 %s138, 1
    %p142 = scmp.eq.s32.totalorder %s15, 1
    %p143 = scmp.ne.s32.totalorder %s138, %s140
    %p144 = scmp.eq.s32.totalorder %s15, 0
    %p145 = por %p143, %p144
    %p146 = scmp.ne.s32.totalorder %s138, %s140
    %p147 = scmp.eq.s32.totalorder %s20, 1
    %p148 = por %p146, %p147
    %p149 = scmp.ne.s32.totalorder %s140, %s141
    %p150 = scmp.eq.s32.totalorder %s20, 0
    %p151 = por %p149, %p150
    %p152 = scmp.ne.s32.totalorder %s140, %s141
    %p153 = scmp.eq.s32.totalorder %s21, 1
    %p154 = por %p152, %p153
    %p156 = scmp.ne.s32.totalorder %s141, %s155
    %p157 = scmp.eq.s32.totalorder %s21, 0
    %p158 = por %p156, %p157
    %s160 = sadd.s32 %s159, 1
    %p163 = scmp.eq.s32.totalorder %s15, 1
    %p164 = scmp.ne.s32.totalorder %s159, %s161
    %p165 = scmp.eq.s32.totalorder %s15, 0
    %p166 = por %p164, %p165
    %p167 = scmp.ne.s32.totalorder %s159, %s161
    %p168 = scmp.eq.s32.totalorder %s20, 1
    %p169 = por %p167, %p168
    %p170 = scmp.ne.s32.totalorder %s161, %s162
    %p171 = scmp.eq.s32.totalorder %s20, 0
    %p172 = por %p170, %p171
    %p173 = scmp.ne.s32.totalorder %s161, %s162
    %p174 = scmp.eq.s32.totalorder %s21, 1
    %p175 = por %p173, %p174
    %p177 = scmp.ne.s32.totalorder %s162, %s176
    %p178 = scmp.eq.s32.totalorder %s21, 0
    %p179 = por %p177, %p178
    %s181 = sadd.s32 %s180, 1
    %p184 = scmp.eq.s32.totalorder %s15, 1
    %p185 = scmp.ne.s32.totalorder %s180, %s182
    %p186 = scmp.eq.s32.totalorder %s15, 0
    %p187 = por %p185, %p186
    %p188 = scmp.ne.s32.totalorder %s180, %s182
    %p189 = scmp.eq.s32.totalorder %s20, 1
    %p190 = por %p188, %p189
    %p191 = scmp.ne.s32.totalorder %s182, %s183
    %p192 = scmp.eq.s32.totalorder %s20, 0
    %p193 = por %p191, %p192
    %p194 = scmp.ne.s32.totalorder %s182, %s183
    %p195 = scmp.eq.s32.totalorder %s21, 1
    %p196 = por %p194, %p195
    %p198 = scmp.ne.s32.totalorder %s183, %s197
    %p199 = scmp.eq.s32.totalorder %s21, 0
    %p200 = por %p198, %p199
    %s202 = sadd.s32 %s201, 1
    %p205 = scmp.eq.s32.totalorder %s15, 1
    %p206 = scmp.ne.s32.totalorder %s201, %s203
    %p207 = scmp.eq.s32.totalorder %s15, 0
    %p208 = por %p206, %p207
    %p209 = scmp.ne.s32.totalorder %s201, %s203
    %p210 = scmp.eq.s32.totalorder %s20, 1
    %p211 = por %p209, %p210
    %p212 = scmp.ne.s32.totalorder %s203, %s204
    %p213 = scmp.eq.s32.totalorder %s20, 0
    %p214 = por %p212, %p213
    %p215 = scmp.ne.s32.totalorder %s203, %s204
    %p216 = scmp.eq.s32.totalorder %s21, 1
    %p217 = por %p215, %p216
    %p219 = scmp.ne.s32.totalorder %s204, %s218
    %p220 = scmp.eq.s32.totalorder %s21, 0
    %p221 = por %p219, %p220
    %s222 = ssub.s32 %s15, %s22
    %p223 = scmp.eq.s32.totalorder %s222, 0
    %s225 = sadd.s32 %s224, 1
    %s226 = scalar_select %p223, %s224, %s225
    %p229 = pneg %p223
    %p230 = scmp.eq.s32.totalorder %s15, 1
    %p231 = por %p229, %p230
    %p232 = scmp.ne.s32.totalorder %s224, %s227
    %p233 = scmp.eq.s32.totalorder %s15, 0
    %p234 = por %p232, %p233
    %p235 = scmp.ne.s32.totalorder %s224, %s227
    %p236 = scmp.eq.s32.totalorder %s20, 1
    %p237 = por %p235, %p236
    %p238 = scmp.ne.s32.totalorder %s227, %s228
    %p239 = scmp.eq.s32.totalorder %s20, 0
    %p240 = por %p238, %p239
    %p241 = scmp.ne.s32.totalorder %s227, %s228
    %p242 = scmp.eq.s32.totalorder %s21, 1
    %p243 = por %p241, %p242
    %p245 = scmp.ne.s32.totalorder %s228, %s244
    %p246 = scmp.eq.s32.totalorder %s21, 0
    %p247 = por %p245, %p246
    %p248 = scmp.le.s32.totalorder 1, %s15
    %p249 = scmp.lt.s32.totalorder %s15, 3
    %p250 = pnand %p248, %p249
    %p251 = pneg %p250
    // Predicated region
    $region9: #{upconv_forward.1} parent=5 // pred_check
      _
    $region10: #{upconv_forward.1} parent=5 // pred_check_branch
      %253 = sbr.rel (%p250) target = $region12
    $region11: #{upconv_forward.1} parent=5 // pred_region
      %s254 = ssub.s32 %s15, 1
      // Predicated region
      $region13: #{upconv_forward.1} parent=11 // pred_check
        %p255 = pneg %p88
      $region14: #{upconv_forward.1} parent=11 // pred_check_branch
        %257 = sbr.rel (%p255) target = $region16
      $region15: #{upconv_forward.1} parent=11 // pred_region
        _
      $region16: #{upconv_forward.1} parent=11 // pred_fallthru
        _
      // Predicated region
      $region17: #{upconv_forward.1} parent=11 // pred_check
        %p258 = pneg %p109
      $region18: #{upconv_forward.1} parent=11 // pred_check_branch
        %260 = sbr.rel (%p258) target = $region20
      $region19: #{upconv_forward.1} parent=11 // pred_region
        _
      $region20: #{upconv_forward.1} parent=11 // pred_fallthru
        _
      // Predicated region
      $region21: #{upconv_forward.1} parent=11 // pred_check
        %p261 = pneg %p130
      $region22: #{upconv_forward.1} parent=11 // pred_check_branch
        %263 = sbr.rel (%p261) target = $region24
      $region23: #{upconv_forward.1} parent=11 // pred_region
        _
      $region24: #{upconv_forward.1} parent=11 // pred_fallthru
        _
      // Predicated region
      $region25: #{upconv_forward.1} parent=11 // pred_check
        %p264 = pneg %p151
      $region26: #{upconv_forward.1} parent=11 // pred_check_branch
        %266 = sbr.rel (%p264) target = $region28
      $region27: #{upconv_forward.1} parent=11 // pred_region
        _
      $region28: #{upconv_forward.1} parent=11 // pred_fallthru
        _
      // Predicated region
      $region29: #{upconv_forward.1} parent=11 // pred_check
        %p267 = pneg %p172
      $region30: #{upconv_forward.1} parent=11 // pred_check_branch
        %269 = sbr.rel (%p267) target = $region32
      $region31: #{upconv_forward.1} parent=11 // pred_region
        _
      $region32: #{upconv_forward.1} parent=11 // pred_fallthru
        _
      // Predicated region
      $region33: #{upconv_forward.1} parent=11 // pred_check
        %p270 = pneg %p193
      $region34: #{upconv_forward.1} parent=11 // pred_check_branch
        %272 = sbr.rel (%p270) target = $region36
      $region35: #{upconv_forward.1} parent=11 // pred_region
        _
      $region36: #{upconv_forward.1} parent=11 // pred_fallthru
        _
      // Predicated region
      $region37: #{upconv_forward.1} parent=11 // pred_check
        %p273 = pneg %p214
      $region38: #{upconv_forward.1} parent=11 // pred_check_branch
        %275 = sbr.rel (%p273) target = $region40
      $region39: #{upconv_forward.1} parent=11 // pred_region
        _
      $region40: #{upconv_forward.1} parent=11 // pred_fallthru
        _
    $region12: #{upconv_forward.1} parent=5 // pred_fallthru
      _
    %p276 = scmp.lt.s32.totalorder %s15, 2
    // Predicated region
    $region41: #{upconv_forward.1} parent=5 // pred_check
      %p277 = pneg %p276
    $region42: #{upconv_forward.1} parent=5 // pred_check_branch
      %279 = sbr.rel (%p277) target = $region44
    $region43: #{upconv_forward.1} parent=5 // pred_region
      // Predicated region
      $region45: #{upconv_forward.1} parent=43 // pred_check
        %p280 = pneg %p35
      $region46: #{upconv_forward.1} parent=43 // pred_check_branch
        %282 = sbr.rel (%p280) target = $region48
      $region47: #{upconv_forward.1} parent=43 // pred_region
        %p283 = scmp.lt.s32.totalorder %s15, 1
        %s284 = scalar_select %p283, %s15, 1
        %s285 = smul.addr %s284, 8
        %s286 = smul.addr %s285, 8
        %s287 = scalar_lea.vmem %s0, %s286
      $region48: #{upconv_forward.1} parent=43 // pred_fallthru
        _
      // Predicated region
      $region49: #{upconv_forward.1} parent=43 // pred_check
        %p288 = pneg %p61
      $region50: #{upconv_forward.1} parent=43 // pred_check_branch
        %290 = sbr.rel (%p288) target = $region52
      $region51: #{upconv_forward.1} parent=43 // pred_region
        %p291 = scmp.lt.s32.totalorder %s15, 1
        %s292 = scalar_select %p291, %s15, 1
        %s293 = smul.addr %s292, 32
        %s294 = smul.addr %s293, 8
        %s295 = scalar_lea.vmem %s1, %s294
      $region52: #{upconv_forward.1} parent=43 // pred_fallthru
        _
    $region44: #{upconv_forward.1} parent=5 // pred_fallthru
      _
    %p296 = scmp.le.s32.totalorder 1, %s15
    %p297 = scmp.lt.s32.totalorder %s15, 3
    %p298 = pnand %p296, %p297
    %p299 = pneg %p298
    // Predicated region
    $region53: #{upconv_forward.1} parent=5 // pred_check
      _
    $region54: #{upconv_forward.1} parent=5 // pred_check_branch
      %301 = sbr.rel (%p298) target = $region56
    $region55: #{upconv_forward.1} parent=5 // pred_region
      %s302 = ssub.s32 %s15, 1
      %p303 = scmp.lt.s32.totalorder %s20, 1
      %s304 = scalar_select %p303, %s20, 1
      %s305 = smul.addr %s304, 8
      %s306 = smul.addr %s305, 8
      %s307 = scalar_lea.vmem %s0, %s306
      %p308 = pneg %p41
      %p309 = pneg %p38
      %p310 = scmp.lt.s32.totalorder %s20, 1
      %s311 = scalar_select %p310, %s20, 1
      %s312 = smul.addr %s311, 32
      %s313 = smul.addr %s312, 8
      %s314 = scalar_lea.vmem %s1, %s313
      %p315 = pneg %p67
      %p316 = pneg %p64
      %p317 = pneg %p88
      %p318 = pneg %p85
      %p319 = pneg %p109
      %p320 = pneg %p106
      %p321 = pneg %p130
      %p322 = pneg %p127
      %p323 = pneg %p151
      %p324 = pneg %p148
      %p325 = pneg %p172
      %p326 = pneg %p169
      %p327 = pneg %p193
      %p328 = pneg %p190
      %p329 = pneg %p214
      %p330 = pneg %p211
      %p331 = pneg %p240
      %p332 = pneg %p237
      %p333 = scmp.lt.s32.totalorder %s20, 1
      %s334 = scalar_select %p333, %s20, 1
      %s335 = smul.addr %s334, 2
      %s336 = smul.addr %s335, 4
      %s337 = scalar_lea.vmem %s9, %s336
      %p338 = scmp.lt.s32.totalorder %s20, 1
      %s339 = scalar_select %p338, %s20, 1
      %s340 = smul.addr %s339, 8
      %s341 = smul.addr %s340, 8
      %s342 = scalar_lea.vmem %s0, %s341
      %p343 = scmp.lt.s32.totalorder %s20, 1
      %s344 = scalar_select %p343, %s20, 1
      %s345 = smul.addr %s344, 32
      %s346 = smul.addr %s345, 8
      %s347 = scalar_lea.vmem %s1, %s346
      %p348 = scmp.lt.s32.totalorder %s20, 1
      %s349 = scalar_select %p348, %s20, 1
      %s350 = smul.addr %s349, 2
      %s351 = smul.addr %s350, 4
      %s352 = scalar_lea.vmem %s9, %s351
      %v353 = vld [vmem:[%s342] sm:$0xff]
      %v354 = vld [vmem:[%s342 + $0x8] sm:$0xff]
      %v355 = vld [vmem:[%s342 + $0x10] sm:$0xff]
      %v356 = vld [vmem:[%s342 + $0x18] sm:$0xff]
      %v357 = vld [vmem:[%s342 + $0x20] sm:$0xff]
      %v358 = vld [vmem:[%s342 + $0x28] sm:$0xff]
      %v359 = vld [vmem:[%s342 + $0x30] sm:$0xff]
      %v360 = vld [vmem:[%s342 + $0x38] sm:$0xff]
      %v361 = vld [vmem:[%s3] sm:$0xff]
      %v362 = vld [vmem:[%s4] sm:$0x1]
      %v364 = vlaneseq
      %v365 = vshrl.u32 %v364, 7
      %v366 = vsub.s32 0, %v365
      %v367 = vrot.slane %v362, %v366
      %vm369 = vcmask 64512
      %v371 = vsel %vm369, %v353, 0
      %v374 = vsel %vm369, %v354, 0
      %v377 = vsel %vm369, %v355, 0
      %v380 = vsel %vm369, %v356, 0
      %v383 = vsel %vm369, %v357, 0
      %v386 = vsel %vm369, %v358, 0
      %v389 = vsel %vm369, %v359, 0
      %v392 = vsel %vm369, %v360, 0
      %394 = vmatprep.subr.mxu0 0.0
      %395 = vmatpush1.msra.mxu0 %v361
      %396 = vmatprep.subr.mxu0 0.0
      %397 = vmatpush1.msra.mxu0 0.0
      %398 = vmatprep.subr.mxu0 0.0
      %399 = vmatpush1.msra.mxu0 0.0
      %400 = vmatprep.subr.mxu0 0.0
      %401 = vmatpush1.msra.mxu0 0.0
      %402 = vmatprep.subr.mxu0 0.0
      %403 = vmatpush1.msra.mxu0 0.0
      %404 = vmatprep.subr.mxu0 0.0
      %405 = vmatpush1.msra.mxu0 0.0
      %406 = vmatprep.subr.mxu0 0.0
      %407 = vmatpush1.msra.mxu0 0.0
      %408 = vmatprep.subr.mxu0 0.0
      %409 = vmatpush1.msra.mxu0 0.0
      %410 = vmatprep.subr.mxu0 0.0
      %411 = vmatpush1.msra.mxu0 0.0
      %412 = vmatprep.subr.mxu0 0.0
      %413 = vmatpush1.msra.mxu0 0.0
      %414 = vmatprep.subr.mxu0 0.0
      %415 = vmatpush1.msra.mxu0 0.0
      %416 = vmatprep.subr.mxu0 0.0
      %417 = vmatpush1.msra.mxu0 0.0
      %418 = vmatprep.subr.mxu0 0.0
      %419 = vmatpush1.msra.mxu0 0.0
      %420 = vmatprep.subr.mxu0 0.0
      %421 = vmatpush1.msra.mxu0 0.0
      %422 = vmatprep.subr.mxu0 0.0
      %423 = vmatpush1.msra.mxu0 0.0
      %424 = vmatprep.subr.mxu0 0.0
      %425 = vmatpush1.msra.mxu0 0.0
      %426 = vmatprep.subr.mxu0 0.0
      %427 = vmatpush1.msra.mxu0 0.0
      %428 = vmatprep.subr.mxu0 0.0
      %429 = vmatpush1.msra.mxu0 0.0
      %430 = vmatprep.subr.mxu0 0.0
      %431 = vmatpush1.msra.mxu0 0.0
      %432 = vmatprep.subr.mxu0 0.0
      %433 = vmatpush1.msra.mxu0 0.0
      %434 = vmatprep.subr.mxu0 0.0
      %435 = vmatpush1.msra.mxu0 0.0
      %436 = vmatprep.subr.mxu0 0.0
      %437 = vmatpush1.msra.mxu0 0.0
      %438 = vmatprep.subr.mxu0 0.0
      %439 = vmatpush1.msra.mxu0 0.0
      %440 = vmatprep.subr.mxu0 0.0
      %441 = vmatpush1.msra.mxu0 0.0
      %442 = vmatprep.subr.mxu0 0.0
      %443 = vmatpush1.msra.mxu0 0.0
      %444 = vmatprep.subr.mxu0 0.0
      %445 = vmatpush1.msra.mxu0 0.0
      %446 = vmatprep.subr.mxu0 0.0
      %447 = vmatpush1.msra.mxu0 0.0
      %448 = vmatprep.subr.mxu0 0.0
      %449 = vmatpush1.msra.mxu0 0.0
      %450 = vmatprep.subr.mxu0 0.0
      %451 = vmatpush1.msra.mxu0 0.0
      %452 = vmatprep.subr.mxu0 0.0
      %453 = vmatpush1.msra.mxu0 0.0
      %454 = vmatprep.subr.mxu0 0.0
      %455 = vmatpush1.msra.mxu0 0.0
      %456 = vmatprep.subr.mxu0 0.0
      %457 = vmatpush1.msra.mxu0 0.0
      %458 = vmatprep.mubr.f32.mxu0 0.0
      %459 = vmatmul.mubr.f32.gmra.mrb[0].mxu0 %v371
      %v460 = vpop.f32.mrb[0].mxu0
      %v461 = vadd.f32 %v367, %v460
      %v462 = vpop.f32.mrb[0].mxu0
      %463 = vmatprep.mubr.f32.mxu0 0.0
      %464 = vmatmul.mubr.f32.gmra.mrb[0].mxu0 %v374
      %v465 = vpop.f32.mrb[0].mxu0
      %v466 = vadd.f32 %v367, %v465
      %v467 = vpop.f32.mrb[0].mxu0
      %468 = vmatprep.mubr.f32.mxu0 0.0
      %469 = vmatmul.mubr.f32.gmra.mrb[0].mxu0 %v377
      %v470 = vpop.f32.mrb[0].mxu0
      %v471 = vadd.f32 %v367, %v470
      %v472 = vpop.f32.mrb[0].mxu0
      %473 = vmatprep.mubr.f32.mxu0 0.0
      %474 = vmatmul.mubr.f32.gmra.mrb[0].mxu0 %v380
      %v475 = vpop.f32.mrb[0].mxu0
      %v476 = vadd.f32 %v367, %v475
      %v477 = vpop.f32.mrb[0].mxu0
      %478 = vmatprep.mubr.f32.mxu0 0.0
      %479 = vmatmul.mubr.f32.gmra.mrb[0].mxu0 %v383
      %v480 = vpop.f32.mrb[0].mxu0
      %v481 = vadd.f32 %v367, %v480
      %v482 = vpop.f32.mrb[0].mxu0
      %483 = vmatprep.mubr.f32.mxu0 0.0
      %484 = vmatmul.mubr.f32.gmra.mrb[0].mxu0 %v386
      %v485 = vpop.f32.mrb[0].mxu0
      %v486 = vadd.f32 %v367, %v485
      %v487 = vpop.f32.mrb[0].mxu0
      %488 = vmatprep.mubr.f32.mxu0 0.0
      %489 = vmatmul.mubr.f32.gmra.mrb[0].mxu0 %v389
      %v490 = vpop.f32.mrb[0].mxu0
      %v491 = vadd.f32 %v367, %v490
      %v492 = vpop.f32.mrb[0].mxu0
      %493 = vmatprep.mubr.f32.mxu0 0.0
      %494 = vmatmul.mubr.f32.gmra.mrb[0].mxu0 %v392
      %v495 = vpop.f32.mrb[0].mxu0
      %v496 = vadd.f32 %v367, %v495
      %v497 = vpop.f32.mrb[0].mxu0
      %498 = vdwg.mxu0
      %v499 = vmax.f32 %v461, 0.0
      %v500 = vmax.f32 %v466, 0.0
      %v501 = vmax.f32 %v471, 0.0
      %v502 = vmax.f32 %v476, 0.0
      %v503 = vmax.f32 %v481, 0.0
      %v504 = vmax.f32 %v486, 0.0
      %v505 = vmax.f32 %v491, 0.0
      %v506 = vmax.f32 %v496, 0.0
      %v507 = vld [vmem:[%s2] sm:$0xff]
      %v508 = vld [vmem:[%s2 + $0x8] sm:$0xff]
      %v509 = vld [vmem:[%s2 + $0x10] sm:$0xff]
      %v510 = vld [vmem:[%s2 + $0x18] sm:$0xff]
      %v511 = vld [vmem:[%s2 + $0x20] sm:$0xff]
      %v512 = vld [vmem:[%s2 + $0x28] sm:$0xff]
      %v513 = vld [vmem:[%s2 + $0x30] sm:$0xff]
      %v514 = vld [vmem:[%s2 + $0x38] sm:$0xff]
      %v515 = vld [vmem:[%s2 + $0x40] sm:$0xff]
      %v516 = vld [vmem:[%s2 + $0x48] sm:$0xff]
      %v517 = vld [vmem:[%s2 + $0x50] sm:$0xff]
      %v518 = vld [vmem:[%s2 + $0x58] sm:$0xff]
      %v519 = vld [vmem:[%s2 + $0x60] sm:$0xff]
      %v520 = vld [vmem:[%s2 + $0x68] sm:$0xff]
      %v521 = vld [vmem:[%s2 + $0x70] sm:$0xff]
      %v522 = vld [vmem:[%s2 + $0x78] sm:$0xff]
      %v523 = vld [vmem:[%s2 + $0x80] sm:$0xff]
      %v524 = vld [vmem:[%s2 + $0x88] sm:$0xff]
      %v525 = vld [vmem:[%s2 + $0x90] sm:$0xff]
      %v526 = vld [vmem:[%s2 + $0x98] sm:$0xff]
      %v527 = vld [vmem:[%s2 + $0xa0] sm:$0xff]
      %v528 = vld [vmem:[%s2 + $0xa8] sm:$0xff]
      %v529 = vld [vmem:[%s2 + $0xb0] sm:$0xff]
      %v530 = vld [vmem:[%s2 + $0xb8] sm:$0xff]
      %v531 = vld [vmem:[%s2 + $0xc0] sm:$0xff]
      %v532 = vld [vmem:[%s2 + $0xc8] sm:$0xff]
      %v533 = vld [vmem:[%s2 + $0xd0] sm:$0xff]
      %v534 = vld [vmem:[%s2 + $0xd8] sm:$0xff]
      %v535 = vld [vmem:[%s2 + $0xe0] sm:$0xff]
      %v536 = vld [vmem:[%s2 + $0xe8] sm:$0xff]
      %v537 = vld [vmem:[%s2 + $0xf0] sm:$0xff]
      %v538 = vld [vmem:[%s2 + $0xf8] sm:$0xff]
      %vm539 = vcmask 523264
      %v541 = vsel %vm539, %v507, 0
      %v544 = vsel %vm539, %v508, 0
      %v547 = vsel %vm539, %v509, 0
      %v550 = vsel %vm539, %v510, 0
      %v553 = vsel %vm539, %v511, 0
      %v556 = vsel %vm539, %v512, 0
      %v559 = vsel %vm539, %v513, 0
      %v562 = vsel %vm539, %v514, 0
      %v565 = vsel %vm539, %v515, 0
      %v568 = vsel %vm539, %v516, 0
      %v571 = vsel %vm539, %v517, 0
      %v574 = vsel %vm539, %v518, 0
      %v577 = vsel %vm539, %v519, 0
      %v580 = vsel %vm539, %v520, 0
      %v583 = vsel %vm539, %v521, 0
      %v586 = vsel %vm539, %v522, 0
      %v589 = vsel %vm539, %v523, 0
      %v592 = vsel %vm539, %v524, 0
      %v595 = vsel %vm539, %v525, 0
      %v598 = vsel %vm539, %v526, 0
      %v601 = vsel %vm539, %v527, 0
      %v604 = vsel %vm539, %v528, 0
      %v607 = vsel %vm539, %v529, 0
      %v610 = vsel %vm539, %v530, 0
      %v613 = vsel %vm539, %v531, 0
      %v616 = vsel %vm539, %v532, 0
      %v619 = vsel %vm539, %v533, 0
      %v622 = vsel %vm539, %v534, 0
      %v625 = vsel %vm539, %v535, 0
      %v628 = vsel %vm539, %v536, 0
      %v631 = vsel %vm539, %v537, 0
      %v634 = vsel %vm539, %v538, 0
      %636 = vmatprep.subr.mxu0 0.0
      %637 = vmatpush1.msra.mxu0 %v499
      %638 = vmatprep.subr.mxu0 0.0
      %639 = vmatpush1.msra.mxu0 %v500
      %640 = vmatprep.subr.mxu0 0.0
      %641 = vmatpush1.msra.mxu0 %v501
      %642 = vmatprep.subr.mxu0 0.0
      %643 = vmatpush1.msra.mxu0 %v502
      %644 = vmatprep.subr.mxu0 0.0
      %645 = vmatpush1.msra.mxu0 %v503
      %646 = vmatprep.subr.mxu0 0.0
      %647 = vmatpush1.msra.mxu0 %v504
      %648 = vmatprep.subr.mxu0 0.0
      %649 = vmatpush1.msra.mxu0 %v505
      %650 = vmatprep.subr.mxu0 0.0
      %651 = vmatpush1.msra.mxu0 %v506
      %652 = vmatprep.subr.mxu0 0.0
      %653 = vmatpush1.msra.mxu0 0.0
      %654 = vmatprep.subr.mxu0 0.0
      %655 = vmatpush1.msra.mxu0 0.0
      %656 = vmatprep.subr.mxu0 0.0
      %657 = vmatpush1.msra.mxu0 0.0
      %658 = vmatprep.subr.mxu0 0.0
      %659 = vmatpush1.msra.mxu0 0.0
      %660 = vmatprep.subr.mxu0 0.0
      %661 = vmatpush1.msra.mxu0 0.0
      %662 = vmatprep.subr.mxu0 0.0
      %663 = vmatpush1.msra.mxu0 0.0
      %664 = vmatprep.subr.mxu0 0.0
      %665 = vmatpush1.msra.mxu0 0.0
      %666 = vmatprep.subr.mxu0 0.0
      %667 = vmatpush1.msra.mxu0 0.0
      %668 = vmatprep.subr.mxu0 0.0
      %669 = vmatpush1.msra.mxu0 0.0
      %670 = vmatprep.subr.mxu0 0.0
      %671 = vmatpush1.msra.mxu0 0.0
      %672 = vmatprep.subr.mxu0 0.0
      %673 = vmatpush1.msra.mxu0 0.0
      %674 = vmatprep.subr.mxu0 0.0
      %675 = vmatpush1.msra.mxu0 0.0
      %676 = vmatprep.subr.mxu0 0.0
      %677 = vmatpush1.msra.mxu0 0.0
      %678 = vmatprep.subr.mxu0 0.0
      %679 = vmatpush1.msra.mxu0 0.0
      %680 = vmatprep.subr.mxu0 0.0
      %681 = vmatpush1.msra.mxu0 0.0
      %682 = vmatprep.subr.mxu0 0.0
      %683 = vmatpush1.msra.mxu0 0.0
      %684 = vmatprep.subr.mxu0 0.0
      %685 = vmatpush1.msra.mxu0 0.0
      %686 = vmatprep.subr.mxu0 0.0
      %687 = vmatpush1.msra.mxu0 0.0
      %688 = vmatprep.subr.mxu0 0.0
      %689 = vmatpush1.msra.mxu0 0.0
      %690 = vmatprep.subr.mxu0 0.0
      %691 = vmatpush1.msra.mxu0 0.0
      %692 = vmatprep.subr.mxu0 0.0
      %693 = vmatpush1.msra.mxu0 0.0
      %694 = vmatprep.subr.mxu0 0.0
      %695 = vmatpush1.msra.mxu0 0.0
      %696 = vmatprep.subr.mxu0 0.0
      %697 = vmatpush1.msra.mxu0 0.0
      %698 = vmatprep.subr.mxu0 0.0
      %699 = vmatpush1.msra.mxu0 0.0
      %700 = vmatprep.mubr.f32.mxu0 0.0
      %701 = vmatmul.mubr.f32.gmra.mrb[0].mxu0 %v541
      %v702 = vpop.f32.mrb[0].mxu0
      %v703 = vadd.f32 0.0, %v702
      %v704 = vpop.f32.mrb[0].mxu0
      %705 = vmatprep.mubr.f32.mxu0 0.0
      %706 = vmatmul.mubr.f32.gmra.mrb[0].mxu0 %v544
      %v707 = vpop.f32.mrb[0].mxu0
      %v708 = vadd.f32 0.0, %v707
      %v709 = vpop.f32.mrb[0].mxu0
      %710 = vmatprep.mubr.f32.mxu0 0.0
      %711 = vmatmul.mubr.f32.gmra.mrb[0].mxu0 %v547
      %v712 = vpop.f32.mrb[0].mxu0
      %v713 = vadd.f32 0.0, %v712
      %v714 = vpop.f32.mrb[0].mxu0
      %715 = vmatprep.mubr.f32.mxu0 0.0
      %716 = vmatmul.mubr.f32.gmra.mrb[0].mxu0 %v550
      %v717 = vpop.f32.mrb[0].mxu0
      %v718 = vadd.f32 0.0, %v717
      %v719 = vpop.f32.mrb[0].mxu0
      %720 = vmatprep.mubr.f32.mxu0 0.0
      %721 = vmatmul.mubr.f32.gmra.mrb[0].mxu0 %v553
      %v722 = vpop.f32.mrb[0].mxu0
      %v723 = vadd.f32 0.0, %v722
      %v724 = vpop.f32.mrb[0].mxu0
      %725 = vmatprep.mubr.f32.mxu0 0.0
      %726 = vmatmul.mubr.f32.gmra.mrb[0].mxu0 %v556
      %v727 = vpop.f32.mrb[0].mxu0
      %v728 = vadd.f32 0.0, %v727
      %v729 = vpop.f32.mrb[0].mxu0
      %730 = vmatprep.mubr.f32.mxu0 0.0
      %731 = vmatmul.mubr.f32.gmra.mrb[0].mxu0 %v559
      %v732 = vpop.f32.mrb[0].mxu0
      %v733 = vadd.f32 0.0, %v732
      %v734 = vpop.f32.mrb[0].mxu0
      %735 = vmatprep.mubr.f32.mxu0 0.0
      %736 = vmatmul.mubr.f32.gmra.mrb[0].mxu0 %v562
      %v737 = vpop.f32.mrb[0].mxu0
      %v738 = vadd.f32 0.0, %v737
      %v739 = vpop.f32.mrb[0].mxu0
      %740 = vmatprep.mubr.f32.mxu0 0.0
      %741 = vmatmul.mubr.f32.gmra.mrb[0].mxu0 %v565
      %v742 = vpop.f32.mrb[0].mxu0
      %v743 = vadd.f32 0.0, %v742
      %v744 = vpop.f32.mrb[0].mxu0
      %745 = vmatprep.mubr.f32.mxu0 0.0
      %746 = vmatmul.mubr.f32.gmra.mrb[0].mxu0 %v568
      %v747 = vpop.f32.mrb[0].mxu0
      %v748 = vadd.f32 0.0, %v747
      %v749 = vpop.f32.mrb[0].mxu0
      %750 = vmatprep.mubr.f32.mxu0 0.0
      %751 = vmatmul.mubr.f32.gmra.mrb[0].mxu0 %v571
      %v752 = vpop.f32.mrb[0].mxu0
      %v753 = vadd.f32 0.0, %v752
      %v754 = vpop.f32.mrb[0].mxu0
      %755 = vmatprep.mubr.f32.mxu0 0.0
      %756 = vmatmul.mubr.f32.gmra.mrb[0].mxu0 %v574
      %v757 = vpop.f32.mrb[0].mxu0
      %v758 = vadd.f32 0.0, %v757
      %v759 = vpop.f32.mrb[0].mxu0
      %760 = vmatprep.mubr.f32.mxu0 0.0
      %761 = vmatmul.mubr.f32.gmra.mrb[0].mxu0 %v577
      %v762 = vpop.f32.mrb[0].mxu0
      %v763 = vadd.f32 0.0, %v762
      %v764 = vpop.f32.mrb[0].mxu0
      %765 = vmatprep.mubr.f32.mxu0 0.0
      %766 = vmatmul.mubr.f32.gmra.mrb[0].mxu0 %v580
      %v767 = vpop.f32.mrb[0].mxu0
      %v768 = vadd.f32 0.0, %v767
      %v769 = vpop.f32.mrb[0].mxu0
      %770 = vmatprep.mubr.f32.mxu0 0.0
      %771 = vmatmul.mubr.f32.gmra.mrb[0].mxu0 %v583
      %v772 = vpop.f32.mrb[0].mxu0
      %v773 = vadd.f32 0.0, %v772
      %v774 = vpop.f32.mrb[0].mxu0
      %775 = vmatprep.mubr.f32.mxu0 0.0
      %776 = vmatmul.mubr.f32.gmra.mrb[0].mxu0 %v586
      %v777 = vpop.f32.mrb[0].mxu0
      %v778 = vadd.f32 0.0, %v777
      %v779 = vpop.f32.mrb[0].mxu0
      %780 = vmatprep.mubr.f32.mxu0 0.0
      %781 = vmatmul.mubr.f32.gmra.mrb[0].mxu0 %v589
      %v782 = vpop.f32.mrb[0].mxu0
      %v783 = vadd.f32 0.0, %v782
      %v784 = vpop.f32.mrb[0].mxu0
      %785 = vmatprep.mubr.f32.mxu0 0.0
      %786 = vmatmul.mubr.f32.gmra.mrb[0].mxu0 %v592
      %v787 = vpop.f32.mrb[0].mxu0
      %v788 = vadd.f32 0.0, %v787
      %v789 = vpop.f32.mrb[0].mxu0
      %790 = vmatprep.mubr.f32.mxu0 0.0
      %791 = vmatmul.mubr.f32.gmra.mrb[0].mxu0 %v595
      %v792 = vpop.f32.mrb[0].mxu0
      %v793 = vadd.f32 0.0, %v792
      %v794 = vpop.f32.mrb[0].mxu0
      %795 = vmatprep.mubr.f32.mxu0 0.0
      %796 = vmatmul.mubr.f32.gmra.mrb[0].mxu0 %v598
      %v797 = vpop.f32.mrb[0].mxu0
      %v798 = vadd.f32 0.0, %v797
      %v799 = vpop.f32.mrb[0].mxu0
      %800 = vmatprep.mubr.f32.mxu0 0.0
      %801 = vmatmul.mubr.f32.gmra.mrb[0].mxu0 %v601
      %v802 = vpop.f32.mrb[0].mxu0
      %v803 = vadd.f32 0.0, %v802
      %v804 = vpop.f32.mrb[0].mxu0
      %805 = vmatprep.mubr.f32.mxu0 0.0
      %806 = vmatmul.mubr.f32.gmra.mrb[0].mxu0 %v604
      %v807 = vpop.f32.mrb[0].mxu0
      %v808 = vadd.f32 0.0, %v807
      %v809 = vpop.f32.mrb[0].mxu0
      %810 = vmatprep.mubr.f32.mxu0 0.0
      %811 = vmatmul.mubr.f32.gmra.mrb[0].mxu0 %v607
      %v812 = vpop.f32.mrb[0].mxu0
      %v813 = vadd.f32 0.0, %v812
      %v814 = vpop.f32.mrb[0].mxu0
      %815 = vmatprep.mubr.f32.mxu0 0.0
      %816 = vmatmul.mubr.f32.gmra.mrb[0].mxu0 %v610
      %v817 = vpop.f32.mrb[0].mxu0
      %v818 = vadd.f32 0.0, %v817
      %v819 = vpop.f32.mrb[0].mxu0
      %820 = vmatprep.mubr.f32.mxu0 0.0
      %821 = vmatmul.mubr.f32.gmra.mrb[0].mxu0 %v613
      %v822 = vpop.f32.mrb[0].mxu0
      %v823 = vadd.f32 0.0, %v822
      %v824 = vpop.f32.mrb[0].mxu0
      %825 = vmatprep.mubr.f32.mxu0 0.0
      %826 = vmatmul.mubr.f32.gmra.mrb[0].mxu0 %v616
      %v827 = vpop.f32.mrb[0].mxu0
      %v828 = vadd.f32 0.0, %v827
      %v829 = vpop.f32.mrb[0].mxu0
      %830 = vmatprep.mubr.f32.mxu0 0.0
      %831 = vmatmul.mubr.f32.gmra.mrb[0].mxu0 %v619
      %v832 = vpop.f32.mrb[0].mxu0
      %v833 = vadd.f32 0.0, %v832
      %v834 = vpop.f32.mrb[0].mxu0
      %835 = vmatprep.mubr.f32.mxu0 0.0
      %836 = vmatmul.mubr.f32.gmra.mrb[0].mxu0 %v622
      %v837 = vpop.f32.mrb[0].mxu0
      %v838 = vadd.f32 0.0, %v837
      %v839 = vpop.f32.mrb[0].mxu0
      %840 = vmatprep.mubr.f32.mxu0 0.0
      %841 = vmatmul.mubr.f32.gmra.mrb[0].mxu0 %v625
      %v842 = vpop.f32.mrb[0].mxu0
      %v843 = vadd.f32 0.0, %v842
      %v844 = vpop.f32.mrb[0].mxu0
      %845 = vmatprep.mubr.f32.mxu0 0.0
      %846 = vmatmul.mubr.f32.gmra.mrb[0].mxu0 %v628
      %v847 = vpop.f32.mrb[0].mxu0
      %v848 = vadd.f32 0.0, %v847
      %v849 = vpop.f32.mrb[0].mxu0
      %850 = vmatprep.mubr.f32.mxu0 0.0
      %851 = vmatmul.mubr.f32.gmra.mrb[0].mxu0 %v631
      %v852 = vpop.f32.mrb[0].mxu0
      %v853 = vadd.f32 0.0, %v852
      %v854 = vpop.f32.mrb[0].mxu0
      %855 = vmatprep.mubr.f32.mxu0 0.0
      %856 = vmatmul.mubr.f32.gmra.mrb[0].mxu0 %v634
      %v857 = vpop.f32.mrb[0].mxu0
      %v858 = vadd.f32 0.0, %v857
      %v859 = vpop.f32.mrb[0].mxu0
      %860 = vdwg.mxu0
      %861 = vst.msk [vmem:[#allocation2] sm:$0xff] %vm369, 0.0
      %862 = vst.msk [vmem:[#allocation2 + $0x8] sm:$0xff] %vm369, 0.0
      %vm863 = vcmask 58368
      %864 = vst.msk [vmem:[#allocation2 + $0x10] sm:$0x3] %vm863, 0.0
      %865 = vst.msk [vmem:[#allocation2 + $0x18] sm:$0xff] %vm369, 0.0
      %866 = vst.msk [vmem:[#allocation2 + $0x20] sm:$0xff] %vm369, 0.0
      %867 = vst.msk [vmem:[#allocation2 + $0x28] sm:$0x3] %vm863, 0.0
      %868 = vst.msk [vmem:[#allocation2 + $0x30] sm:$0xff] %vm369, 0.0
      %869 = vst.msk [vmem:[#allocation2 + $0x38] sm:$0xff] %vm369, 0.0
      %870 = vst.msk [vmem:[#allocation2 + $0x40] sm:$0x3] %vm863, 0.0
      %871 = vst.msk [vmem:[#allocation2 + $0x48] sm:$0xff] %vm369, 0.0
      %872 = vst.msk [vmem:[#allocation2 + $0x50] sm:$0xff] %vm369, 0.0
      %873 = vst.msk [vmem:[#allocation2 + $0x58] sm:$0x3] %vm863, 0.0
      %874 = vst.msk [vmem:[#allocation2 + $0x60] sm:$0xff] %vm369, 0.0
      %875 = vst.msk [vmem:[#allocation2 + $0x68] sm:$0xff] %vm369, 0.0
      %876 = vst.msk [vmem:[#allocation2 + $0x70] sm:$0x3] %vm863, 0.0
      %877 = vst.msk [vmem:[#allocation2 + $0x78] sm:$0xff] %vm369, 0.0
      %878 = vst.msk [vmem:[#allocation2 + $0x80] sm:$0xff] %vm369, 0.0
      %879 = vst.msk [vmem:[#allocation2 + $0x88] sm:$0x3] %vm863, 0.0
      %880 = vst.msk [vmem:[#allocation2 + $0x90] sm:$0xff] %vm369, 0.0
      %881 = vst.msk [vmem:[#allocation2 + $0x98] sm:$0xff] %vm369, 0.0
      %882 = vst.msk [vmem:[#allocation2 + $0xa0] sm:$0x3] %vm863, 0.0
      %883 = vst.msk [vmem:[#allocation2 + $0xa8] sm:$0xff] %vm369, 0.0
      %884 = vst.msk [vmem:[#allocation2 + $0xb0] sm:$0xff] %vm369, 0.0
      %885 = vst.msk [vmem:[#allocation2 + $0xb8] sm:$0x3] %vm863, 0.0
      %886 = vst.msk [vmem:[#allocation2 + $0xc0] sm:$0xff] %vm369, 0.0
      %887 = vst.msk [vmem:[#allocation2 + $0xc8] sm:$0xff] %vm369, 0.0
      %888 = vst.msk [vmem:[#allocation2 + $0xd0] sm:$0x3] %vm863, 0.0
      %889 = vst.msk [vmem:[#allocation2 + $0xd8] sm:$0xff] %vm369, 0.0
      %890 = vst.msk [vmem:[#allocation2 + $0xe0] sm:$0xff] %vm369, 0.0
      %891 = vst.msk [vmem:[#allocation2 + $0xe8] sm:$0x3] %vm863, 0.0
      %892 = vst.msk [vmem:[#allocation2 + $0xf0] sm:$0xff] %vm369, 0.0
      %893 = vst.msk [vmem:[#allocation2 + $0xf8] sm:$0xff] %vm369, 0.0
      %894 = vst.msk [vmem:[#allocation2 + $0x100] sm:$0x3] %vm863, 0.0
      %895 = vst.msk [vmem:[#allocation2 + $0x108] sm:$0xff] %vm369, 0.0
      %896 = vst.msk [vmem:[#allocation2 + $0x110] sm:$0xff] %vm369, 0.0
      %897 = vst.msk [vmem:[#allocation2 + $0x118] sm:$0x3] %vm863, 0.0
      %898 = vst.msk [vmem:[#allocation2 + $0x120] sm:$0xff] %vm369, 0.0
      %899 = vst.msk [vmem:[#allocation2 + $0x128] sm:$0xff] %vm369, 0.0
      %900 = vst.msk [vmem:[#allocation2 + $0x130] sm:$0x3] %vm863, 0.0
      %901 = vst.msk [vmem:[#allocation2 + $0x138] sm:$0xff] %vm369, 0.0
      %902 = vst.msk [vmem:[#allocation2 + $0x140] sm:$0xff] %vm369, 0.0
      %903 = vst.msk [vmem:[#allocation2 + $0x148] sm:$0x3] %vm863, 0.0
      %904 = vst.msk [vmem:[#allocation2 + $0x150] sm:$0xff] %vm369, 0.0
      %905 = vst.msk [vmem:[#allocation2 + $0x158] sm:$0xff] %vm369, 0.0
      %906 = vst.msk [vmem:[#allocation2 + $0x160] sm:$0x3] %vm863, 0.0
      %907 = vst.msk [vmem:[#allocation2 + $0x168] sm:$0xff] %vm369, 0.0
      %908 = vst.msk [vmem:[#allocation2 + $0x170] sm:$0xff] %vm369, 0.0
      %909 = vst.msk [vmem:[#allocation2 + $0x178] sm:$0x3] %vm863, 0.0
      %910 = vst.msk [vmem:[#allocation2 + $0x180] sm:$0xff] %vm369, 0.0
      %911 = vst.msk [vmem:[#allocation2 + $0x188] sm:$0xff] %vm369, 0.0
      %912 = vst.msk [vmem:[#allocation2 + $0x190] sm:$0x3] %vm863, 0.0
      %913 = vst.msk [vmem:[#allocation2 + $0x198] sm:$0xff] %vm369, 0.0
      %914 = vst.msk [vmem:[#allocation2 + $0x1a0] sm:$0xff] %vm369, 0.0
      %915 = vst.msk [vmem:[#allocation2 + $0x1a8] sm:$0x3] %vm863, 0.0
      %v916 = vld [vmem:[%s347] sm:$0xff]
      %v917 = vld [vmem:[%s347 + $0x8] sm:$0xff]
      %v918 = vld [vmem:[%s347 + $0x10] sm:$0xff]
      %v919 = vld [vmem:[%s347 + $0x18] sm:$0xff]
      %v920 = vld [vmem:[%s347 + $0x20] sm:$0xff]
      %v921 = vld [vmem:[%s347 + $0x28] sm:$0xff]
      %v922 = vld [vmem:[%s347 + $0x30] sm:$0xff]
      %v923 = vld [vmem:[%s347 + $0x38] sm:$0xff]
      %v924 = vld [vmem:[%s347 + $0x40] sm:$0xff]
      %v925 = vld [vmem:[%s347 + $0x48] sm:$0xff]
      %v926 = vld [vmem:[%s347 + $0x50] sm:$0xff]
      %v927 = vld [vmem:[%s347 + $0x58] sm:$0xff]
      %v928 = vld [vmem:[%s347 + $0x60] sm:$0xff]
      %v929 = vld [vmem:[%s347 + $0x68] sm:$0xff]
      %v930 = vld [vmem:[%s347 + $0x70] sm:$0xff]
      %v931 = vld [vmem:[%s347 + $0x78] sm:$0xff]
      %v932 = vld [vmem:[%s347 + $0x80] sm:$0xff]
      %v933 = vld [vmem:[%s347 + $0x88] sm:$0xff]
      %v934 = vld [vmem:[%s347 + $0x90] sm:$0xff]
      %v935 = vld [vmem:[%s347 + $0x98] sm:$0xff]
      %v936 = vld [vmem:[%s347 + $0xa0] sm:$0xff]
      %v937 = vld [vmem:[%s347 + $0xa8] sm:$0xff]
      %v938 = vld [vmem:[%s347 + $0xb0] sm:$0xff]
      %v939 = vld [vmem:[%s347 + $0xb8] sm:$0xff]
      %v940 = vld [vmem:[%s347 + $0xc0] sm:$0xff]
      %v941 = vld [vmem:[%s347 + $0xc8] sm:$0xff]
      %v942 = vld [vmem:[%s347 + $0xd0] sm:$0xff]
      %v943 = vld [vmem:[%s347 + $0xd8] sm:$0xff]
      %v944 = vld [vmem:[%s347 + $0xe0] sm:$0xff]
      %v945 = vld [vmem:[%s347 + $0xe8] sm:$0xff]
      %v946 = vld [vmem:[%s347 + $0xf0] sm:$0xff]
      %v947 = vld [vmem:[%s347 + $0xf8] sm:$0xff]
      %s948 = scalar_lea.vmem [#allocation2], 24
      %vm949 = vcmask 31744
      %950 = vst.msk [vmem:[%s948 + $0x1] sm:$0xff] %vm949, %v916
      %951 = vst.msk [vmem:[%s948 + $0x9] sm:$0xff] %vm949, %v917
      %952 = vst.msk [vmem:[%s948 + $0x19] sm:$0xff] %vm949, %v918
      %953 = vst.msk [vmem:[%s948 + $0x21] sm:$0xff] %vm949, %v919
      %954 = vst.msk [vmem:[%s948 + $0x31] sm:$0xff] %vm949, %v920
      %955 = vst.msk [vmem:[%s948 + $0x39] sm:$0xff] %vm949, %v921
      %956 = vst.msk [vmem:[%s948 + $0x49] sm:$0xff] %vm949, %v922
      %957 = vst.msk [vmem:[%s948 + $0x51] sm:$0xff] %vm949, %v923
      %958 = vst.msk [vmem:[%s948 + $0x61] sm:$0xff] %vm949, %v924
      %959 = vst.msk [vmem:[%s948 + $0x69] sm:$0xff] %vm949, %v925
      %960 = vst.msk [vmem:[%s948 + $0x79] sm:$0xff] %vm949, %v926
      %961 = vst.msk [vmem:[%s948 + $0x81] sm:$0xff] %vm949, %v927
      %962 = vst.msk [vmem:[%s948 + $0x91] sm:$0xff] %vm949, %v928
      %963 = vst.msk [vmem:[%s948 + $0x99] sm:$0xff] %vm949, %v929
      %964 = vst.msk [vmem:[%s948 + $0xa9] sm:$0xff] %vm949, %v930
      %965 = vst.msk [vmem:[%s948 + $0xb1] sm:$0xff] %vm949, %v931
      %966 = vst.msk [vmem:[%s948 + $0xc1] sm:$0xff] %vm949, %v932
      %967 = vst.msk [vmem:[%s948 + $0xc9] sm:$0xff] %vm949, %v933
      %968 = vst.msk [vmem:[%s948 + $0xd9] sm:$0xff] %vm949, %v934
      %969 = vst.msk [vmem:[%s948 + $0xe1] sm:$0xff] %vm949, %v935
      %970 = vst.msk [vmem:[%s948 + $0xf1] sm:$0xff] %vm949, %v936
      %971 = vst.msk [vmem:[%s948 + $0xf9] sm:$0xff] %vm949, %v937
      %972 = vst.msk [vmem:[%s948 + $0x109] sm:$0xff] %vm949, %v938
      %973 = vst.msk [vmem:[%s948 + $0x111] sm:$0xff] %vm949, %v939
      %974 = vst.msk [vmem:[%s948 + $0x121] sm:$0xff] %vm949, %v940
      %975 = vst.msk [vmem:[%s948 + $0x129] sm:$0xff] %vm949, %v941
      %976 = vst.msk [vmem:[%s948 + $0x139] sm:$0xff] %vm949, %v942
      %977 = vst.msk [vmem:[%s948 + $0x141] sm:$0xff] %vm949, %v943
      %978 = vst.msk [vmem:[%s948 + $0x151] sm:$0xff] %vm949, %v944
      %979 = vst.msk [vmem:[%s948 + $0x159] sm:$0xff] %vm949, %v945
      %980 = vst.msk [vmem:[%s948 + $0x169] sm:$0xff] %vm949, %v946
      %981 = vst.msk [vmem:[%s948 + $0x171] sm:$0xff] %vm949, %v947
      %1014 = vrot.lane.b32.xlu0 %v703, 4
      %v1015 = vpop.permute.xlu0 %1014
      %1016 = vrot.lane.b32.xlu0 %v708, 4
      %v1017 = vpop.permute.xlu0 %1016
      %1018 = vrot.lane.b32.xlu0 %v713, 4
      %v1019 = vpop.permute.xlu0 %1018
      %1020 = vrot.lane.b32.xlu0 %v718, 4
      %v1021 = vpop.permute.xlu0 %1020
      %1022 = vrot.lane.b32.xlu0 %v723, 4
      %v1023 = vpop.permute.xlu0 %1022
      %1024 = vrot.lane.b32.xlu0 %v728, 4
      %v1025 = vpop.permute.xlu0 %1024
      %1026 = vrot.lane.b32.xlu0 %v733, 4
      %v1027 = vpop.permute.xlu0 %1026
      %1028 = vrot.lane.b32.xlu0 %v738, 4
      %v1029 = vpop.permute.xlu0 %1028
      %1030 = vrot.lane.b32.xlu0 %v743, 4
      %v1031 = vpop.permute.xlu0 %1030
      %1032 = vrot.lane.b32.xlu0 %v748, 4
      %v1033 = vpop.permute.xlu0 %1032
      %1034 = vrot.lane.b32.xlu0 %v753, 4
      %v1035 = vpop.permute.xlu0 %1034
      %1036 = vrot.lane.b32.xlu0 %v758, 4
      %v1037 = vpop.permute.xlu0 %1036
      %1038 = vrot.lane.b32.xlu0 %v763, 4
      %v1039 = vpop.permute.xlu0 %1038
      %1040 = vrot.lane.b32.xlu0 %v768, 4
      %v1041 = vpop.permute.xlu0 %1040
      %1042 = vrot.lane.b32.xlu0 %v773, 4
      %v1043 = vpop.permute.xlu0 %1042
      %1044 = vrot.lane.b32.xlu0 %v778, 4
      %v1045 = vpop.permute.xlu0 %1044
      %1046 = vrot.lane.b32.xlu0 %v783, 4
      %v1047 = vpop.permute.xlu0 %1046
      %1048 = vrot.lane.b32.xlu0 %v788, 4
      %v1049 = vpop.permute.xlu0 %1048
      %1050 = vrot.lane.b32.xlu0 %v793, 4
      %v1051 = vpop.permute.xlu0 %1050
      %1052 = vrot.lane.b32.xlu0 %v798, 4
      %v1053 = vpop.permute.xlu0 %1052
      %1054 = vrot.lane.b32.xlu0 %v803, 4
      %v1055 = vpop.permute.xlu0 %1054
      %1056 = vrot.lane.b32.xlu0 %v808, 4
      %v1057 = vpop.permute.xlu0 %1056
      %1058 = vrot.lane.b32.xlu0 %v813, 4
      %v1059 = vpop.permute.xlu0 %1058
      %1060 = vrot.lane.b32.xlu0 %v818, 4
      %v1061 = vpop.permute.xlu0 %1060
      %1062 = vrot.lane.b32.xlu0 %v823, 4
      %v1063 = vpop.permute.xlu0 %1062
      %1064 = vrot.lane.b32.xlu0 %v828, 4
      %v1065 = vpop.permute.xlu0 %1064
      %1066 = vrot.lane.b32.xlu0 %v833, 4
      %v1067 = vpop.permute.xlu0 %1066
      %1068 = vrot.lane.b32.xlu0 %v838, 4
      %v1069 = vpop.permute.xlu0 %1068
      %1070 = vrot.lane.b32.xlu0 %v843, 4
      %v1071 = vpop.permute.xlu0 %1070
      %1072 = vrot.lane.b32.xlu0 %v848, 4
      %v1073 = vpop.permute.xlu0 %1072
      %1074 = vrot.lane.b32.xlu0 %v853, 4
      %v1075 = vpop.permute.xlu0 %1074
      %1076 = vrot.lane.b32.xlu0 %v858, 4
      %v1077 = vpop.permute.xlu0 %1076
      %vm1110 = vcmask 64544
      %1111 = vst.msk [vmem:[%s948 + $0x1] sm:$0xff] %vm1110, %v1015
      %1112 = vst.msk [vmem:[%s948 + $0x9] sm:$0xff] %vm1110, %v1017
      %1113 = vst.msk [vmem:[%s948 + $0x19] sm:$0xff] %vm1110, %v1019
      %1114 = vst.msk [vmem:[%s948 + $0x21] sm:$0xff] %vm1110, %v1021
      %1115 = vst.msk [vmem:[%s948 + $0x31] sm:$0xff] %vm1110, %v1023
      %1116 = vst.msk [vmem:[%s948 + $0x39] sm:$0xff] %vm1110, %v1025
      %1117 = vst.msk [vmem:[%s948 + $0x49] sm:$0xff] %vm1110, %v1027
      %1118 = vst.msk [vmem:[%s948 + $0x51] sm:$0xff] %vm1110, %v1029
      %1119 = vst.msk [vmem:[%s948 + $0x61] sm:$0xff] %vm1110, %v1031
      %1120 = vst.msk [vmem:[%s948 + $0x69] sm:$0xff] %vm1110, %v1033
      %1121 = vst.msk [vmem:[%s948 + $0x79] sm:$0xff] %vm1110, %v1035
      %1122 = vst.msk [vmem:[%s948 + $0x81] sm:$0xff] %vm1110, %v1037
      %1123 = vst.msk [vmem:[%s948 + $0x91] sm:$0xff] %vm1110, %v1039
      %1124 = vst.msk [vmem:[%s948 + $0x99] sm:$0xff] %vm1110, %v1041
      %1125 = vst.msk [vmem:[%s948 + $0xa9] sm:$0xff] %vm1110, %v1043
      %1126 = vst.msk [vmem:[%s948 + $0xb1] sm:$0xff] %vm1110, %v1045
      %1127 = vst.msk [vmem:[%s948 + $0xc1] sm:$0xff] %vm1110, %v1047
      %1128 = vst.msk [vmem:[%s948 + $0xc9] sm:$0xff] %vm1110, %v1049
      %1129 = vst.msk [vmem:[%s948 + $0xd9] sm:$0xff] %vm1110, %v1051
      %1130 = vst.msk [vmem:[%s948 + $0xe1] sm:$0xff] %vm1110, %v1053
      %1131 = vst.msk [vmem:[%s948 + $0xf1] sm:$0xff] %vm1110, %v1055
      %1132 = vst.msk [vmem:[%s948 + $0xf9] sm:$0xff] %vm1110, %v1057
      %1133 = vst.msk [vmem:[%s948 + $0x109] sm:$0xff] %vm1110, %v1059
      %1134 = vst.msk [vmem:[%s948 + $0x111] sm:$0xff] %vm1110, %v1061
      %1135 = vst.msk [vmem:[%s948 + $0x121] sm:$0xff] %vm1110, %v1063
      %1136 = vst.msk [vmem:[%s948 + $0x129] sm:$0xff] %vm1110, %v1065
      %1137 = vst.msk [vmem:[%s948 + $0x139] sm:$0xff] %vm1110, %v1067
      %1138 = vst.msk [vmem:[%s948 + $0x141] sm:$0xff] %vm1110, %v1069
      %1139 = vst.msk [vmem:[%s948 + $0x151] sm:$0xff] %vm1110, %v1071
      %1140 = vst.msk [vmem:[%s948 + $0x159] sm:$0xff] %vm1110, %v1073
      %1141 = vst.msk [vmem:[%s948 + $0x169] sm:$0xff] %vm1110, %v1075
      %1142 = vst.msk [vmem:[%s948 + $0x171] sm:$0xff] %vm1110, %v1077
      %v1143 = vld [vmem:[#allocation2] sm:$0xff]
      %v1144 = vld [vmem:[#allocation2 + $0x8] sm:$0xff]
      %v1145 = vld [vmem:[#allocation2 + $0x18] sm:$0xff]
      %v1146 = vld [vmem:[#allocation2 + $0x20] sm:$0xff]
      %v1147 = vld [vmem:[#allocation2 + $0x30] sm:$0xff]
      %v1148 = vld [vmem:[#allocation2 + $0x38] sm:$0xff]
      %v1149 = vld [vmem:[#allocation2 + $0x48] sm:$0xff]
      %v1150 = vld [vmem:[#allocation2 + $0x50] sm:$0xff]
      %v1151 = vld [vmem:[#allocation2 + $0x60] sm:$0xff]
      %v1152 = vld [vmem:[#allocation2 + $0x68] sm:$0xff]
      %v1153 = vld [vmem:[#allocation2 + $0x78] sm:$0xff]
      %v1154 = vld [vmem:[#allocation2 + $0x80] sm:$0xff]
      %v1155 = vld [vmem:[#allocation2 + $0x90] sm:$0xff]
      %v1156 = vld [vmem:[#allocation2 + $0x98] sm:$0xff]
      %v1157 = vld [vmem:[#allocation2 + $0xa8] sm:$0xff]
      %v1158 = vld [vmem:[#allocation2 + $0xb0] sm:$0xff]
      %v1159 = vld [vmem:[#allocation2 + $0xc0] sm:$0xff]
      %v1160 = vld [vmem:[#allocation2 + $0xc8] sm:$0xff]
      %v1161 = vld [vmem:[#allocation2 + $0xd8] sm:$0xff]
      %v1162 = vld [vmem:[#allocation2 + $0xe0] sm:$0xff]
      %v1163 = vld [vmem:[#allocation2 + $0xf0] sm:$0xff]
      %v1164 = vld [vmem:[#allocation2 + $0xf8] sm:$0xff]
      %v1165 = vld [vmem:[#allocation2 + $0x108] sm:$0xff]
      %v1166 = vld [vmem:[#allocation2 + $0x110] sm:$0xff]
      %v1167 = vld [vmem:[#allocation2 + $0x120] sm:$0xff]
      %v1168 = vld [vmem:[#allocation2 + $0x128] sm:$0xff]
      %v1169 = vld [vmem:[#allocation2 + $0x138] sm:$0xff]
      %v1170 = vld [vmem:[#allocation2 + $0x140] sm:$0xff]
      %v1171 = vld [vmem:[#allocation2 + $0x150] sm:$0xff]
      %v1172 = vld [vmem:[#allocation2 + $0x158] sm:$0xff]
      %v1173 = vld [vmem:[#allocation2 + $0x168] sm:$0xff]
      %v1174 = vld [vmem:[#allocation2 + $0x170] sm:$0xff]
      %v1175 = vld [vmem:[#allocation2 + $0x1] sm:$0xff]
      %v1176 = vld [vmem:[#allocation2 + $0x9] sm:$0xff]
      %v1177 = vld [vmem:[#allocation2 + $0x19] sm:$0xff]
      %v1178 = vld [vmem:[#allocation2 + $0x21] sm:$0xff]
      %v1179 = vld [vmem:[#allocation2 + $0x31] sm:$0xff]
      %v1180 = vld [vmem:[#allocation2 + $0x39] sm:$0xff]
      %v1181 = vld [vmem:[#allocation2 + $0x49] sm:$0xff]
      %v1182 = vld [vmem:[#allocation2 + $0x51] sm:$0xff]
      %v1183 = vld [vmem:[#allocation2 + $0x61] sm:$0xff]
      %v1184 = vld [vmem:[#allocation2 + $0x69] sm:$0xff]
      %v1185 = vld [vmem:[#allocation2 + $0x79] sm:$0xff]
      %v1186 = vld [vmem:[#allocation2 + $0x81] sm:$0xff]
      %v1187 = vld [vmem:[#allocation2 + $0x91] sm:$0xff]
      %v1188 = vld [vmem:[#allocation2 + $0x99] sm:$0xff]
      %v1189 = vld [vmem:[#allocation2 + $0xa9] sm:$0xff]
      %v1190 = vld [vmem:[#allocation2 + $0xb1] sm:$0xff]
      %v1191 = vld [vmem:[#allocation2 + $0xc1] sm:$0xff]
      %v1192 = vld [vmem:[#allocation2 + $0xc9] sm:$0xff]
      %v1193 = vld [vmem:[#allocation2 + $0xd9] sm:$0xff]
      %v1194 = vld [vmem:[#allocation2 + $0xe1] sm:$0xff]
      %v1195 = vld [vmem:[#allocation2 + $0xf1] sm:$0xff]
      %v1196 = vld [vmem:[#allocation2 + $0xf9] sm:$0xff]
      %v1197 = vld [vmem:[#allocation2 + $0x109] sm:$0xff]
      %v1198 = vld [vmem:[#allocation2 + $0x111] sm:$0xff]
      %v1199 = vld [vmem:[#allocation2 + $0x121] sm:$0xff]
      %v1200 = vld [vmem:[#allocation2 + $0x129] sm:$0xff]
      %v1201 = vld [vmem:[#allocation2 + $0x139] sm:$0xff]
      %v1202 = vld [vmem:[#allocation2 + $0x141] sm:$0xff]
      %v1203 = vld [vmem:[#allocation2 + $0x151] sm:$0xff]
      %v1204 = vld [vmem:[#allocation2 + $0x159] sm:$0xff]
      %v1205 = vld [vmem:[#allocation2 + $0x169] sm:$0xff]
      %v1206 = vld [vmem:[#allocation2 + $0x171] sm:$0xff]
      %v1207 = vld [vmem:[#allocation2 + $0x2] sm:$0xff]
      %v1208 = vld [vmem:[#allocation2 + $0xa] sm:$0xff]
      %v1209 = vld [vmem:[#allocation2 + $0x1a] sm:$0xff]
      %v1210 = vld [vmem:[#allocation2 + $0x22] sm:$0xff]
      %v1211 = vld [vmem:[#allocation2 + $0x32] sm:$0xff]
      %v1212 = vld [vmem:[#allocation2 + $0x3a] sm:$0xff]
      %v1213 = vld [vmem:[#allocation2 + $0x4a] sm:$0xff]
      %v1214 = vld [vmem:[#allocation2 + $0x52] sm:$0xff]
      %v1215 = vld [vmem:[#allocation2 + $0x62] sm:$0xff]
      %v1216 = vld [vmem:[#allocation2 + $0x6a] sm:$0xff]
      %v1217 = vld [vmem:[#allocation2 + $0x7a] sm:$0xff]
      %v1218 = vld [vmem:[#allocation2 + $0x82] sm:$0xff]
      %v1219 = vld [vmem:[#allocation2 + $0x92] sm:$0xff]
      %v1220 = vld [vmem:[#allocation2 + $0x9a] sm:$0xff]
      %v1221 = vld [vmem:[#allocation2 + $0xaa] sm:$0xff]
      %v1222 = vld [vmem:[#allocation2 + $0xb2] sm:$0xff]
      %v1223 = vld [vmem:[#allocation2 + $0xc2] sm:$0xff]
      %v1224 = vld [vmem:[#allocation2 + $0xca] sm:$0xff]
      %v1225 = vld [vmem:[#allocation2 + $0xda] sm:$0xff]
      %v1226 = vld [vmem:[#allocation2 + $0xe2] sm:$0xff]
      %v1227 = vld [vmem:[#allocation2 + $0xf2] sm:$0xff]
      %v1228 = vld [vmem:[#allocation2 + $0xfa] sm:$0xff]
      %v1229 = vld [vmem:[#allocation2 + $0x10a] sm:$0xff]
      %v1230 = vld [vmem:[#allocation2 + $0x112] sm:$0xff]
      %v1231 = vld [vmem:[#allocation2 + $0x122] sm:$0xff]
      %v1232 = vld [vmem:[#allocation2 + $0x12a] sm:$0xff]
      %v1233 = vld [vmem:[#allocation2 + $0x13a] sm:$0xff]
      %v1234 = vld [vmem:[#allocation2 + $0x142] sm:$0xff]
      %v1235 = vld [vmem:[#allocation2 + $0x152] sm:$0xff]
      %v1236 = vld [vmem:[#allocation2 + $0x15a] sm:$0xff]
      %v1237 = vld [vmem:[#allocation2 + $0x16a] sm:$0xff]
      %v1238 = vld [vmem:[#allocation2 + $0x172] sm:$0xff]
      %v1239 = vld [vmem:[%s948] sm:$0xff]
      %v1240 = vld [vmem:[%s948 + $0x8] sm:$0xff]
      %v1241 = vld [vmem:[%s948 + $0x18] sm:$0xff]
      %v1242 = vld [vmem:[%s948 + $0x20] sm:$0xff]
      %v1243 = vld [vmem:[%s948 + $0x30] sm:$0xff]
      %v1244 = vld [vmem:[%s948 + $0x38] sm:$0xff]
      %v1245 = vld [vmem:[%s948 + $0x48] sm:$0xff]
      %v1246 = vld [vmem:[%s948 + $0x50] sm:$0xff]
      %v1247 = vld [vmem:[%s948 + $0x60] sm:$0xff]
      %v1248 = vld [vmem:[%s948 + $0x68] sm:$0xff]
      %v1249 = vld [vmem:[%s948 + $0x78] sm:$0xff]
      %v1250 = vld [vmem:[%s948 + $0x80] sm:$0xff]
      %v1251 = vld [vmem:[%s948 + $0x90] sm:$0xff]
      %v1252 = vld [vmem:[%s948 + $0x98] sm:$0xff]
      %v1253 = vld [vmem:[%s948 + $0xa8] sm:$0xff]
      %v1254 = vld [vmem:[%s948 + $0xb0] sm:$0xff]
      %v1255 = vld [vmem:[%s948 + $0xc0] sm:$0xff]
      %v1256 = vld [vmem:[%s948 + $0xc8] sm:$0xff]
      %v1257 = vld [vmem:[%s948 + $0xd8] sm:$0xff]
      %v1258 = vld [vmem:[%s948 + $0xe0] sm:$0xff]
      %v1259 = vld [vmem:[%s948 + $0xf0] sm:$0xff]
      %v1260 = vld [vmem:[%s948 + $0xf8] sm:$0xff]
      %v1261 = vld [vmem:[%s948 + $0x108] sm:$0xff]
      %v1262 = vld [vmem:[%s948 + $0x110] sm:$0xff]
      %v1263 = vld [vmem:[%s948 + $0x120] sm:$0xff]
      %v1264 = vld [vmem:[%s948 + $0x128] sm:$0xff]
      %v1265 = vld [vmem:[%s948 + $0x138] sm:$0xff]
      %v1266 = vld [vmem:[%s948 + $0x140] sm:$0xff]
      %v1267 = vld [vmem:[%s948 + $0x150] sm:$0xff]
      %v1268 = vld [vmem:[%s948 + $0x158] sm:$0xff]
      %v1269 = vld [vmem:[%s948 + $0x168] sm:$0xff]
      %v1270 = vld [vmem:[%s948 + $0x170] sm:$0xff]
      %v1271 = vld [vmem:[%s948 + $0x1] sm:$0xff]
      %v1272 = vld [vmem:[%s948 + $0x9] sm:$0xff]
      %v1273 = vld [vmem:[%s948 + $0x19] sm:$0xff]
      %v1274 = vld [vmem:[%s948 + $0x21] sm:$0xff]
      %v1275 = vld [vmem:[%s948 + $0x31] sm:$0xff]
      %v1276 = vld [vmem:[%s948 + $0x39] sm:$0xff]
      %v1277 = vld [vmem:[%s948 + $0x49] sm:$0xff]
      %v1278 = vld [vmem:[%s948 + $0x51] sm:$0xff]
      %v1279 = vld [vmem:[%s948 + $0x61] sm:$0xff]
      %v1280 = vld [vmem:[%s948 + $0x69] sm:$0xff]
      %v1281 = vld [vmem:[%s948 + $0x79] sm:$0xff]
      %v1282 = vld [vmem:[%s948 + $0x81] sm:$0xff]
      %v1283 = vld [vmem:[%s948 + $0x91] sm:$0xff]
      %v1284 = vld [vmem:[%s948 + $0x99] sm:$0xff]
      %v1285 = vld [vmem:[%s948 + $0xa9] sm:$0xff]
      %v1286 = vld [vmem:[%s948 + $0xb1] sm:$0xff]
      %v1287 = vld [vmem:[%s948 + $0xc1] sm:$0xff]
      %v1288 = vld [vmem:[%s948 + $0xc9] sm:$0xff]
      %v1289 = vld [vmem:[%s948 + $0xd9] sm:$0xff]
      %v1290 = vld [vmem:[%s948 + $0xe1] sm:$0xff]
      %v1291 = vld [vmem:[%s948 + $0xf1] sm:$0xff]
      %v1292 = vld [vmem:[%s948 + $0xf9] sm:$0xff]
      %v1293 = vld [vmem:[%s948 + $0x109] sm:$0xff]
      %v1294 = vld [vmem:[%s948 + $0x111] sm:$0xff]
      %v1295 = vld [vmem:[%s948 + $0x121] sm:$0xff]
      %v1296 = vld [vmem:[%s948 + $0x129] sm:$0xff]
      %v1297 = vld [vmem:[%s948 + $0x139] sm:$0xff]
      %v1298 = vld [vmem:[%s948 + $0x141] sm:$0xff]
      %v1299 = vld [vmem:[%s948 + $0x151] sm:$0xff]
      %v1300 = vld [vmem:[%s948 + $0x159] sm:$0xff]
      %v1301 = vld [vmem:[%s948 + $0x169] sm:$0xff]
      %v1302 = vld [vmem:[%s948 + $0x171] sm:$0xff]
      %v1303 = vld [vmem:[%s948 + $0x2] sm:$0xff]
      %v1304 = vld [vmem:[%s948 + $0xa] sm:$0xff]
      %v1305 = vld [vmem:[%s948 + $0x1a] sm:$0xff]
      %v1306 = vld [vmem:[%s948 + $0x22] sm:$0xff]
      %v1307 = vld [vmem:[%s948 + $0x32] sm:$0xff]
      %v1308 = vld [vmem:[%s948 + $0x3a] sm:$0xff]
      %v1309 = vld [vmem:[%s948 + $0x4a] sm:$0xff]
      %v1310 = vld [vmem:[%s948 + $0x52] sm:$0xff]
      %v1311 = vld [vmem:[%s948 + $0x62] sm:$0xff]
      %v1312 = vld [vmem:[%s948 + $0x6a] sm:$0xff]
      %v1313 = vld [vmem:[%s948 + $0x7a] sm:$0xff]
      %v1314 = vld [vmem:[%s948 + $0x82] sm:$0xff]
      %v1315 = vld [vmem:[%s948 + $0x92] sm:$0xff]
      %v1316 = vld [vmem:[%s948 + $0x9a] sm:$0xff]
      %v1317 = vld [vmem:[%s948 + $0xaa] sm:$0xff]
      %v1318 = vld [vmem:[%s948 + $0xb2] sm:$0xff]
      %v1319 = vld [vmem:[%s948 + $0xc2] sm:$0xff]
      %v1320 = vld [vmem:[%s948 + $0xca] sm:$0xff]
      %v1321 = vld [vmem:[%s948 + $0xda] sm:$0xff]
      %v1322 = vld [vmem:[%s948 + $0xe2] sm:$0xff]
      %v1323 = vld [vmem:[%s948 + $0xf2] sm:$0xff]
      %v1324 = vld [vmem:[%s948 + $0xfa] sm:$0xff]
      %v1325 = vld [vmem:[%s948 + $0x10a] sm:$0xff]
      %v1326 = vld [vmem:[%s948 + $0x112] sm:$0xff]
      %v1327 = vld [vmem:[%s948 + $0x122] sm:$0xff]
      %v1328 = vld [vmem:[%s948 + $0x12a] sm:$0xff]
      %v1329 = vld [vmem:[%s948 + $0x13a] sm:$0xff]
      %v1330 = vld [vmem:[%s948 + $0x142] sm:$0xff]
      %v1331 = vld [vmem:[%s948 + $0x152] sm:$0xff]
      %v1332 = vld [vmem:[%s948 + $0x15a] sm:$0xff]
      %v1333 = vld [vmem:[%s948 + $0x16a] sm:$0xff]
      %v1334 = vld [vmem:[%s948 + $0x172] sm:$0xff]
      %s1335 = scalar_lea.vmem [#allocation2], 48
      %v1336 = vld [vmem:[%s1335] sm:$0xff]
      %v1337 = vld [vmem:[%s1335 + $0x8] sm:$0xff]
      %v1338 = vld [vmem:[%s1335 + $0x18] sm:$0xff]
      %v1339 = vld [vmem:[%s1335 + $0x20] sm:$0xff]
      %v1340 = vld [vmem:[%s1335 + $0x30] sm:$0xff]
      %v1341 = vld [vmem:[%s1335 + $0x38] sm:$0xff]
      %v1342 = vld [vmem:[%s1335 + $0x48] sm:$0xff]
      %v1343 = vld [vmem:[%s1335 + $0x50] sm:$0xff]
      %v1344 = vld [vmem:[%s1335 + $0x60] sm:$0xff]
      %v1345 = vld [vmem:[%s1335 + $0x68] sm:$0xff]
      %v1346 = vld [vmem:[%s1335 + $0x78] sm:$0xff]
      %v1347 = vld [vmem:[%s1335 + $0x80] sm:$0xff]
      %v1348 = vld [vmem:[%s1335 + $0x90] sm:$0xff]
      %v1349 = vld [vmem:[%s1335 + $0x98] sm:$0xff]
      %v1350 = vld [vmem:[%s1335 + $0xa8] sm:$0xff]
      %v1351 = vld [vmem:[%s1335 + $0xb0] sm:$0xff]
      %v1352 = vld [vmem:[%s1335 + $0xc0] sm:$0xff]
      %v1353 = vld [vmem:[%s1335 + $0xc8] sm:$0xff]
      %v1354 = vld [vmem:[%s1335 + $0xd8] sm:$0xff]
      %v1355 = vld [vmem:[%s1335 + $0xe0] sm:$0xff]
      %v1356 = vld [vmem:[%s1335 + $0xf0] sm:$0xff]
      %v1357 = vld [vmem:[%s1335 + $0xf8] sm:$0xff]
      %v1358 = vld [vmem:[%s1335 + $0x108] sm:$0xff]
      %v1359 = vld [vmem:[%s1335 + $0x110] sm:$0xff]
      %v1360 = vld [vmem:[%s1335 + $0x120] sm:$0xff]
      %v1361 = vld [vmem:[%s1335 + $0x128] sm:$0xff]
      %v1362 = vld [vmem:[%s1335 + $0x138] sm:$0xff]
      %v1363 = vld [vmem:[%s1335 + $0x140] sm:$0xff]
      %v1364 = vld [vmem:[%s1335 + $0x150] sm:$0xff]
      %v1365 = vld [vmem:[%s1335 + $0x158] sm:$0xff]
      %v1366 = vld [vmem:[%s1335 + $0x168] sm:$0xff]
      %v1367 = vld [vmem:[%s1335 + $0x170] sm:$0xff]
      %v1368 = vld [vmem:[%s1335 + $0x1] sm:$0xff]
      %v1369 = vld [vmem:[%s1335 + $0x9] sm:$0xff]
      %v1370 = vld [vmem:[%s1335 + $0x19] sm:$0xff]
      %v1371 = vld [vmem:[%s1335 + $0x21] sm:$0xff]
      %v1372 = vld [vmem:[%s1335 + $0x31] sm:$0xff]
      %v1373 = vld [vmem:[%s1335 + $0x39] sm:$0xff]
      %v1374 = vld [vmem:[%s1335 + $0x49] sm:$0xff]
      %v1375 = vld [vmem:[%s1335 + $0x51] sm:$0xff]
      %v1376 = vld [vmem:[%s1335 + $0x61] sm:$0xff]
      %v1377 = vld [vmem:[%s1335 + $0x69] sm:$0xff]
      %v1378 = vld [vmem:[%s1335 + $0x79] sm:$0xff]
      %v1379 = vld [vmem:[%s1335 + $0x81] sm:$0xff]
      %v1380 = vld [vmem:[%s1335 + $0x91] sm:$0xff]
      %v1381 = vld [vmem:[%s1335 + $0x99] sm:$0xff]
      %v1382 = vld [vmem:[%s1335 + $0xa9] sm:$0xff]
      %v1383 = vld [vmem:[%s1335 + $0xb1] sm:$0xff]
      %v1384 = vld [vmem:[%s1335 + $0xc1] sm:$0xff]
      %v1385 = vld [vmem:[%s1335 + $0xc9] sm:$0xff]
      %v1386 = vld [vmem:[%s1335 + $0xd9] sm:$0xff]
      %v1387 = vld [vmem:[%s1335 + $0xe1] sm:$0xff]
      %v1388 = vld [vmem:[%s1335 + $0xf1] sm:$0xff]
      %v1389 = vld [vmem:[%s1335 + $0xf9] sm:$0xff]
      %v1390 = vld [vmem:[%s1335 + $0x109] sm:$0xff]
      %v1391 = vld [vmem:[%s1335 + $0x111] sm:$0xff]
      %v1392 = vld [vmem:[%s1335 + $0x121] sm:$0xff]
      %v1393 = vld [vmem:[%s1335 + $0x129] sm:$0xff]
      %v1394 = vld [vmem:[%s1335 + $0x139] sm:$0xff]
      %v1395 = vld [vmem:[%s1335 + $0x141] sm:$0xff]
      %v1396 = vld [vmem:[%s1335 + $0x151] sm:$0xff]
      %v1397 = vld [vmem:[%s1335 + $0x159] sm:$0xff]
      %v1398 = vld [vmem:[%s1335 + $0x169] sm:$0xff]
      %v1399 = vld [vmem:[%s1335 + $0x171] sm:$0xff]
      %v1400 = vld [vmem:[%s1335 + $0x2] sm:$0xff]
      %v1401 = vld [vmem:[%s1335 + $0xa] sm:$0xff]
      %v1402 = vld [vmem:[%s1335 + $0x1a] sm:$0xff]
      %v1403 = vld [vmem:[%s1335 + $0x22] sm:$0xff]
      %v1404 = vld [vmem:[%s1335 + $0x32] sm:$0xff]
      %v1405 = vld [vmem:[%s1335 + $0x3a] sm:$0xff]
      %v1406 = vld [vmem:[%s1335 + $0x4a] sm:$0xff]
      %v1407 = vld [vmem:[%s1335 + $0x52] sm:$0xff]
      %v1408 = vld [vmem:[%s1335 + $0x62] sm:$0xff]
      %v1409 = vld [vmem:[%s1335 + $0x6a] sm:$0xff]
      %v1410 = vld [vmem:[%s1335 + $0x7a] sm:$0xff]
      %v1411 = vld [vmem:[%s1335 + $0x82] sm:$0xff]
      %v1412 = vld [vmem:[%s1335 + $0x92] sm:$0xff]
      %v1413 = vld [vmem:[%s1335 + $0x9a] sm:$0xff]
      %v1414 = vld [vmem:[%s1335 + $0xaa] sm:$0xff]
      %v1415 = vld [vmem:[%s1335 + $0xb2] sm:$0xff]
      %v1416 = vld [vmem:[%s1335 + $0xc2] sm:$0xff]
      %v1417 = vld [vmem:[%s1335 + $0xca] sm:$0xff]
      %v1418 = vld [vmem:[%s1335 + $0xda] sm:$0xff]
      %v1419 = vld [vmem:[%s1335 + $0xe2] sm:$0xff]
      %v1420 = vld [vmem:[%s1335 + $0xf2] sm:$0xff]
      %v1421 = vld [vmem:[%s1335 + $0xfa] sm:$0xff]
      %v1422 = vld [vmem:[%s1335 + $0x10a] sm:$0xff]
      %v1423 = vld [vmem:[%s1335 + $0x112] sm:$0xff]
      %v1424 = vld [vmem:[%s1335 + $0x122] sm:$0xff]
      %v1425 = vld [vmem:[%s1335 + $0x12a] sm:$0xff]
      %v1426 = vld [vmem:[%s1335 + $0x13a] sm:$0xff]
      %v1427 = vld [vmem:[%s1335 + $0x142] sm:$0xff]
      %v1428 = vld [vmem:[%s1335 + $0x152] sm:$0xff]
      %v1429 = vld [vmem:[%s1335 + $0x15a] sm:$0xff]
      %v1430 = vld [vmem:[%s1335 + $0x16a] sm:$0xff]
      %v1431 = vld [vmem:[%s1335 + $0x172] sm:$0xff]
      %1464 = vrot.lane.b32.xlu0 %v1175, 8
      %v1465 = vpop.permute.xlu0 %1464
      %1466 = vrot.lane.b32.xlu0 %v1176, 8
      %v1467 = vpop.permute.xlu0 %1466
      %1468 = vrot.lane.b32.xlu0 %v1177, 8
      %v1469 = vpop.permute.xlu0 %1468
      %1470 = vrot.lane.b32.xlu0 %v1178, 8
      %v1471 = vpop.permute.xlu0 %1470
      %1472 = vrot.lane.b32.xlu0 %v1179, 8
      %v1473 = vpop.permute.xlu0 %1472
      %1474 = vrot.lane.b32.xlu0 %v1180, 8
      %v1475 = vpop.permute.xlu0 %1474
      %1476 = vrot.lane.b32.xlu0 %v1181, 8
      %v1477 = vpop.permute.xlu0 %1476
      %1478 = vrot.lane.b32.xlu0 %v1182, 8
      %v1479 = vpop.permute.xlu0 %1478
      %1480 = vrot.lane.b32.xlu0 %v1183, 8
      %v1481 = vpop.permute.xlu0 %1480
      %1482 = vrot.lane.b32.xlu0 %v1184, 8
      %v1483 = vpop.permute.xlu0 %1482
      %1484 = vrot.lane.b32.xlu0 %v1185, 8
      %v1485 = vpop.permute.xlu0 %1484
      %1486 = vrot.lane.b32.xlu0 %v1186, 8
      %v1487 = vpop.permute.xlu0 %1486
      %1488 = vrot.lane.b32.xlu0 %v1187, 8
      %v1489 = vpop.permute.xlu0 %1488
      %1490 = vrot.lane.b32.xlu0 %v1188, 8
      %v1491 = vpop.permute.xlu0 %1490
      %1492 = vrot.lane.b32.xlu0 %v1189, 8
      %v1493 = vpop.permute.xlu0 %1492
      %1494 = vrot.lane.b32.xlu0 %v1190, 8
      %v1495 = vpop.permute.xlu0 %1494
      %1496 = vrot.lane.b32.xlu0 %v1191, 8
      %v1497 = vpop.permute.xlu0 %1496
      %1498 = vrot.lane.b32.xlu0 %v1192, 8
      %v1499 = vpop.permute.xlu0 %1498
      %1500 = vrot.lane.b32.xlu0 %v1193, 8
      %v1501 = vpop.permute.xlu0 %1500
      %1502 = vrot.lane.b32.xlu0 %v1194, 8
      %v1503 = vpop.permute.xlu0 %1502
      %1504 = vrot.lane.b32.xlu0 %v1195, 8
      %v1505 = vpop.permute.xlu0 %1504
      %1506 = vrot.lane.b32.xlu0 %v1196, 8
      %v1507 = vpop.permute.xlu0 %1506
      %1508 = vrot.lane.b32.xlu0 %v1197, 8
      %v1509 = vpop.permute.xlu0 %1508
      %1510 = vrot.lane.b32.xlu0 %v1198, 8
      %v1511 = vpop.permute.xlu0 %1510
      %1512 = vrot.lane.b32.xlu0 %v1199, 8
      %v1513 = vpop.permute.xlu0 %1512
      %1514 = vrot.lane.b32.xlu0 %v1200, 8
      %v1515 = vpop.permute.xlu0 %1514
      %1516 = vrot.lane.b32.xlu0 %v1201, 8
      %v1517 = vpop.permute.xlu0 %1516
      %1518 = vrot.lane.b32.xlu0 %v1202, 8
      %v1519 = vpop.permute.xlu0 %1518
      %1520 = vrot.lane.b32.xlu0 %v1203, 8
      %v1521 = vpop.permute.xlu0 %1520
      %1522 = vrot.lane.b32.xlu0 %v1204, 8
      %v1523 = vpop.permute.xlu0 %1522
      %1524 = vrot.lane.b32.xlu0 %v1205, 8
      %v1525 = vpop.permute.xlu0 %1524
      %1526 = vrot.lane.b32.xlu0 %v1206, 8
      %v1527 = vpop.permute.xlu0 %1526
      %1592 = vrot.lane.b32.xlu0 %v1207, 16
      %v1593 = vpop.permute.xlu0 %1592
      %1594 = vrot.lane.b32.xlu0 %v1208, 16
      %v1595 = vpop.permute.xlu0 %1594
      %1596 = vrot.lane.b32.xlu0 %v1209, 16
      %v1597 = vpop.permute.xlu0 %1596
      %1598 = vrot.lane.b32.xlu0 %v1210, 16
      %v1599 = vpop.permute.xlu0 %1598
      %1600 = vrot.lane.b32.xlu0 %v1211, 16
      %v1601 = vpop.permute.xlu0 %1600
      %1602 = vrot.lane.b32.xlu0 %v1212, 16
      %v1603 = vpop.permute.xlu0 %1602
      %1604 = vrot.lane.b32.xlu0 %v1213, 16
      %v1605 = vpop.permute.xlu0 %1604
      %1606 = vrot.lane.b32.xlu0 %v1214, 16
      %v1607 = vpop.permute.xlu0 %1606
      %1608 = vrot.lane.b32.xlu0 %v1215, 16
      %v1609 = vpop.permute.xlu0 %1608
      %1610 = vrot.lane.b32.xlu0 %v1216, 16
      %v1611 = vpop.permute.xlu0 %1610
      %1612 = vrot.lane.b32.xlu0 %v1217, 16
      %v1613 = vpop.permute.xlu0 %1612
      %1614 = vrot.lane.b32.xlu0 %v1218, 16
      %v1615 = vpop.permute.xlu0 %1614
      %1616 = vrot.lane.b32.xlu0 %v1219, 16
      %v1617 = vpop.permute.xlu0 %1616
      %1618 = vrot.lane.b32.xlu0 %v1220, 16
      %v1619 = vpop.permute.xlu0 %1618
      %1620 = vrot.lane.b32.xlu0 %v1221, 16
      %v1621 = vpop.permute.xlu0 %1620
      %1622 = vrot.lane.b32.xlu0 %v1222, 16
      %v1623 = vpop.permute.xlu0 %1622
      %1624 = vrot.lane.b32.xlu0 %v1223, 16
      %v1625 = vpop.permute.xlu0 %1624
      %1626 = vrot.lane.b32.xlu0 %v1224, 16
      %v1627 = vpop.permute.xlu0 %1626
      %1628 = vrot.lane.b32.xlu0 %v1225, 16
      %v1629 = vpop.permute.xlu0 %1628
      %1630 = vrot.lane.b32.xlu0 %v1226, 16
      %v1631 = vpop.permute.xlu0 %1630
      %1632 = vrot.lane.b32.xlu0 %v1227, 16
      %v1633 = vpop.permute.xlu0 %1632
      %1634 = vrot.lane.b32.xlu0 %v1228, 16
      %v1635 = vpop.permute.xlu0 %1634
      %1636 = vrot.lane.b32.xlu0 %v1229, 16
      %v1637 = vpop.permute.xlu0 %1636
      %1638 = vrot.lane.b32.xlu0 %v1230, 16
      %v1639 = vpop.permute.xlu0 %1638
      %1640 = vrot.lane.b32.xlu0 %v1231, 16
      %v1641 = vpop.permute.xlu0 %1640
      %1642 = vrot.lane.b32.xlu0 %v1232, 16
      %v1643 = vpop.permute.xlu0 %1642
      %1644 = vrot.lane.b32.xlu0 %v1233, 16
      %v1645 = vpop.permute.xlu0 %1644
      %1646 = vrot.lane.b32.xlu0 %v1234, 16
      %v1647 = vpop.permute.xlu0 %1646
      %1648 = vrot.lane.b32.xlu0 %v1235, 16
      %v1649 = vpop.permute.xlu0 %1648
      %1650 = vrot.lane.b32.xlu0 %v1236, 16
      %v1651 = vpop.permute.xlu0 %1650
      %1652 = vrot.lane.b32.xlu0 %v1237, 16
      %v1653 = vpop.permute.xlu0 %1652
      %1654 = vrot.lane.b32.xlu0 %v1238, 16
      %v1655 = vpop.permute.xlu0 %1654
      %1720 = vrot.lane.b32.xlu0 %v1239, 24
      %v1721 = vpop.permute.xlu0 %1720
      %1722 = vrot.lane.b32.xlu0 %v1240, 24
      %v1723 = vpop.permute.xlu0 %1722
      %1724 = vrot.lane.b32.xlu0 %v1241, 24
      %v1725 = vpop.permute.xlu0 %1724
      %1726 = vrot.lane.b32.xlu0 %v1242, 24
      %v1727 = vpop.permute.xlu0 %1726
      %1728 = vrot.lane.b32.xlu0 %v1243, 24
      %v1729 = vpop.permute.xlu0 %1728
      %1730 = vrot.lane.b32.xlu0 %v1244, 24
      %v1731 = vpop.permute.xlu0 %1730
      %1732 = vrot.lane.b32.xlu0 %v1245, 24
      %v1733 = vpop.permute.xlu0 %1732
      %1734 = vrot.lane.b32.xlu0 %v1246, 24
      %v1735 = vpop.permute.xlu0 %1734
      %1736 = vrot.lane.b32.xlu0 %v1247, 24
      %v1737 = vpop.permute.xlu0 %1736
      %1738 = vrot.lane.b32.xlu0 %v1248, 24
      %v1739 = vpop.permute.xlu0 %1738
      %1740 = vrot.lane.b32.xlu0 %v1249, 24
      %v1741 = vpop.permute.xlu0 %1740
      %1742 = vrot.lane.b32.xlu0 %v1250, 24
      %v1743 = vpop.permute.xlu0 %1742
      %1744 = vrot.lane.b32.xlu0 %v1251, 24
      %v1745 = vpop.permute.xlu0 %1744
      %1746 = vrot.lane.b32.xlu0 %v1252, 24
      %v1747 = vpop.permute.xlu0 %1746
      %1748 = vrot.lane.b32.xlu0 %v1253, 24
      %v1749 = vpop.permute.xlu0 %1748
      %1750 = vrot.lane.b32.xlu0 %v1254, 24
      %v1751 = vpop.permute.xlu0 %1750
      %1752 = vrot.lane.b32.xlu0 %v1255, 24
      %v1753 = vpop.permute.xlu0 %1752
      %1754 = vrot.lane.b32.xlu0 %v1256, 24
      %v1755 = vpop.permute.xlu0 %1754
      %1756 = vrot.lane.b32.xlu0 %v1257, 24
      %v1757 = vpop.permute.xlu0 %1756
      %1758 = vrot.lane.b32.xlu0 %v1258, 24
      %v1759 = vpop.permute.xlu0 %1758
      %1760 = vrot.lane.b32.xlu0 %v1259, 24
      %v1761 = vpop.permute.xlu0 %1760
      %1762 = vrot.lane.b32.xlu0 %v1260, 24
      %v1763 = vpop.permute.xlu0 %1762
      %1764 = vrot.lane.b32.xlu0 %v1261, 24
      %v1765 = vpop.permute.xlu0 %1764
      %1766 = vrot.lane.b32.xlu0 %v1262, 24
      %v1767 = vpop.permute.xlu0 %1766
      %1768 = vrot.lane.b32.xlu0 %v1263, 24
      %v1769 = vpop.permute.xlu0 %1768
      %1770 = vrot.lane.b32.xlu0 %v1264, 24
      %v1771 = vpop.permute.xlu0 %1770
      %1772 = vrot.lane.b32.xlu0 %v1265, 24
      %v1773 = vpop.permute.xlu0 %1772
      %1774 = vrot.lane.b32.xlu0 %v1266, 24
      %v1775 = vpop.permute.xlu0 %1774
      %1776 = vrot.lane.b32.xlu0 %v1267, 24
      %v1777 = vpop.permute.xlu0 %1776
      %1778 = vrot.lane.b32.xlu0 %v1268, 24
      %v1779 = vpop.permute.xlu0 %1778
      %1780 = vrot.lane.b32.xlu0 %v1269, 24
      %v1781 = vpop.permute.xlu0 %1780
      %1782 = vrot.lane.b32.xlu0 %v1270, 24
      %v1783 = vpop.permute.xlu0 %1782
      %1848 = vrot.lane.b32.xlu0 %v1271, 32
      %v1849 = vpop.permute.xlu0 %1848
      %1850 = vrot.lane.b32.xlu0 %v1272, 32
      %v1851 = vpop.permute.xlu0 %1850
      %1852 = vrot.lane.b32.xlu0 %v1273, 32
      %v1853 = vpop.permute.xlu0 %1852
      %1854 = vrot.lane.b32.xlu0 %v1274, 32
      %v1855 = vpop.permute.xlu0 %1854
      %1856 = vrot.lane.b32.xlu0 %v1275, 32
      %v1857 = vpop.permute.xlu0 %1856
      %1858 = vrot.lane.b32.xlu0 %v1276, 32
      %v1859 = vpop.permute.xlu0 %1858
      %1860 = vrot.lane.b32.xlu0 %v1277, 32
      %v1861 = vpop.permute.xlu0 %1860
      %1862 = vrot.lane.b32.xlu0 %v1278, 32
      %v1863 = vpop.permute.xlu0 %1862
      %1864 = vrot.lane.b32.xlu0 %v1279, 32
      %v1865 = vpop.permute.xlu0 %1864
      %1866 = vrot.lane.b32.xlu0 %v1280, 32
      %v1867 = vpop.permute.xlu0 %1866
      %1868 = vrot.lane.b32.xlu0 %v1281, 32
      %v1869 = vpop.permute.xlu0 %1868
      %1870 = vrot.lane.b32.xlu0 %v1282, 32
      %v1871 = vpop.permute.xlu0 %1870
      %1872 = vrot.lane.b32.xlu0 %v1283, 32
      %v1873 = vpop.permute.xlu0 %1872
      %1874 = vrot.lane.b32.xlu0 %v1284, 32
      %v1875 = vpop.permute.xlu0 %1874
      %1876 = vrot.lane.b32.xlu0 %v1285, 32
      %v1877 = vpop.permute.xlu0 %1876
      %1878 = vrot.lane.b32.xlu0 %v1286, 32
      %v1879 = vpop.permute.xlu0 %1878
      %1880 = vrot.lane.b32.xlu0 %v1287, 32
      %v1881 = vpop.permute.xlu0 %1880
      %1882 = vrot.lane.b32.xlu0 %v1288, 32
      %v1883 = vpop.permute.xlu0 %1882
      %1884 = vrot.lane.b32.xlu0 %v1289, 32
      %v1885 = vpop.permute.xlu0 %1884
      %1886 = vrot.lane.b32.xlu0 %v1290, 32
      %v1887 = vpop.permute.xlu0 %1886
      %1888 = vrot.lane.b32.xlu0 %v1291, 32
      %v1889 = vpop.permute.xlu0 %1888
      %1890 = vrot.lane.b32.xlu0 %v1292, 32
      %v1891 = vpop.permute.xlu0 %1890
      %1892 = vrot.lane.b32.xlu0 %v1293, 32
      %v1893 = vpop.permute.xlu0 %1892
      %1894 = vrot.lane.b32.xlu0 %v1294, 32
      %v1895 = vpop.permute.xlu0 %1894
      %1896 = vrot.lane.b32.xlu0 %v1295, 32
      %v1897 = vpop.permute.xlu0 %1896
      %1898 = vrot.lane.b32.xlu0 %v1296, 32
      %v1899 = vpop.permute.xlu0 %1898
      %1900 = vrot.lane.b32.xlu0 %v1297, 32
      %v1901 = vpop.permute.xlu0 %1900
      %1902 = vrot.lane.b32.xlu0 %v1298, 32
      %v1903 = vpop.permute.xlu0 %1902
      %1904 = vrot.lane.b32.xlu0 %v1299, 32
      %v1905 = vpop.permute.xlu0 %1904
      %1906 = vrot.lane.b32.xlu0 %v1300, 32
      %v1907 = vpop.permute.xlu0 %1906
      %1908 = vrot.lane.b32.xlu0 %v1301, 32
      %v1909 = vpop.permute.xlu0 %1908
      %1910 = vrot.lane.b32.xlu0 %v1302, 32
      %v1911 = vpop.permute.xlu0 %1910
      %1976 = vrot.lane.b32.xlu0 %v1303, 40
      %v1977 = vpop.permute.xlu0 %1976
      %1978 = vrot.lane.b32.xlu0 %v1304, 40
      %v1979 = vpop.permute.xlu0 %1978
      %1980 = vrot.lane.b32.xlu0 %v1305, 40
      %v1981 = vpop.permute.xlu0 %1980
      %1982 = vrot.lane.b32.xlu0 %v1306, 40
      %v1983 = vpop.permute.xlu0 %1982
      %1984 = vrot.lane.b32.xlu0 %v1307, 40
      %v1985 = vpop.permute.xlu0 %1984
      %1986 = vrot.lane.b32.xlu0 %v1308, 40
      %v1987 = vpop.permute.xlu0 %1986
      %1988 = vrot.lane.b32.xlu0 %v1309, 40
      %v1989 = vpop.permute.xlu0 %1988
      %1990 = vrot.lane.b32.xlu0 %v1310, 40
      %v1991 = vpop.permute.xlu0 %1990
      %1992 = vrot.lane.b32.xlu0 %v1311, 40
      %v1993 = vpop.permute.xlu0 %1992
      %1994 = vrot.lane.b32.xlu0 %v1312, 40
      %v1995 = vpop.permute.xlu0 %1994
      %1996 = vrot.lane.b32.xlu0 %v1313, 40
      %v1997 = vpop.permute.xlu0 %1996
      %1998 = vrot.lane.b32.xlu0 %v1314, 40
      %v1999 = vpop.permute.xlu0 %1998
      %2000 = vrot.lane.b32.xlu0 %v1315, 40
      %v2001 = vpop.permute.xlu0 %2000
      %2002 = vrot.lane.b32.xlu0 %v1316, 40
      %v2003 = vpop.permute.xlu0 %2002
      %2004 = vrot.lane.b32.xlu0 %v1317, 40
      %v2005 = vpop.permute.xlu0 %2004
      %2006 = vrot.lane.b32.xlu0 %v1318, 40
      %v2007 = vpop.permute.xlu0 %2006
      %2008 = vrot.lane.b32.xlu0 %v1319, 40
      %v2009 = vpop.permute.xlu0 %2008
      %2010 = vrot.lane.b32.xlu0 %v1320, 40
      %v2011 = vpop.permute.xlu0 %2010
      %2012 = vrot.lane.b32.xlu0 %v1321, 40
      %v2013 = vpop.permute.xlu0 %2012
      %2014 = vrot.lane.b32.xlu0 %v1322, 40
      %v2015 = vpop.permute.xlu0 %2014
      %2016 = vrot.lane.b32.xlu0 %v1323, 40
      %v2017 = vpop.permute.xlu0 %2016
      %2018 = vrot.lane.b32.xlu0 %v1324, 40
      %v2019 = vpop.permute.xlu0 %2018
      %2020 = vrot.lane.b32.xlu0 %v1325, 40
      %v2021 = vpop.permute.xlu0 %2020
      %2022 = vrot.lane.b32.xlu0 %v1326, 40
      %v2023 = vpop.permute.xlu0 %2022
      %2024 = vrot.lane.b32.xlu0 %v1327, 40
      %v2025 = vpop.permute.xlu0 %2024
      %2026 = vrot.lane.b32.xlu0 %v1328, 40
      %v2027 = vpop.permute.xlu0 %2026
      %2028 = vrot.lane.b32.xlu0 %v1329, 40
      %v2029 = vpop.permute.xlu0 %2028
      %2030 = vrot.lane.b32.xlu0 %v1330, 40
      %v2031 = vpop.permute.xlu0 %2030
      %2032 = vrot.lane.b32.xlu0 %v1331, 40
      %v2033 = vpop.permute.xlu0 %2032
      %2034 = vrot.lane.b32.xlu0 %v1332, 40
      %v2035 = vpop.permute.xlu0 %2034
      %2036 = vrot.lane.b32.xlu0 %v1333, 40
      %v2037 = vpop.permute.xlu0 %2036
      %2038 = vrot.lane.b32.xlu0 %v1334, 40
      %v2039 = vpop.permute.xlu0 %2038
      %2104 = vrot.lane.b32.xlu0 %v1336, 48
      %v2105 = vpop.permute.xlu0 %2104
      %2106 = vrot.lane.b32.xlu0 %v1337, 48
      %v2107 = vpop.permute.xlu0 %2106
      %2108 = vrot.lane.b32.xlu0 %v1338, 48
      %v2109 = vpop.permute.xlu0 %2108
      %2110 = vrot.lane.b32.xlu0 %v1339, 48
      %v2111 = vpop.permute.xlu0 %2110
      %2112 = vrot.lane.b32.xlu0 %v1340, 48
      %v2113 = vpop.permute.xlu0 %2112
      %2114 = vrot.lane.b32.xlu0 %v1341, 48
      %v2115 = vpop.permute.xlu0 %2114
      %2116 = vrot.lane.b32.xlu0 %v1342, 48
      %v2117 = vpop.permute.xlu0 %2116
      %2118 = vrot.lane.b32.xlu0 %v1343, 48
      %v2119 = vpop.permute.xlu0 %2118
      %2120 = vrot.lane.b32.xlu0 %v1344, 48
      %v2121 = vpop.permute.xlu0 %2120
      %2122 = vrot.lane.b32.xlu0 %v1345, 48
      %v2123 = vpop.permute.xlu0 %2122
      %2124 = vrot.lane.b32.xlu0 %v1346, 48
      %v2125 = vpop.permute.xlu0 %2124
      %2126 = vrot.lane.b32.xlu0 %v1347, 48
      %v2127 = vpop.permute.xlu0 %2126
      %2128 = vrot.lane.b32.xlu0 %v1348, 48
      %v2129 = vpop.permute.xlu0 %2128
      %2130 = vrot.lane.b32.xlu0 %v1349, 48
      %v2131 = vpop.permute.xlu0 %2130
      %2132 = vrot.lane.b32.xlu0 %v1350, 48
      %v2133 = vpop.permute.xlu0 %2132
      %2134 = vrot.lane.b32.xlu0 %v1351, 48
      %v2135 = vpop.permute.xlu0 %2134
      %2136 = vrot.lane.b32.xlu0 %v1352, 48
      %v2137 = vpop.permute.xlu0 %2136
      %2138 = vrot.lane.b32.xlu0 %v1353, 48
      %v2139 = vpop.permute.xlu0 %2138
      %2140 = vrot.lane.b32.xlu0 %v1354, 48
      %v2141 = vpop.permute.xlu0 %2140
      %2142 = vrot.lane.b32.xlu0 %v1355, 48
      %v2143 = vpop.permute.xlu0 %2142
      %2144 = vrot.lane.b32.xlu0 %v1356, 48
      %v2145 = vpop.permute.xlu0 %2144
      %2146 = vrot.lane.b32.xlu0 %v1357, 48
      %v2147 = vpop.permute.xlu0 %2146
      %2148 = vrot.lane.b32.xlu0 %v1358, 48
      %v2149 = vpop.permute.xlu0 %2148
      %2150 = vrot.lane.b32.xlu0 %v1359, 48
      %v2151 = vpop.permute.xlu0 %2150
      %2152 = vrot.lane.b32.xlu0 %v1360, 48
      %v2153 = vpop.permute.xlu0 %2152
      %2154 = vrot.lane.b32.xlu0 %v1361, 48
      %v2155 = vpop.permute.xlu0 %2154
      %2156 = vrot.lane.b32.xlu0 %v1362, 48
      %v2157 = vpop.permute.xlu0 %2156
      %2158 = vrot.lane.b32.xlu0 %v1363, 48
      %v2159 = vpop.permute.xlu0 %2158
      %2160 = vrot.lane.b32.xlu0 %v1364, 48
      %v2161 = vpop.permute.xlu0 %2160
      %2162 = vrot.lane.b32.xlu0 %v1365, 48
      %v2163 = vpop.permute.xlu0 %2162
      %2164 = vrot.lane.b32.xlu0 %v1366, 48
      %v2165 = vpop.permute.xlu0 %2164
      %2166 = vrot.lane.b32.xlu0 %v1367, 48
      %v2167 = vpop.permute.xlu0 %2166
      %2232 = vrot.lane.b32.xlu0 %v1368, 56
      %v2233 = vpop.permute.xlu0 %2232
      %2234 = vrot.lane.b32.xlu0 %v1369, 56
      %v2235 = vpop.permute.xlu0 %2234
      %2236 = vrot.lane.b32.xlu0 %v1370, 56
      %v2237 = vpop.permute.xlu0 %2236
      %2238 = vrot.lane.b32.xlu0 %v1371, 56
      %v2239 = vpop.permute.xlu0 %2238
      %2240 = vrot.lane.b32.xlu0 %v1372, 56
      %v2241 = vpop.permute.xlu0 %2240
      %2242 = vrot.lane.b32.xlu0 %v1373, 56
      %v2243 = vpop.permute.xlu0 %2242
      %2244 = vrot.lane.b32.xlu0 %v1374, 56
      %v2245 = vpop.permute.xlu0 %2244
      %2246 = vrot.lane.b32.xlu0 %v1375, 56
      %v2247 = vpop.permute.xlu0 %2246
      %2248 = vrot.lane.b32.xlu0 %v1376, 56
      %v2249 = vpop.permute.xlu0 %2248
      %2250 = vrot.lane.b32.xlu0 %v1377, 56
      %v2251 = vpop.permute.xlu0 %2250
      %2252 = vrot.lane.b32.xlu0 %v1378, 56
      %v2253 = vpop.permute.xlu0 %2252
      %2254 = vrot.lane.b32.xlu0 %v1379, 56
      %v2255 = vpop.permute.xlu0 %2254
      %2256 = vrot.lane.b32.xlu0 %v1380, 56
      %v2257 = vpop.permute.xlu0 %2256
      %2258 = vrot.lane.b32.xlu0 %v1381, 56
      %v2259 = vpop.permute.xlu0 %2258
      %2260 = vrot.lane.b32.xlu0 %v1382, 56
      %v2261 = vpop.permute.xlu0 %2260
      %2262 = vrot.lane.b32.xlu0 %v1383, 56
      %v2263 = vpop.permute.xlu0 %2262
      %2264 = vrot.lane.b32.xlu0 %v1384, 56
      %v2265 = vpop.permute.xlu0 %2264
      %2266 = vrot.lane.b32.xlu0 %v1385, 56
      %v2267 = vpop.permute.xlu0 %2266
      %2268 = vrot.lane.b32.xlu0 %v1386, 56
      %v2269 = vpop.permute.xlu0 %2268
      %2270 = vrot.lane.b32.xlu0 %v1387, 56
      %v2271 = vpop.permute.xlu0 %2270
      %2272 = vrot.lane.b32.xlu0 %v1388, 56
      %v2273 = vpop.permute.xlu0 %2272
      %2274 = vrot.lane.b32.xlu0 %v1389, 56
      %v2275 = vpop.permute.xlu0 %2274
      %2276 = vrot.lane.b32.xlu0 %v1390, 56
      %v2277 = vpop.permute.xlu0 %2276
      %2278 = vrot.lane.b32.xlu0 %v1391, 56
      %v2279 = vpop.permute.xlu0 %2278
      %2280 = vrot.lane.b32.xlu0 %v1392, 56
      %v2281 = vpop.permute.xlu0 %2280
      %2282 = vrot.lane.b32.xlu0 %v1393, 56
      %v2283 = vpop.permute.xlu0 %2282
      %2284 = vrot.lane.b32.xlu0 %v1394, 56
      %v2285 = vpop.permute.xlu0 %2284
      %2286 = vrot.lane.b32.xlu0 %v1395, 56
      %v2287 = vpop.permute.xlu0 %2286
      %2288 = vrot.lane.b32.xlu0 %v1396, 56
      %v2289 = vpop.permute.xlu0 %2288
      %2290 = vrot.lane.b32.xlu0 %v1397, 56
      %v2291 = vpop.permute.xlu0 %2290
      %2292 = vrot.lane.b32.xlu0 %v1398, 56
      %v2293 = vpop.permute.xlu0 %2292
      %2294 = vrot.lane.b32.xlu0 %v1399, 56
      %v2295 = vpop.permute.xlu0 %2294
      %2360 = vrot.lane.b32.xlu0 %v1400, 64
      %v2361 = vpop.permute.xlu0 %2360
      %2362 = vrot.lane.b32.xlu0 %v1401, 64
      %v2363 = vpop.permute.xlu0 %2362
      %2364 = vrot.lane.b32.xlu0 %v1402, 64
      %v2365 = vpop.permute.xlu0 %2364
      %2366 = vrot.lane.b32.xlu0 %v1403, 64
      %v2367 = vpop.permute.xlu0 %2366
      %2368 = vrot.lane.b32.xlu0 %v1404, 64
      %v2369 = vpop.permute.xlu0 %2368
      %2370 = vrot.lane.b32.xlu0 %v1405, 64
      %v2371 = vpop.permute.xlu0 %2370
      %2372 = vrot.lane.b32.xlu0 %v1406, 64
      %v2373 = vpop.permute.xlu0 %2372
      %2374 = vrot.lane.b32.xlu0 %v1407, 64
      %v2375 = vpop.permute.xlu0 %2374
      %2376 = vrot.lane.b32.xlu0 %v1408, 64
      %v2377 = vpop.permute.xlu0 %2376
      %2378 = vrot.lane.b32.xlu0 %v1409, 64
      %v2379 = vpop.permute.xlu0 %2378
      %2380 = vrot.lane.b32.xlu0 %v1410, 64
      %v2381 = vpop.permute.xlu0 %2380
      %2382 = vrot.lane.b32.xlu0 %v1411, 64
      %v2383 = vpop.permute.xlu0 %2382
      %2384 = vrot.lane.b32.xlu0 %v1412, 64
      %v2385 = vpop.permute.xlu0 %2384
      %2386 = vrot.lane.b32.xlu0 %v1413, 64
      %v2387 = vpop.permute.xlu0 %2386
      %2388 = vrot.lane.b32.xlu0 %v1414, 64
      %v2389 = vpop.permute.xlu0 %2388
      %2390 = vrot.lane.b32.xlu0 %v1415, 64
      %v2391 = vpop.permute.xlu0 %2390
      %2392 = vrot.lane.b32.xlu0 %v1416, 64
      %v2393 = vpop.permute.xlu0 %2392
      %2394 = vrot.lane.b32.xlu0 %v1417, 64
      %v2395 = vpop.permute.xlu0 %2394
      %2396 = vrot.lane.b32.xlu0 %v1418, 64
      %v2397 = vpop.permute.xlu0 %2396
      %2398 = vrot.lane.b32.xlu0 %v1419, 64
      %v2399 = vpop.permute.xlu0 %2398
      %2400 = vrot.lane.b32.xlu0 %v1420, 64
      %v2401 = vpop.permute.xlu0 %2400
      %2402 = vrot.lane.b32.xlu0 %v1421, 64
      %v2403 = vpop.permute.xlu0 %2402
      %2404 = vrot.lane.b32.xlu0 %v1422, 64
      %v2405 = vpop.permute.xlu0 %2404
      %2406 = vrot.lane.b32.xlu0 %v1423, 64
      %v2407 = vpop.permute.xlu0 %2406
      %2408 = vrot.lane.b32.xlu0 %v1424, 64
      %v2409 = vpop.permute.xlu0 %2408
      %2410 = vrot.lane.b32.xlu0 %v1425, 64
      %v2411 = vpop.permute.xlu0 %2410
      %2412 = vrot.lane.b32.xlu0 %v1426, 64
      %v2413 = vpop.permute.xlu0 %2412
      %2414 = vrot.lane.b32.xlu0 %v1427, 64
      %v2415 = vpop.permute.xlu0 %2414
      %2416 = vrot.lane.b32.xlu0 %v1428, 64
      %v2417 = vpop.permute.xlu0 %2416
      %2418 = vrot.lane.b32.xlu0 %v1429, 64
      %v2419 = vpop.permute.xlu0 %2418
      %2420 = vrot.lane.b32.xlu0 %v1430, 64
      %v2421 = vpop.permute.xlu0 %2420
      %2422 = vrot.lane.b32.xlu0 %v1431, 64
      %v2423 = vpop.permute.xlu0 %2422
      %v2456 = vsel %vm369, %v1143, %v1465
      %v2457 = vsel %vm369, %v1144, %v1467
      %v2458 = vsel %vm369, %v1145, %v1469
      %v2459 = vsel %vm369, %v1146, %v1471
      %v2460 = vsel %vm369, %v1147, %v1473
      %v2461 = vsel %vm369, %v1148, %v1475
      %v2462 = vsel %vm369, %v1149, %v1477
      %v2463 = vsel %vm369, %v1150, %v1479
      %v2464 = vsel %vm369, %v1151, %v1481
      %v2465 = vsel %vm369, %v1152, %v1483
      %v2466 = vsel %vm369, %v1153, %v1485
      %v2467 = vsel %vm369, %v1154, %v1487
      %v2468 = vsel %vm369, %v1155, %v1489
      %v2469 = vsel %vm369, %v1156, %v1491
      %v2470 = vsel %vm369, %v1157, %v1493
      %v2471 = vsel %vm369, %v1158, %v1495
      %v2472 = vsel %vm369, %v1159, %v1497
      %v2473 = vsel %vm369, %v1160, %v1499
      %v2474 = vsel %vm369, %v1161, %v1501
      %v2475 = vsel %vm369, %v1162, %v1503
      %v2476 = vsel %vm369, %v1163, %v1505
      %v2477 = vsel %vm369, %v1164, %v1507
      %v2478 = vsel %vm369, %v1165, %v1509
      %v2479 = vsel %vm369, %v1166, %v1511
      %v2480 = vsel %vm369, %v1167, %v1513
      %v2481 = vsel %vm369, %v1168, %v1515
      %v2482 = vsel %vm369, %v1169, %v1517
      %v2483 = vsel %vm369, %v1170, %v1519
      %v2484 = vsel %vm369, %v1171, %v1521
      %v2485 = vsel %vm369, %v1172, %v1523
      %v2486 = vsel %vm369, %v1173, %v1525
      %v2487 = vsel %vm369, %v1174, %v1527
      %vm2488 = vcmask 130048
      %v2489 = vsel %vm2488, %v2456, %v1593
      %v2490 = vsel %vm2488, %v2457, %v1595
      %v2491 = vsel %vm2488, %v2458, %v1597
      %v2492 = vsel %vm2488, %v2459, %v1599
      %v2493 = vsel %vm2488, %v2460, %v1601
      %v2494 = vsel %vm2488, %v2461, %v1603
      %v2495 = vsel %vm2488, %v2462, %v1605
      %v2496 = vsel %vm2488, %v2463, %v1607
      %v2497 = vsel %vm2488, %v2464, %v1609
      %v2498 = vsel %vm2488, %v2465, %v1611
      %v2499 = vsel %vm2488, %v2466, %v1613
      %v2500 = vsel %vm2488, %v2467, %v1615
      %v2501 = vsel %vm2488, %v2468, %v1617
      %v2502 = vsel %vm2488, %v2469, %v1619
      %v2503 = vsel %vm2488, %v2470, %v1621
      %v2504 = vsel %vm2488, %v2471, %v1623
      %v2505 = vsel %vm2488, %v2472, %v1625
      %v2506 = vsel %vm2488, %v2473, %v1627
      %v2507 = vsel %vm2488, %v2474, %v1629
      %v2508 = vsel %vm2488, %v2475, %v1631
      %v2509 = vsel %vm2488, %v2476, %v1633
      %v2510 = vsel %vm2488, %v2477, %v1635
      %v2511 = vsel %vm2488, %v2478, %v1637
      %v2512 = vsel %vm2488, %v2479, %v1639
      %v2513 = vsel %vm2488, %v2480, %v1641
      %v2514 = vsel %vm2488, %v2481, %v1643
      %v2515 = vsel %vm2488, %v2482, %v1645
      %v2516 = vsel %vm2488, %v2483, %v1647
      %v2517 = vsel %vm2488, %v2484, %v1649
      %v2518 = vsel %vm2488, %v2485, %v1651
      %v2519 = vsel %vm2488, %v2486, %v1653
      %v2520 = vsel %vm2488, %v2487, %v1655
      %vm2521 = vcmask 195584
      %v2522 = vsel %vm2521, %v2489, %v1721
      %v2523 = vsel %vm2521, %v2490, %v1723
      %v2524 = vsel %vm2521, %v2491, %v1725
      %v2525 = vsel %vm2521, %v2492, %v1727
      %v2526 = vsel %vm2521, %v2493, %v1729
      %v2527 = vsel %vm2521, %v2494, %v1731
      %v2528 = vsel %vm2521, %v2495, %v1733
      %v2529 = vsel %vm2521, %v2496, %v1735
      %v2530 = vsel %vm2521, %v2497, %v1737
      %v2531 = vsel %vm2521, %v2498, %v1739
      %v2532 = vsel %vm2521, %v2499, %v1741
      %v2533 = vsel %vm2521, %v2500, %v1743
      %v2534 = vsel %vm2521, %v2501, %v1745
      %v2535 = vsel %vm2521, %v2502, %v1747
      %v2536 = vsel %vm2521, %v2503, %v1749
      %v2537 = vsel %vm2521, %v2504, %v1751
      %v2538 = vsel %vm2521, %v2505, %v1753
      %v2539 = vsel %vm2521, %v2506, %v1755
      %v2540 = vsel %vm2521, %v2507, %v1757
      %v2541 = vsel %vm2521, %v2508, %v1759
      %v2542 = vsel %vm2521, %v2509, %v1761
      %v2543 = vsel %vm2521, %v2510, %v1763
      %v2544 = vsel %vm2521, %v2511, %v1765
      %v2545 = vsel %vm2521, %v2512, %v1767
      %v2546 = vsel %vm2521, %v2513, %v1769
      %v2547 = vsel %vm2521, %v2514, %v1771
      %v2548 = vsel %vm2521, %v2515, %v1773
      %v2549 = vsel %vm2521, %v2516, %v1775
      %v2550 = vsel %vm2521, %v2517, %v1777
      %v2551 = vsel %vm2521, %v2518, %v1779
      %v2552 = vsel %vm2521, %v2519, %v1781
      %v2553 = vsel %vm2521, %v2520, %v1783
      %vm2554 = vcmask 261120
      %v2555 = vsel %vm2554, %v2522, %v1849
      %v2556 = vsel %vm2554, %v2523, %v1851
      %v2557 = vsel %vm2554, %v2524, %v1853
      %v2558 = vsel %vm2554, %v2525, %v1855
      %v2559 = vsel %vm2554, %v2526, %v1857
      %v2560 = vsel %vm2554, %v2527, %v1859
      %v2561 = vsel %vm2554, %v2528, %v1861
      %v2562 = vsel %vm2554, %v2529, %v1863
      %v2563 = vsel %vm2554, %v2530, %v1865
      %v2564 = vsel %vm2554, %v2531, %v1867
      %v2565 = vsel %vm2554, %v2532, %v1869
      %v2566 = vsel %vm2554, %v2533, %v1871
      %v2567 = vsel %vm2554, %v2534, %v1873
      %v2568 = vsel %vm2554, %v2535, %v1875
      %v2569 = vsel %vm2554, %v2536, %v1877
      %v2570 = vsel %vm2554, %v2537, %v1879
      %v2571 = vsel %vm2554, %v2538, %v1881
      %v2572 = vsel %vm2554, %v2539, %v1883
      %v2573 = vsel %vm2554, %v2540, %v1885
      %v2574 = vsel %vm2554, %v2541, %v1887
      %v2575 = vsel %vm2554, %v2542, %v1889
      %v2576 = vsel %vm2554, %v2543, %v1891
      %v2577 = vsel %vm2554, %v2544, %v1893
      %v2578 = vsel %vm2554, %v2545, %v1895
      %v2579 = vsel %vm2554, %v2546, %v1897
      %v2580 = vsel %vm2554, %v2547, %v1899
      %v2581 = vsel %vm2554, %v2548, %v1901
      %v2582 = vsel %vm2554, %v2549, %v1903
      %v2583 = vsel %vm2554, %v2550, %v1905
      %v2584 = vsel %vm2554, %v2551, %v1907
      %v2585 = vsel %vm2554, %v2552, %v1909
      %v2586 = vsel %vm2554, %v2553, %v1911
      %vm2587 = vcmask 326656
      %v2588 = vsel %vm2587, %v2555, %v1977
      %v2589 = vsel %vm2587, %v2556, %v1979
      %v2590 = vsel %vm2587, %v2557, %v1981
      %v2591 = vsel %vm2587, %v2558, %v1983
      %v2592 = vsel %vm2587, %v2559, %v1985
      %v2593 = vsel %vm2587, %v2560, %v1987
      %v2594 = vsel %vm2587, %v2561, %v1989
      %v2595 = vsel %vm2587, %v2562, %v1991
      %v2596 = vsel %vm2587, %v2563, %v1993
      %v2597 = vsel %vm2587, %v2564, %v1995
      %v2598 = vsel %vm2587, %v2565, %v1997
      %v2599 = vsel %vm2587, %v2566, %v1999
      %v2600 = vsel %vm2587, %v2567, %v2001
      %v2601 = vsel %vm2587, %v2568, %v2003
      %v2602 = vsel %vm2587, %v2569, %v2005
      %v2603 = vsel %vm2587, %v2570, %v2007
      %v2604 = vsel %vm2587, %v2571, %v2009
      %v2605 = vsel %vm2587, %v2572, %v2011
      %v2606 = vsel %vm2587, %v2573, %v2013
      %v2607 = vsel %vm2587, %v2574, %v2015
      %v2608 = vsel %vm2587, %v2575, %v2017
      %v2609 = vsel %vm2587, %v2576, %v2019
      %v2610 = vsel %vm2587, %v2577, %v2021
      %v2611 = vsel %vm2587, %v2578, %v2023
      %v2612 = vsel %vm2587, %v2579, %v2025
      %v2613 = vsel %vm2587, %v2580, %v2027
      %v2614 = vsel %vm2587, %v2581, %v2029
      %v2615 = vsel %vm2587, %v2582, %v2031
      %v2616 = vsel %vm2587, %v2583, %v2033
      %v2617 = vsel %vm2587, %v2584, %v2035
      %v2618 = vsel %vm2587, %v2585, %v2037
      %v2619 = vsel %vm2587, %v2586, %v2039
      %vm2620 = vcmask 392192
      %v2621 = vsel %vm2620, %v2588, %v2105
      %v2622 = vsel %vm2620, %v2589, %v2107
      %v2623 = vsel %vm2620, %v2590, %v2109
      %v2624 = vsel %vm2620, %v2591, %v2111
      %v2625 = vsel %vm2620, %v2592, %v2113
      %v2626 = vsel %vm2620, %v2593, %v2115
      %v2627 = vsel %vm2620, %v2594, %v2117
      %v2628 = vsel %vm2620, %v2595, %v2119
      %v2629 = vsel %vm2620, %v2596, %v2121
      %v2630 = vsel %vm2620, %v2597, %v2123
      %v2631 = vsel %vm2620, %v2598, %v2125
      %v2632 = vsel %vm2620, %v2599, %v2127
      %v2633 = vsel %vm2620, %v2600, %v2129
      %v2634 = vsel %vm2620, %v2601, %v2131
      %v2635 = vsel %vm2620, %v2602, %v2133
      %v2636 = vsel %vm2620, %v2603, %v2135
      %v2637 = vsel %vm2620, %v2604, %v2137
      %v2638 = vsel %vm2620, %v2605, %v2139
      %v2639 = vsel %vm2620, %v2606, %v2141
      %v2640 = vsel %vm2620, %v2607, %v2143
      %v2641 = vsel %vm2620, %v2608, %v2145
      %v2642 = vsel %vm2620, %v2609, %v2147
      %v2643 = vsel %vm2620, %v2610, %v2149
      %v2644 = vsel %vm2620, %v2611, %v2151
      %v2645 = vsel %vm2620, %v2612, %v2153
      %v2646 = vsel %vm2620, %v2613, %v2155
      %v2647 = vsel %vm2620, %v2614, %v2157
      %v2648 = vsel %vm2620, %v2615, %v2159
      %v2649 = vsel %vm2620, %v2616, %v2161
      %v2650 = vsel %vm2620, %v2617, %v2163
      %v2651 = vsel %vm2620, %v2618, %v2165
      %v2652 = vsel %vm2620, %v2619, %v2167
      %vm2653 = vcmask 457728
      %v2654 = vsel %vm2653, %v2621, %v2233
      %v2655 = vsel %vm2653, %v2622, %v2235
      %v2656 = vsel %vm2653, %v2623, %v2237
      %v2657 = vsel %vm2653, %v2624, %v2239
      %v2658 = vsel %vm2653, %v2625, %v2241
      %v2659 = vsel %vm2653, %v2626, %v2243
      %v2660 = vsel %vm2653, %v2627, %v2245
      %v2661 = vsel %vm2653, %v2628, %v2247
      %v2662 = vsel %vm2653, %v2629, %v2249
      %v2663 = vsel %vm2653, %v2630, %v2251
      %v2664 = vsel %vm2653, %v2631, %v2253
      %v2665 = vsel %vm2653, %v2632, %v2255
      %v2666 = vsel %vm2653, %v2633, %v2257
      %v2667 = vsel %vm2653, %v2634, %v2259
      %v2668 = vsel %vm2653, %v2635, %v2261
      %v2669 = vsel %vm2653, %v2636, %v2263
      %v2670 = vsel %vm2653, %v2637, %v2265
      %v2671 = vsel %vm2653, %v2638, %v2267
      %v2672 = vsel %vm2653, %v2639, %v2269
      %v2673 = vsel %vm2653, %v2640, %v2271
      %v2674 = vsel %vm2653, %v2641, %v2273
      %v2675 = vsel %vm2653, %v2642, %v2275
      %v2676 = vsel %vm2653, %v2643, %v2277
      %v2677 = vsel %vm2653, %v2644, %v2279
      %v2678 = vsel %vm2653, %v2645, %v2281
      %v2679 = vsel %vm2653, %v2646, %v2283
      %v2680 = vsel %vm2653, %v2647, %v2285
      %v2681 = vsel %vm2653, %v2648, %v2287
      %v2682 = vsel %vm2653, %v2649, %v2289
      %v2683 = vsel %vm2653, %v2650, %v2291
      %v2684 = vsel %vm2653, %v2651, %v2293
      %v2685 = vsel %vm2653, %v2652, %v2295
      %v2686 = vsel %vm539, %v2654, %v2361
      %v2687 = vsel %vm539, %v2655, %v2363
      %v2688 = vsel %vm539, %v2656, %v2365
      %v2689 = vsel %vm539, %v2657, %v2367
      %v2690 = vsel %vm539, %v2658, %v2369
      %v2691 = vsel %vm539, %v2659, %v2371
      %v2692 = vsel %vm539, %v2660, %v2373
      %v2693 = vsel %vm539, %v2661, %v2375
      %v2694 = vsel %vm539, %v2662, %v2377
      %v2695 = vsel %vm539, %v2663, %v2379
      %v2696 = vsel %vm539, %v2664, %v2381
      %v2697 = vsel %vm539, %v2665, %v2383
      %v2698 = vsel %vm539, %v2666, %v2385
      %v2699 = vsel %vm539, %v2667, %v2387
      %v2700 = vsel %vm539, %v2668, %v2389
      %v2701 = vsel %vm539, %v2669, %v2391
      %v2702 = vsel %vm539, %v2670, %v2393
      %v2703 = vsel %vm539, %v2671, %v2395
      %v2704 = vsel %vm539, %v2672, %v2397
      %v2705 = vsel %vm539, %v2673, %v2399
      %v2706 = vsel %vm539, %v2674, %v2401
      %v2707 = vsel %vm539, %v2675, %v2403
      %v2708 = vsel %vm539, %v2676, %v2405
      %v2709 = vsel %vm539, %v2677, %v2407
      %v2710 = vsel %vm539, %v2678, %v2409
      %v2711 = vsel %vm539, %v2679, %v2411
      %v2712 = vsel %vm539, %v2680, %v2413
      %v2713 = vsel %vm539, %v2681, %v2415
      %v2714 = vsel %vm539, %v2682, %v2417
      %v2715 = vsel %vm539, %v2683, %v2419
      %v2716 = vsel %vm539, %v2684, %v2421
      %v2717 = vsel %vm539, %v2685, %v2423
      %v2718 = vld [vmem:[%s5] sm:$0xff]
      %v2719 = vld [vmem:[%s5 + $0x8] sm:$0xff]
      %v2720 = vld [vmem:[%s5 + $0x10] sm:$0xff]
      %v2721 = vld [vmem:[%s5 + $0x18] sm:$0xff]
      %v2722 = vld [vmem:[%s5 + $0x20] sm:$0xff]
      %v2723 = vld [vmem:[%s5 + $0x28] sm:$0xff]
      %v2724 = vld [vmem:[%s5 + $0x30] sm:$0xff]
      %v2725 = vld [vmem:[%s5 + $0x38] sm:$0xff]
      %v2726 = vld [vmem:[%s5 + $0x40] sm:$0xff]
      %v2727 = vld [vmem:[%s6] sm:$0x1]
      %v2729 = vlaneseq
      %v2730 = vshrl.u32 %v2729, 7
      %v2731 = vsub.s32 0, %v2730
      %v2732 = vrot.slane %v2727, %v2731
      %vm2734 = vcmask 588800
      %v2736 = vsel %vm2734, %v2686, 0
      %v2739 = vsel %vm2734, %v2687, 0
      %v2742 = vsel %vm2734, %v2688, 0
      %v2745 = vsel %vm2734, %v2689, 0
      %v2748 = vsel %vm2734, %v2690, 0
      %v2751 = vsel %vm2734, %v2691, 0
      %v2754 = vsel %vm2734, %v2692, 0
      %v2757 = vsel %vm2734, %v2693, 0
      %v2760 = vsel %vm2734, %v2694, 0
      %v2763 = vsel %vm2734, %v2695, 0
      %v2766 = vsel %vm2734, %v2696, 0
      %v2769 = vsel %vm2734, %v2697, 0
      %v2772 = vsel %vm2734, %v2698, 0
      %v2775 = vsel %vm2734, %v2699, 0
      %v2778 = vsel %vm2734, %v2700, 0
      %v2781 = vsel %vm2734, %v2701, 0
      %v2784 = vsel %vm2734, %v2702, 0
      %v2787 = vsel %vm2734, %v2703, 0
      %v2790 = vsel %vm2734, %v2704, 0
      %v2793 = vsel %vm2734, %v2705, 0
      %v2796 = vsel %vm2734, %v2706, 0
      %v2799 = vsel %vm2734, %v2707, 0
      %v2802 = vsel %vm2734, %v2708, 0
      %v2805 = vsel %vm2734, %v2709, 0
      %v2808 = vsel %vm2734, %v2710, 0
      %v2811 = vsel %vm2734, %v2711, 0
      %v2814 = vsel %vm2734, %v2712, 0
      %v2817 = vsel %vm2734, %v2713, 0
      %v2820 = vsel %vm2734, %v2714, 0
      %v2823 = vsel %vm2734, %v2715, 0
      %v2826 = vsel %vm2734, %v2716, 0
      %v2829 = vsel %vm2734, %v2717, 0
      %2831 = vmatprep.subr.mxu0 0.0
      %2832 = vmatpush1.msra.mxu0 %v2718
      %2833 = vmatprep.subr.mxu0 0.0
      %2834 = vmatpush1.msra.mxu0 %v2719
      %2835 = vmatprep.subr.mxu0 0.0
      %2836 = vmatpush1.msra.mxu0 %v2720
      %2837 = vmatprep.subr.mxu0 0.0
      %2838 = vmatpush1.msra.mxu0 %v2721
      %2839 = vmatprep.subr.mxu0 0.0
      %2840 = vmatpush1.msra.mxu0 %v2722
      %2841 = vmatprep.subr.mxu0 0.0
      %2842 = vmatpush1.msra.mxu0 %v2723
      %2843 = vmatprep.subr.mxu0 0.0
      %2844 = vmatpush1.msra.mxu0 %v2724
      %2845 = vmatprep.subr.mxu0 0.0
      %2846 = vmatpush1.msra.mxu0 %v2725
      %2847 = vmatprep.subr.mxu0 0.0
      %2848 = vmatpush1.msra.mxu0 %v2726
      %2849 = vmatprep.subr.mxu0 0.0
      %2850 = vmatpush1.msra.mxu0 0.0
      %2851 = vmatprep.subr.mxu0 0.0
      %2852 = vmatpush1.msra.mxu0 0.0
      %2853 = vmatprep.subr.mxu0 0.0
      %2854 = vmatpush1.msra.mxu0 0.0
      %2855 = vmatprep.subr.mxu0 0.0
      %2856 = vmatpush1.msra.mxu0 0.0
      %2857 = vmatprep.subr.mxu0 0.0
      %2858 = vmatpush1.msra.mxu0 0.0
      %2859 = vmatprep.subr.mxu0 0.0
      %2860 = vmatpush1.msra.mxu0 0.0
      %2861 = vmatprep.subr.mxu0 0.0
      %2862 = vmatpush1.msra.mxu0 0.0
      %2863 = vmatprep.subr.mxu0 0.0
      %2864 = vmatpush1.msra.mxu0 0.0
      %2865 = vmatprep.subr.mxu0 0.0
      %2866 = vmatpush1.msra.mxu0 0.0
      %2867 = vmatprep.subr.mxu0 0.0
      %2868 = vmatpush1.msra.mxu0 0.0
      %2869 = vmatprep.subr.mxu0 0.0
      %2870 = vmatpush1.msra.mxu0 0.0
      %2871 = vmatprep.subr.mxu0 0.0
      %2872 = vmatpush1.msra.mxu0 0.0
      %2873 = vmatprep.subr.mxu0 0.0
      %2874 = vmatpush1.msra.mxu0 0.0
      %2875 = vmatprep.subr.mxu0 0.0
      %2876 = vmatpush1.msra.mxu0 0.0
      %2877 = vmatprep.subr.mxu0 0.0
      %2878 = vmatpush1.msra.mxu0 0.0
      %2879 = vmatprep.subr.mxu0 0.0
      %2880 = vmatpush1.msra.mxu0 0.0
      %2881 = vmatprep.subr.mxu0 0.0
      %2882 = vmatpush1.msra.mxu0 0.0
      %2883 = vmatprep.subr.mxu0 0.0
      %2884 = vmatpush1.msra.mxu0 0.0
      %2885 = vmatprep.subr.mxu0 0.0
      %2886 = vmatpush1.msra.mxu0 0.0
      %2887 = vmatprep.subr.mxu0 0.0
      %2888 = vmatpush1.msra.mxu0 0.0
      %2889 = vmatprep.subr.mxu0 0.0
      %2890 = vmatpush1.msra.mxu0 0.0
      %2891 = vmatprep.subr.mxu0 0.0
      %2892 = vmatpush1.msra.mxu0 0.0
      %2893 = vmatprep.subr.mxu0 0.0
      %2894 = vmatpush1.msra.mxu0 0.0
      %2895 = vmatprep.mubr.f32.mxu0 0.0
      %2896 = vmatmul.mubr.f32.gmra.mrb[0].mxu0 %v2736
      %v2897 = vpop.f32.mrb[0].mxu0
      %v2898 = vadd.f32 %v2732, %v2897
      %v2899 = vpop.f32.mrb[0].mxu0
      %2900 = vmatprep.mubr.f32.mxu0 0.0
      %2901 = vmatmul.mubr.f32.gmra.mrb[0].mxu0 %v2739
      %v2902 = vpop.f32.mrb[0].mxu0
      %v2903 = vadd.f32 %v2732, %v2902
      %v2904 = vpop.f32.mrb[0].mxu0
      %2905 = vmatprep.mubr.f32.mxu0 0.0
      %2906 = vmatmul.mubr.f32.gmra.mrb[0].mxu0 %v2742
      %v2907 = vpop.f32.mrb[0].mxu0
      %v2908 = vadd.f32 %v2732, %v2907
      %v2909 = vpop.f32.mrb[0].mxu0
      %2910 = vmatprep.mubr.f32.mxu0 0.0
      %2911 = vmatmul.mubr.f32.gmra.mrb[0].mxu0 %v2745
      %v2912 = vpop.f32.mrb[0].mxu0
      %v2913 = vadd.f32 %v2732, %v2912
      %v2914 = vpop.f32.mrb[0].mxu0
      %2915 = vmatprep.mubr.f32.mxu0 0.0
      %2916 = vmatmul.mubr.f32.gmra.mrb[0].mxu0 %v2748
      %v2917 = vpop.f32.mrb[0].mxu0
      %v2918 = vadd.f32 %v2732, %v2917
      %v2919 = vpop.f32.mrb[0].mxu0
      %2920 = vmatprep.mubr.f32.mxu0 0.0
      %2921 = vmatmul.mubr.f32.gmra.mrb[0].mxu0 %v2751
      %v2922 = vpop.f32.mrb[0].mxu0
      %v2923 = vadd.f32 %v2732, %v2922
      %v2924 = vpop.f32.mrb[0].mxu0
      %2925 = vmatprep.mubr.f32.mxu0 0.0
      %2926 = vmatmul.mubr.f32.gmra.mrb[0].mxu0 %v2754
      %v2927 = vpop.f32.mrb[0].mxu0
      %v2928 = vadd.f32 %v2732, %v2927
      %v2929 = vpop.f32.mrb[0].mxu0
      %2930 = vmatprep.mubr.f32.mxu0 0.0
      %2931 = vmatmul.mubr.f32.gmra.mrb[0].mxu0 %v2757
      %v2932 = vpop.f32.mrb[0].mxu0
      %v2933 = vadd.f32 %v2732, %v2932
      %v2934 = vpop.f32.mrb[0].mxu0
      %2935 = vmatprep.mubr.f32.mxu0 0.0
      %2936 = vmatmul.mubr.f32.gmra.mrb[0].mxu0 %v2760
      %v2937 = vpop.f32.mrb[0].mxu0
      %v2938 = vadd.f32 %v2732, %v2937
      %v2939 = vpop.f32.mrb[0].mxu0
      %2940 = vmatprep.mubr.f32.mxu0 0.0
      %2941 = vmatmul.mubr.f32.gmra.mrb[0].mxu0 %v2763
      %v2942 = vpop.f32.mrb[0].mxu0
      %v2943 = vadd.f32 %v2732, %v2942
      %v2944 = vpop.f32.mrb[0].mxu0
      %2945 = vmatprep.mubr.f32.mxu0 0.0
      %2946 = vmatmul.mubr.f32.gmra.mrb[0].mxu0 %v2766
      %v2947 = vpop.f32.mrb[0].mxu0
      %v2948 = vadd.f32 %v2732, %v2947
      %v2949 = vpop.f32.mrb[0].mxu0
      %2950 = vmatprep.mubr.f32.mxu0 0.0
      %2951 = vmatmul.mubr.f32.gmra.mrb[0].mxu0 %v2769
      %v2952 = vpop.f32.mrb[0].mxu0
      %v2953 = vadd.f32 %v2732, %v2952
      %v2954 = vpop.f32.mrb[0].mxu0
      %2955 = vmatprep.mubr.f32.mxu0 0.0
      %2956 = vmatmul.mubr.f32.gmra.mrb[0].mxu0 %v2772
      %v2957 = vpop.f32.mrb[0].mxu0
      %v2958 = vadd.f32 %v2732, %v2957
      %v2959 = vpop.f32.mrb[0].mxu0
      %2960 = vmatprep.mubr.f32.mxu0 0.0
      %2961 = vmatmul.mubr.f32.gmra.mrb[0].mxu0 %v2775
      %v2962 = vpop.f32.mrb[0].mxu0
      %v2963 = vadd.f32 %v2732, %v2962
      %v2964 = vpop.f32.mrb[0].mxu0
      %2965 = vmatprep.mubr.f32.mxu0 0.0
      %2966 = vmatmul.mubr.f32.gmra.mrb[0].mxu0 %v2778
      %v2967 = vpop.f32.mrb[0].mxu0
      %v2968 = vadd.f32 %v2732, %v2967
      %v2969 = vpop.f32.mrb[0].mxu0
      %2970 = vmatprep.mubr.f32.mxu0 0.0
      %2971 = vmatmul.mubr.f32.gmra.mrb[0].mxu0 %v2781
      %v2972 = vpop.f32.mrb[0].mxu0
      %v2973 = vadd.f32 %v2732, %v2972
      %v2974 = vpop.f32.mrb[0].mxu0
      %2975 = vmatprep.mubr.f32.mxu0 0.0
      %2976 = vmatmul.mubr.f32.gmra.mrb[0].mxu0 %v2784
      %v2977 = vpop.f32.mrb[0].mxu0
      %v2978 = vadd.f32 %v2732, %v2977
      %v2979 = vpop.f32.mrb[0].mxu0
      %2980 = vmatprep.mubr.f32.mxu0 0.0
      %2981 = vmatmul.mubr.f32.gmra.mrb[0].mxu0 %v2787
      %v2982 = vpop.f32.mrb[0].mxu0
      %v2983 = vadd.f32 %v2732, %v2982
      %v2984 = vpop.f32.mrb[0].mxu0
      %2985 = vmatprep.mubr.f32.mxu0 0.0
      %2986 = vmatmul.mubr.f32.gmra.mrb[0].mxu0 %v2790
      %v2987 = vpop.f32.mrb[0].mxu0
      %v2988 = vadd.f32 %v2732, %v2987
      %v2989 = vpop.f32.mrb[0].mxu0
      %2990 = vmatprep.mubr.f32.mxu0 0.0
      %2991 = vmatmul.mubr.f32.gmra.mrb[0].mxu0 %v2793
      %v2992 = vpop.f32.mrb[0].mxu0
      %v2993 = vadd.f32 %v2732, %v2992
      %v2994 = vpop.f32.mrb[0].mxu0
      %2995 = vmatprep.mubr.f32.mxu0 0.0
      %2996 = vmatmul.mubr.f32.gmra.mrb[0].mxu0 %v2796
      %v2997 = vpop.f32.mrb[0].mxu0
      %v2998 = vadd.f32 %v2732, %v2997
      %v2999 = vpop.f32.mrb[0].mxu0
      %3000 = vmatprep.mubr.f32.mxu0 0.0
      %3001 = vmatmul.mubr.f32.gmra.mrb[0].mxu0 %v2799
      %v3002 = vpop.f32.mrb[0].mxu0
      %v3003 = vadd.f32 %v2732, %v3002
      %v3004 = vpop.f32.mrb[0].mxu0
      %3005 = vmatprep.mubr.f32.mxu0 0.0
      %3006 = vmatmul.mubr.f32.gmra.mrb[0].mxu0 %v2802
      %v3007 = vpop.f32.mrb[0].mxu0
      %v3008 = vadd.f32 %v2732, %v3007
      %v3009 = vpop.f32.mrb[0].mxu0
      %3010 = vmatprep.mubr.f32.mxu0 0.0
      %3011 = vmatmul.mubr.f32.gmra.mrb[0].mxu0 %v2805
      %v3012 = vpop.f32.mrb[0].mxu0
      %v3013 = vadd.f32 %v2732, %v3012
      %v3014 = vpop.f32.mrb[0].mxu0
      %3015 = vmatprep.mubr.f32.mxu0 0.0
      %3016 = vmatmul.mubr.f32.gmra.mrb[0].mxu0 %v2808
      %v3017 = vpop.f32.mrb[0].mxu0
      %v3018 = vadd.f32 %v2732, %v3017
      %v3019 = vpop.f32.mrb[0].mxu0
      %3020 = vmatprep.mubr.f32.mxu0 0.0
      %3021 = vmatmul.mubr.f32.gmra.mrb[0].mxu0 %v2811
      %v3022 = vpop.f32.mrb[0].mxu0
      %v3023 = vadd.f32 %v2732, %v3022
      %v3024 = vpop.f32.mrb[0].mxu0
      %3025 = vmatprep.mubr.f32.mxu0 0.0
      %3026 = vmatmul.mubr.f32.gmra.mrb[0].mxu0 %v2814
      %v3027 = vpop.f32.mrb[0].mxu0
      %v3028 = vadd.f32 %v2732, %v3027
      %v3029 = vpop.f32.mrb[0].mxu0
      %3030 = vmatprep.mubr.f32.mxu0 0.0
      %3031 = vmatmul.mubr.f32.gmra.mrb[0].mxu0 %v2817
      %v3032 = vpop.f32.mrb[0].mxu0
      %v3033 = vadd.f32 %v2732, %v3032
      %v3034 = vpop.f32.mrb[0].mxu0
      %3035 = vmatprep.mubr.f32.mxu0 0.0
      %3036 = vmatmul.mubr.f32.gmra.mrb[0].mxu0 %v2820
      %v3037 = vpop.f32.mrb[0].mxu0
      %v3038 = vadd.f32 %v2732, %v3037
      %v3039 = vpop.f32.mrb[0].mxu0
      %3040 = vmatprep.mubr.f32.mxu0 0.0
      %3041 = vmatmul.mubr.f32.gmra.mrb[0].mxu0 %v2823
      %v3042 = vpop.f32.mrb[0].mxu0
      %v3043 = vadd.f32 %v2732, %v3042
      %v3044 = vpop.f32.mrb[0].mxu0
      %3045 = vmatprep.mubr.f32.mxu0 0.0
      %3046 = vmatmul.mubr.f32.gmra.mrb[0].mxu0 %v2826
      %v3047 = vpop.f32.mrb[0].mxu0
      %v3048 = vadd.f32 %v2732, %v3047
      %v3049 = vpop.f32.mrb[0].mxu0
      %3050 = vmatprep.mubr.f32.mxu0 0.0
      %3051 = vmatmul.mubr.f32.gmra.mrb[0].mxu0 %v2829
      %v3052 = vpop.f32.mrb[0].mxu0
      %v3053 = vadd.f32 %v2732, %v3052
      %v3054 = vpop.f32.mrb[0].mxu0
      %3055 = vdwg.mxu0
      %v3056 = vmax.f32 %v2898, 0.0
      %v3057 = vmax.f32 %v2903, 0.0
      %v3058 = vmax.f32 %v2908, 0.0
      %v3059 = vmax.f32 %v2913, 0.0
      %v3060 = vmax.f32 %v2918, 0.0
      %v3061 = vmax.f32 %v2923, 0.0
      %v3062 = vmax.f32 %v2928, 0.0
      %v3063 = vmax.f32 %v2933, 0.0
      %v3064 = vmax.f32 %v2938, 0.0
      %v3065 = vmax.f32 %v2943, 0.0
      %v3066 = vmax.f32 %v2948, 0.0
      %v3067 = vmax.f32 %v2953, 0.0
      %v3068 = vmax.f32 %v2958, 0.0
      %v3069 = vmax.f32 %v2963, 0.0
      %v3070 = vmax.f32 %v2968, 0.0
      %v3071 = vmax.f32 %v2973, 0.0
      %v3072 = vmax.f32 %v2978, 0.0
      %v3073 = vmax.f32 %v2983, 0.0
      %v3074 = vmax.f32 %v2988, 0.0
      %v3075 = vmax.f32 %v2993, 0.0
      %v3076 = vmax.f32 %v2998, 0.0
      %v3077 = vmax.f32 %v3003, 0.0
      %v3078 = vmax.f32 %v3008, 0.0
      %v3079 = vmax.f32 %v3013, 0.0
      %v3080 = vmax.f32 %v3018, 0.0
      %v3081 = vmax.f32 %v3023, 0.0
      %v3082 = vmax.f32 %v3028, 0.0
      %v3083 = vmax.f32 %v3033, 0.0
      %v3084 = vmax.f32 %v3038, 0.0
      %v3085 = vmax.f32 %v3043, 0.0
      %v3086 = vmax.f32 %v3048, 0.0
      %v3087 = vmax.f32 %v3053, 0.0
      %3088 = vst.msk [vmem:[#allocation3] sm:$0xff] %vm949, 0.0
      %3089 = vst.msk [vmem:[#allocation3 + $0x8] sm:$0xff] %vm949, 0.0
      %vm3090 = vcmask 25600
      %3091 = vst.msk [vmem:[#allocation3 + $0x10] sm:$0x3] %vm3090, 0.0
      %3092 = vst.msk [vmem:[#allocation3 + $0x18] sm:$0xff] %vm949, 0.0
      %3093 = vst.msk [vmem:[#allocation3 + $0x20] sm:$0xff] %vm949, 0.0
      %3094 = vst.msk [vmem:[#allocation3 + $0x28] sm:$0x3] %vm3090, 0.0
      %3095 = vst.msk [vmem:[#allocation3 + $0x30] sm:$0xff] %vm949, 0.0
      %3096 = vst.msk [vmem:[#allocation3 + $0x38] sm:$0xff] %vm949, 0.0
      %3097 = vst.msk [vmem:[#allocation3 + $0x40] sm:$0x3] %vm3090, 0.0
      %3098 = vst.msk [vmem:[#allocation3 + $0x48] sm:$0xff] %vm949, 0.0
      %3099 = vst.msk [vmem:[#allocation3 + $0x50] sm:$0xff] %vm949, 0.0
      %3100 = vst.msk [vmem:[#allocation3 + $0x58] sm:$0x3] %vm3090, 0.0
      %3101 = vst.msk [vmem:[#allocation3 + $0x60] sm:$0xff] %vm949, 0.0
      %3102 = vst.msk [vmem:[#allocation3 + $0x68] sm:$0xff] %vm949, 0.0
      %3103 = vst.msk [vmem:[#allocation3 + $0x70] sm:$0x3] %vm3090, 0.0
      %3104 = vst.msk [vmem:[#allocation3 + $0x78] sm:$0xff] %vm949, 0.0
      %3105 = vst.msk [vmem:[#allocation3 + $0x80] sm:$0xff] %vm949, 0.0
      %3106 = vst.msk [vmem:[#allocation3 + $0x88] sm:$0x3] %vm3090, 0.0
      %3107 = vst.msk [vmem:[#allocation3 + $0x90] sm:$0xff] %vm949, 0.0
      %3108 = vst.msk [vmem:[#allocation3 + $0x98] sm:$0xff] %vm949, 0.0
      %3109 = vst.msk [vmem:[#allocation3 + $0xa0] sm:$0x3] %vm3090, 0.0
      %3110 = vst.msk [vmem:[#allocation3 + $0xa8] sm:$0xff] %vm949, 0.0
      %3111 = vst.msk [vmem:[#allocation3 + $0xb0] sm:$0xff] %vm949, 0.0
      %3112 = vst.msk [vmem:[#allocation3 + $0xb8] sm:$0x3] %vm3090, 0.0
      %3113 = vst.msk [vmem:[#allocation3 + $0xc0] sm:$0xff] %vm949, 0.0
      %3114 = vst.msk [vmem:[#allocation3 + $0xc8] sm:$0xff] %vm949, 0.0
      %3115 = vst.msk [vmem:[#allocation3 + $0xd0] sm:$0x3] %vm3090, 0.0
      %3116 = vst.msk [vmem:[#allocation3 + $0xd8] sm:$0xff] %vm949, 0.0
      %3117 = vst.msk [vmem:[#allocation3 + $0xe0] sm:$0xff] %vm949, 0.0
      %3118 = vst.msk [vmem:[#allocation3 + $0xe8] sm:$0x3] %vm3090, 0.0
      %3119 = vst.msk [vmem:[#allocation3 + $0xf0] sm:$0xff] %vm949, 0.0
      %3120 = vst.msk [vmem:[#allocation3 + $0xf8] sm:$0xff] %vm949, 0.0
      %3121 = vst.msk [vmem:[#allocation3 + $0x100] sm:$0x3] %vm3090, 0.0
      %3122 = vst.msk [vmem:[#allocation3 + $0x108] sm:$0xff] %vm949, 0.0
      %3123 = vst.msk [vmem:[#allocation3 + $0x110] sm:$0xff] %vm949, 0.0
      %3124 = vst.msk [vmem:[#allocation3 + $0x118] sm:$0x3] %vm3090, 0.0
      %3125 = vst.msk [vmem:[#allocation3 + $0x120] sm:$0xff] %vm949, 0.0
      %3126 = vst.msk [vmem:[#allocation3 + $0x128] sm:$0xff] %vm949, 0.0
      %3127 = vst.msk [vmem:[#allocation3 + $0x130] sm:$0x3] %vm3090, 0.0
      %3128 = vst.msk [vmem:[#allocation3 + $0x138] sm:$0xff] %vm949, 0.0
      %3129 = vst.msk [vmem:[#allocation3 + $0x140] sm:$0xff] %vm949, 0.0
      %3130 = vst.msk [vmem:[#allocation3 + $0x148] sm:$0x3] %vm3090, 0.0
      %3131 = vst.msk [vmem:[#allocation3 + $0x150] sm:$0xff] %vm949, 0.0
      %3132 = vst.msk [vmem:[#allocation3 + $0x158] sm:$0xff] %vm949, 0.0
      %3133 = vst.msk [vmem:[#allocation3 + $0x160] sm:$0x3] %vm3090, 0.0
      %3134 = vst.msk [vmem:[#allocation3 + $0x168] sm:$0xff] %vm949, 0.0
      %3135 = vst.msk [vmem:[#allocation3 + $0x170] sm:$0xff] %vm949, 0.0
      %3136 = vst.msk [vmem:[#allocation3 + $0x178] sm:$0x3] %vm3090, 0.0
      %3137 = vst.msk [vmem:[#allocation3 + $0x180] sm:$0xff] %vm949, 0.0
      %3138 = vst.msk [vmem:[#allocation3 + $0x188] sm:$0xff] %vm949, 0.0
      %3139 = vst.msk [vmem:[#allocation3 + $0x190] sm:$0x3] %vm3090, 0.0
      %3140 = vst.msk [vmem:[#allocation3 + $0x198] sm:$0xff] %vm949, 0.0
      %3141 = vst.msk [vmem:[#allocation3 + $0x1a0] sm:$0xff] %vm949, 0.0
      %3142 = vst.msk [vmem:[#allocation3 + $0x1a8] sm:$0x3] %vm3090, 0.0
      %s3143 = scalar_lea.vmem [#allocation3], 24
      %3144 = vst.msk [vmem:[%s3143 + $0x1] sm:$0xff] %vm949, %v3056
      %3145 = vst.msk [vmem:[%s3143 + $0x9] sm:$0xff] %vm949, %v3057
      %3146 = vst.msk [vmem:[%s3143 + $0x19] sm:$0xff] %vm949, %v3058
      %3147 = vst.msk [vmem:[%s3143 + $0x21] sm:$0xff] %vm949, %v3059
      %3148 = vst.msk [vmem:[%s3143 + $0x31] sm:$0xff] %vm949, %v3060
      %3149 = vst.msk [vmem:[%s3143 + $0x39] sm:$0xff] %vm949, %v3061
      %3150 = vst.msk [vmem:[%s3143 + $0x49] sm:$0xff] %vm949, %v3062
      %3151 = vst.msk [vmem:[%s3143 + $0x51] sm:$0xff] %vm949, %v3063
      %3152 = vst.msk [vmem:[%s3143 + $0x61] sm:$0xff] %vm949, %v3064
      %3153 = vst.msk [vmem:[%s3143 + $0x69] sm:$0xff] %vm949, %v3065
      %3154 = vst.msk [vmem:[%s3143 + $0x79] sm:$0xff] %vm949, %v3066
      %3155 = vst.msk [vmem:[%s3143 + $0x81] sm:$0xff] %vm949, %v3067
      %3156 = vst.msk [vmem:[%s3143 + $0x91] sm:$0xff] %vm949, %v3068
      %3157 = vst.msk [vmem:[%s3143 + $0x99] sm:$0xff] %vm949, %v3069
      %3158 = vst.msk [vmem:[%s3143 + $0xa9] sm:$0xff] %vm949, %v3070
      %3159 = vst.msk [vmem:[%s3143 + $0xb1] sm:$0xff] %vm949, %v3071
      %3160 = vst.msk [vmem:[%s3143 + $0xc1] sm:$0xff] %vm949, %v3072
      %3161 = vst.msk [vmem:[%s3143 + $0xc9] sm:$0xff] %vm949, %v3073
      %3162 = vst.msk [vmem:[%s3143 + $0xd9] sm:$0xff] %vm949, %v3074
      %3163 = vst.msk [vmem:[%s3143 + $0xe1] sm:$0xff] %vm949, %v3075
      %3164 = vst.msk [vmem:[%s3143 + $0xf1] sm:$0xff] %vm949, %v3076
      %3165 = vst.msk [vmem:[%s3143 + $0xf9] sm:$0xff] %vm949, %v3077
      %3166 = vst.msk [vmem:[%s3143 + $0x109] sm:$0xff] %vm949, %v3078
      %3167 = vst.msk [vmem:[%s3143 + $0x111] sm:$0xff] %vm949, %v3079
      %3168 = vst.msk [vmem:[%s3143 + $0x121] sm:$0xff] %vm949, %v3080
      %3169 = vst.msk [vmem:[%s3143 + $0x129] sm:$0xff] %vm949, %v3081
      %3170 = vst.msk [vmem:[%s3143 + $0x139] sm:$0xff] %vm949, %v3082
      %3171 = vst.msk [vmem:[%s3143 + $0x141] sm:$0xff] %vm949, %v3083
      %3172 = vst.msk [vmem:[%s3143 + $0x151] sm:$0xff] %vm949, %v3084
      %3173 = vst.msk [vmem:[%s3143 + $0x159] sm:$0xff] %vm949, %v3085
      %3174 = vst.msk [vmem:[%s3143 + $0x169] sm:$0xff] %vm949, %v3086
      %3175 = vst.msk [vmem:[%s3143 + $0x171] sm:$0xff] %vm949, %v3087
      %v3176 = vld [vmem:[#allocation3] sm:$0xff]
      %v3177 = vld [vmem:[#allocation3 + $0x8] sm:$0xff]
      %v3178 = vld [vmem:[#allocation3 + $0x18] sm:$0xff]
      %v3179 = vld [vmem:[#allocation3 + $0x20] sm:$0xff]
      %v3180 = vld [vmem:[#allocation3 + $0x30] sm:$0xff]
      %v3181 = vld [vmem:[#allocation3 + $0x38] sm:$0xff]
      %v3182 = vld [vmem:[#allocation3 + $0x48] sm:$0xff]
      %v3183 = vld [vmem:[#allocation3 + $0x50] sm:$0xff]
      %v3184 = vld [vmem:[#allocation3 + $0x60] sm:$0xff]
      %v3185 = vld [vmem:[#allocation3 + $0x68] sm:$0xff]
      %v3186 = vld [vmem:[#allocation3 + $0x78] sm:$0xff]
      %v3187 = vld [vmem:[#allocation3 + $0x80] sm:$0xff]
      %v3188 = vld [vmem:[#allocation3 + $0x90] sm:$0xff]
      %v3189 = vld [vmem:[#allocation3 + $0x98] sm:$0xff]
      %v3190 = vld [vmem:[#allocation3 + $0xa8] sm:$0xff]
      %v3191 = vld [vmem:[#allocation3 + $0xb0] sm:$0xff]
      %v3192 = vld [vmem:[#allocation3 + $0xc0] sm:$0xff]
      %v3193 = vld [vmem:[#allocation3 + $0xc8] sm:$0xff]
      %v3194 = vld [vmem:[#allocation3 + $0xd8] sm:$0xff]
      %v3195 = vld [vmem:[#allocation3 + $0xe0] sm:$0xff]
      %v3196 = vld [vmem:[#allocation3 + $0xf0] sm:$0xff]
      %v3197 = vld [vmem:[#allocation3 + $0xf8] sm:$0xff]
      %v3198 = vld [vmem:[#allocation3 + $0x108] sm:$0xff]
      %v3199 = vld [vmem:[#allocation3 + $0x110] sm:$0xff]
      %v3200 = vld [vmem:[#allocation3 + $0x120] sm:$0xff]
      %v3201 = vld [vmem:[#allocation3 + $0x128] sm:$0xff]
      %v3202 = vld [vmem:[#allocation3 + $0x138] sm:$0xff]
      %v3203 = vld [vmem:[#allocation3 + $0x140] sm:$0xff]
      %v3204 = vld [vmem:[#allocation3 + $0x150] sm:$0xff]
      %v3205 = vld [vmem:[#allocation3 + $0x158] sm:$0xff]
      %v3206 = vld [vmem:[#allocation3 + $0x168] sm:$0xff]
      %v3207 = vld [vmem:[#allocation3 + $0x170] sm:$0xff]
      %v3208 = vld [vmem:[#allocation3 + $0x1] sm:$0xff]
      %v3209 = vld [vmem:[#allocation3 + $0x9] sm:$0xff]
      %v3210 = vld [vmem:[#allocation3 + $0x19] sm:$0xff]
      %v3211 = vld [vmem:[#allocation3 + $0x21] sm:$0xff]
      %v3212 = vld [vmem:[#allocation3 + $0x31] sm:$0xff]
      %v3213 = vld [vmem:[#allocation3 + $0x39] sm:$0xff]
      %v3214 = vld [vmem:[#allocation3 + $0x49] sm:$0xff]
      %v3215 = vld [vmem:[#allocation3 + $0x51] sm:$0xff]
      %v3216 = vld [vmem:[#allocation3 + $0x61] sm:$0xff]
      %v3217 = vld [vmem:[#allocation3 + $0x69] sm:$0xff]
      %v3218 = vld [vmem:[#allocation3 + $0x79] sm:$0xff]
      %v3219 = vld [vmem:[#allocation3 + $0x81] sm:$0xff]
      %v3220 = vld [vmem:[#allocation3 + $0x91] sm:$0xff]
      %v3221 = vld [vmem:[#allocation3 + $0x99] sm:$0xff]
      %v3222 = vld [vmem:[#allocation3 + $0xa9] sm:$0xff]
      %v3223 = vld [vmem:[#allocation3 + $0xb1] sm:$0xff]
      %v3224 = vld [vmem:[#allocation3 + $0xc1] sm:$0xff]
      %v3225 = vld [vmem:[#allocation3 + $0xc9] sm:$0xff]
      %v3226 = vld [vmem:[#allocation3 + $0xd9] sm:$0xff]
      %v3227 = vld [vmem:[#allocation3 + $0xe1] sm:$0xff]
      %v3228 = vld [vmem:[#allocation3 + $0xf1] sm:$0xff]
      %v3229 = vld [vmem:[#allocation3 + $0xf9] sm:$0xff]
      %v3230 = vld [vmem:[#allocation3 + $0x109] sm:$0xff]
      %v3231 = vld [vmem:[#allocation3 + $0x111] sm:$0xff]
      %v3232 = vld [vmem:[#allocation3 + $0x121] sm:$0xff]
      %v3233 = vld [vmem:[#allocation3 + $0x129] sm:$0xff]
      %v3234 = vld [vmem:[#allocation3 + $0x139] sm:$0xff]
      %v3235 = vld [vmem:[#allocation3 + $0x141] sm:$0xff]
      %v3236 = vld [vmem:[#allocation3 + $0x151] sm:$0xff]
      %v3237 = vld [vmem:[#allocation3 + $0x159] sm:$0xff]
      %v3238 = vld [vmem:[#allocation3 + $0x169] sm:$0xff]
      %v3239 = vld [vmem:[#allocation3 + $0x171] sm:$0xff]
      %v3240 = vld [vmem:[#allocation3 + $0x2] sm:$0xff]
      %v3241 = vld [vmem:[#allocation3 + $0xa] sm:$0xff]
      %v3242 = vld [vmem:[#allocation3 + $0x1a] sm:$0xff]
      %v3243 = vld [vmem:[#allocation3 + $0x22] sm:$0xff]
      %v3244 = vld [vmem:[#allocation3 + $0x32] sm:$0xff]
      %v3245 = vld [vmem:[#allocation3 + $0x3a] sm:$0xff]
      %v3246 = vld [vmem:[#allocation3 + $0x4a] sm:$0xff]
      %v3247 = vld [vmem:[#allocation3 + $0x52] sm:$0xff]
      %v3248 = vld [vmem:[#allocation3 + $0x62] sm:$0xff]
      %v3249 = vld [vmem:[#allocation3 + $0x6a] sm:$0xff]
      %v3250 = vld [vmem:[#allocation3 + $0x7a] sm:$0xff]
      %v3251 = vld [vmem:[#allocation3 + $0x82] sm:$0xff]
      %v3252 = vld [vmem:[#allocation3 + $0x92] sm:$0xff]
      %v3253 = vld [vmem:[#allocation3 + $0x9a] sm:$0xff]
      %v3254 = vld [vmem:[#allocation3 + $0xaa] sm:$0xff]
      %v3255 = vld [vmem:[#allocation3 + $0xb2] sm:$0xff]
      %v3256 = vld [vmem:[#allocation3 + $0xc2] sm:$0xff]
      %v3257 = vld [vmem:[#allocation3 + $0xca] sm:$0xff]
      %v3258 = vld [vmem:[#allocation3 + $0xda] sm:$0xff]
      %v3259 = vld [vmem:[#allocation3 + $0xe2] sm:$0xff]
      %v3260 = vld [vmem:[#allocation3 + $0xf2] sm:$0xff]
      %v3261 = vld [vmem:[#allocation3 + $0xfa] sm:$0xff]
      %v3262 = vld [vmem:[#allocation3 + $0x10a] sm:$0xff]
      %v3263 = vld [vmem:[#allocation3 + $0x112] sm:$0xff]
      %v3264 = vld [vmem:[#allocation3 + $0x122] sm:$0xff]
      %v3265 = vld [vmem:[#allocation3 + $0x12a] sm:$0xff]
      %v3266 = vld [vmem:[#allocation3 + $0x13a] sm:$0xff]
      %v3267 = vld [vmem:[#allocation3 + $0x142] sm:$0xff]
      %v3268 = vld [vmem:[#allocation3 + $0x152] sm:$0xff]
      %v3269 = vld [vmem:[#allocation3 + $0x15a] sm:$0xff]
      %v3270 = vld [vmem:[#allocation3 + $0x16a] sm:$0xff]
      %v3271 = vld [vmem:[#allocation3 + $0x172] sm:$0xff]
      %v3272 = vld [vmem:[%s3143] sm:$0xff]
      %v3273 = vld [vmem:[%s3143 + $0x8] sm:$0xff]
      %v3274 = vld [vmem:[%s3143 + $0x18] sm:$0xff]
      %v3275 = vld [vmem:[%s3143 + $0x20] sm:$0xff]
      %v3276 = vld [vmem:[%s3143 + $0x30] sm:$0xff]
      %v3277 = vld [vmem:[%s3143 + $0x38] sm:$0xff]
      %v3278 = vld [vmem:[%s3143 + $0x48] sm:$0xff]
      %v3279 = vld [vmem:[%s3143 + $0x50] sm:$0xff]
      %v3280 = vld [vmem:[%s3143 + $0x60] sm:$0xff]
      %v3281 = vld [vmem:[%s3143 + $0x68] sm:$0xff]
      %v3282 = vld [vmem:[%s3143 + $0x78] sm:$0xff]
      %v3283 = vld [vmem:[%s3143 + $0x80] sm:$0xff]
      %v3284 = vld [vmem:[%s3143 + $0x90] sm:$0xff]
      %v3285 = vld [vmem:[%s3143 + $0x98] sm:$0xff]
      %v3286 = vld [vmem:[%s3143 + $0xa8] sm:$0xff]
      %v3287 = vld [vmem:[%s3143 + $0xb0] sm:$0xff]
      %v3288 = vld [vmem:[%s3143 + $0xc0] sm:$0xff]
      %v3289 = vld [vmem:[%s3143 + $0xc8] sm:$0xff]
      %v3290 = vld [vmem:[%s3143 + $0xd8] sm:$0xff]
      %v3291 = vld [vmem:[%s3143 + $0xe0] sm:$0xff]
      %v3292 = vld [vmem:[%s3143 + $0xf0] sm:$0xff]
      %v3293 = vld [vmem:[%s3143 + $0xf8] sm:$0xff]
      %v3294 = vld [vmem:[%s3143 + $0x108] sm:$0xff]
      %v3295 = vld [vmem:[%s3143 + $0x110] sm:$0xff]
      %v3296 = vld [vmem:[%s3143 + $0x120] sm:$0xff]
      %v3297 = vld [vmem:[%s3143 + $0x128] sm:$0xff]
      %v3298 = vld [vmem:[%s3143 + $0x138] sm:$0xff]
      %v3299 = vld [vmem:[%s3143 + $0x140] sm:$0xff]
      %v3300 = vld [vmem:[%s3143 + $0x150] sm:$0xff]
      %v3301 = vld [vmem:[%s3143 + $0x158] sm:$0xff]
      %v3302 = vld [vmem:[%s3143 + $0x168] sm:$0xff]
      %v3303 = vld [vmem:[%s3143 + $0x170] sm:$0xff]
      %v3304 = vld [vmem:[%s3143 + $0x1] sm:$0xff]
      %v3305 = vld [vmem:[%s3143 + $0x9] sm:$0xff]
      %v3306 = vld [vmem:[%s3143 + $0x19] sm:$0xff]
      %v3307 = vld [vmem:[%s3143 + $0x21] sm:$0xff]
      %v3308 = vld [vmem:[%s3143 + $0x31] sm:$0xff]
      %v3309 = vld [vmem:[%s3143 + $0x39] sm:$0xff]
      %v3310 = vld [vmem:[%s3143 + $0x49] sm:$0xff]
      %v3311 = vld [vmem:[%s3143 + $0x51] sm:$0xff]
      %v3312 = vld [vmem:[%s3143 + $0x61] sm:$0xff]
      %v3313 = vld [vmem:[%s3143 + $0x69] sm:$0xff]
      %v3314 = vld [vmem:[%s3143 + $0x79] sm:$0xff]
      %v3315 = vld [vmem:[%s3143 + $0x81] sm:$0xff]
      %v3316 = vld [vmem:[%s3143 + $0x91] sm:$0xff]
      %v3317 = vld [vmem:[%s3143 + $0x99] sm:$0xff]
      %v3318 = vld [vmem:[%s3143 + $0xa9] sm:$0xff]
      %v3319 = vld [vmem:[%s3143 + $0xb1] sm:$0xff]
      %v3320 = vld [vmem:[%s3143 + $0xc1] sm:$0xff]
      %v3321 = vld [vmem:[%s3143 + $0xc9] sm:$0xff]
      %v3322 = vld [vmem:[%s3143 + $0xd9] sm:$0xff]
      %v3323 = vld [vmem:[%s3143 + $0xe1] sm:$0xff]
      %v3324 = vld [vmem:[%s3143 + $0xf1] sm:$0xff]
      %v3325 = vld [vmem:[%s3143 + $0xf9] sm:$0xff]
      %v3326 = vld [vmem:[%s3143 + $0x109] sm:$0xff]
      %v3327 = vld [vmem:[%s3143 + $0x111] sm:$0xff]
      %v3328 = vld [vmem:[%s3143 + $0x121] sm:$0xff]
      %v3329 = vld [vmem:[%s3143 + $0x129] sm:$0xff]
      %v3330 = vld [vmem:[%s3143 + $0x139] sm:$0xff]
      %v3331 = vld [vmem:[%s3143 + $0x141] sm:$0xff]
      %v3332 = vld [vmem:[%s3143 + $0x151] sm:$0xff]
      %v3333 = vld [vmem:[%s3143 + $0x159] sm:$0xff]
      %v3334 = vld [vmem:[%s3143 + $0x169] sm:$0xff]
      %v3335 = vld [vmem:[%s3143 + $0x171] sm:$0xff]
      %v3336 = vld [vmem:[%s3143 + $0x2] sm:$0xff]
      %v3337 = vld [vmem:[%s3143 + $0xa] sm:$0xff]
      %v3338 = vld [vmem:[%s3143 + $0x1a] sm:$0xff]
      %v3339 = vld [vmem:[%s3143 + $0x22] sm:$0xff]
      %v3340 = vld [vmem:[%s3143 + $0x32] sm:$0xff]
      %v3341 = vld [vmem:[%s3143 + $0x3a] sm:$0xff]
      %v3342 = vld [vmem:[%s3143 + $0x4a] sm:$0xff]
      %v3343 = vld [vmem:[%s3143 + $0x52] sm:$0xff]
      %v3344 = vld [vmem:[%s3143 + $0x62] sm:$0xff]
      %v3345 = vld [vmem:[%s3143 + $0x6a] sm:$0xff]
      %v3346 = vld [vmem:[%s3143 + $0x7a] sm:$0xff]
      %v3347 = vld [vmem:[%s3143 + $0x82] sm:$0xff]
      %v3348 = vld [vmem:[%s3143 + $0x92] sm:$0xff]
      %v3349 = vld [vmem:[%s3143 + $0x9a] sm:$0xff]
      %v3350 = vld [vmem:[%s3143 + $0xaa] sm:$0xff]
      %v3351 = vld [vmem:[%s3143 + $0xb2] sm:$0xff]
      %v3352 = vld [vmem:[%s3143 + $0xc2] sm:$0xff]
      %v3353 = vld [vmem:[%s3143 + $0xca] sm:$0xff]
      %v3354 = vld [vmem:[%s3143 + $0xda] sm:$0xff]
      %v3355 = vld [vmem:[%s3143 + $0xe2] sm:$0xff]
      %v3356 = vld [vmem:[%s3143 + $0xf2] sm:$0xff]
      %v3357 = vld [vmem:[%s3143 + $0xfa] sm:$0xff]
      %v3358 = vld [vmem:[%s3143 + $0x10a] sm:$0xff]
      %v3359 = vld [vmem:[%s3143 + $0x112] sm:$0xff]
      %v3360 = vld [vmem:[%s3143 + $0x122] sm:$0xff]
      %v3361 = vld [vmem:[%s3143 + $0x12a] sm:$0xff]
      %v3362 = vld [vmem:[%s3143 + $0x13a] sm:$0xff]
      %v3363 = vld [vmem:[%s3143 + $0x142] sm:$0xff]
      %v3364 = vld [vmem:[%s3143 + $0x152] sm:$0xff]
      %v3365 = vld [vmem:[%s3143 + $0x15a] sm:$0xff]
      %v3366 = vld [vmem:[%s3143 + $0x16a] sm:$0xff]
      %v3367 = vld [vmem:[%s3143 + $0x172] sm:$0xff]
      %s3368 = scalar_lea.vmem [#allocation3], 48
      %v3369 = vld [vmem:[%s3368] sm:$0xff]
      %v3370 = vld [vmem:[%s3368 + $0x8] sm:$0xff]
      %v3371 = vld [vmem:[%s3368 + $0x18] sm:$0xff]
      %v3372 = vld [vmem:[%s3368 + $0x20] sm:$0xff]
      %v3373 = vld [vmem:[%s3368 + $0x30] sm:$0xff]
      %v3374 = vld [vmem:[%s3368 + $0x38] sm:$0xff]
      %v3375 = vld [vmem:[%s3368 + $0x48] sm:$0xff]
      %v3376 = vld [vmem:[%s3368 + $0x50] sm:$0xff]
      %v3377 = vld [vmem:[%s3368 + $0x60] sm:$0xff]
      %v3378 = vld [vmem:[%s3368 + $0x68] sm:$0xff]
      %v3379 = vld [vmem:[%s3368 + $0x78] sm:$0xff]
      %v3380 = vld [vmem:[%s3368 + $0x80] sm:$0xff]
      %v3381 = vld [vmem:[%s3368 + $0x90] sm:$0xff]
      %v3382 = vld [vmem:[%s3368 + $0x98] sm:$0xff]
      %v3383 = vld [vmem:[%s3368 + $0xa8] sm:$0xff]
      %v3384 = vld [vmem:[%s3368 + $0xb0] sm:$0xff]
      %v3385 = vld [vmem:[%s3368 + $0xc0] sm:$0xff]
      %v3386 = vld [vmem:[%s3368 + $0xc8] sm:$0xff]
      %v3387 = vld [vmem:[%s3368 + $0xd8] sm:$0xff]
      %v3388 = vld [vmem:[%s3368 + $0xe0] sm:$0xff]
      %v3389 = vld [vmem:[%s3368 + $0xf0] sm:$0xff]
      %v3390 = vld [vmem:[%s3368 + $0xf8] sm:$0xff]
      %v3391 = vld [vmem:[%s3368 + $0x108] sm:$0xff]
      %v3392 = vld [vmem:[%s3368 + $0x110] sm:$0xff]
      %v3393 = vld [vmem:[%s3368 + $0x120] sm:$0xff]
      %v3394 = vld [vmem:[%s3368 + $0x128] sm:$0xff]
      %v3395 = vld [vmem:[%s3368 + $0x138] sm:$0xff]
      %v3396 = vld [vmem:[%s3368 + $0x140] sm:$0xff]
      %v3397 = vld [vmem:[%s3368 + $0x150] sm:$0xff]
      %v3398 = vld [vmem:[%s3368 + $0x158] sm:$0xff]
      %v3399 = vld [vmem:[%s3368 + $0x168] sm:$0xff]
      %v3400 = vld [vmem:[%s3368 + $0x170] sm:$0xff]
      %v3401 = vld [vmem:[%s3368 + $0x1] sm:$0xff]
      %v3402 = vld [vmem:[%s3368 + $0x9] sm:$0xff]
      %v3403 = vld [vmem:[%s3368 + $0x19] sm:$0xff]
      %v3404 = vld [vmem:[%s3368 + $0x21] sm:$0xff]
      %v3405 = vld [vmem:[%s3368 + $0x31] sm:$0xff]
      %v3406 = vld [vmem:[%s3368 + $0x39] sm:$0xff]
      %v3407 = vld [vmem:[%s3368 + $0x49] sm:$0xff]
      %v3408 = vld [vmem:[%s3368 + $0x51] sm:$0xff]
      %v3409 = vld [vmem:[%s3368 + $0x61] sm:$0xff]
      %v3410 = vld [vmem:[%s3368 + $0x69] sm:$0xff]
      %v3411 = vld [vmem:[%s3368 + $0x79] sm:$0xff]
      %v3412 = vld [vmem:[%s3368 + $0x81] sm:$0xff]
      %v3413 = vld [vmem:[%s3368 + $0x91] sm:$0xff]
      %v3414 = vld [vmem:[%s3368 + $0x99] sm:$0xff]
      %v3415 = vld [vmem:[%s3368 + $0xa9] sm:$0xff]
      %v3416 = vld [vmem:[%s3368 + $0xb1] sm:$0xff]
      %v3417 = vld [vmem:[%s3368 + $0xc1] sm:$0xff]
      %v3418 = vld [vmem:[%s3368 + $0xc9] sm:$0xff]
      %v3419 = vld [vmem:[%s3368 + $0xd9] sm:$0xff]
      %v3420 = vld [vmem:[%s3368 + $0xe1] sm:$0xff]
      %v3421 = vld [vmem:[%s3368 + $0xf1] sm:$0xff]
      %v3422 = vld [vmem:[%s3368 + $0xf9] sm:$0xff]
      %v3423 = vld [vmem:[%s3368 + $0x109] sm:$0xff]
      %v3424 = vld [vmem:[%s3368 + $0x111] sm:$0xff]
      %v3425 = vld [vmem:[%s3368 + $0x121] sm:$0xff]
      %v3426 = vld [vmem:[%s3368 + $0x129] sm:$0xff]
      %v3427 = vld [vmem:[%s3368 + $0x139] sm:$0xff]
      %v3428 = vld [vmem:[%s3368 + $0x141] sm:$0xff]
      %v3429 = vld [vmem:[%s3368 + $0x151] sm:$0xff]
      %v3430 = vld [vmem:[%s3368 + $0x159] sm:$0xff]
      %v3431 = vld [vmem:[%s3368 + $0x169] sm:$0xff]
      %v3432 = vld [vmem:[%s3368 + $0x171] sm:$0xff]
      %v3433 = vld [vmem:[%s3368 + $0x2] sm:$0xff]
      %v3434 = vld [vmem:[%s3368 + $0xa] sm:$0xff]
      %v3435 = vld [vmem:[%s3368 + $0x1a] sm:$0xff]
      %v3436 = vld [vmem:[%s3368 + $0x22] sm:$0xff]
      %v3437 = vld [vmem:[%s3368 + $0x32] sm:$0xff]
      %v3438 = vld [vmem:[%s3368 + $0x3a] sm:$0xff]
      %v3439 = vld [vmem:[%s3368 + $0x4a] sm:$0xff]
      %v3440 = vld [vmem:[%s3368 + $0x52] sm:$0xff]
      %v3441 = vld [vmem:[%s3368 + $0x62] sm:$0xff]
      %v3442 = vld [vmem:[%s3368 + $0x6a] sm:$0xff]
      %v3443 = vld [vmem:[%s3368 + $0x7a] sm:$0xff]
      %v3444 = vld [vmem:[%s3368 + $0x82] sm:$0xff]
      %v3445 = vld [vmem:[%s3368 + $0x92] sm:$0xff]
      %v3446 = vld [vmem:[%s3368 + $0x9a] sm:$0xff]
      %v3447 = vld [vmem:[%s3368 + $0xaa] sm:$0xff]
      %v3448 = vld [vmem:[%s3368 + $0xb2] sm:$0xff]
      %v3449 = vld [vmem:[%s3368 + $0xc2] sm:$0xff]
      %v3450 = vld [vmem:[%s3368 + $0xca] sm:$0xff]
      %v3451 = vld [vmem:[%s3368 + $0xda] sm:$0xff]
      %v3452 = vld [vmem:[%s3368 + $0xe2] sm:$0xff]
      %v3453 = vld [vmem:[%s3368 + $0xf2] sm:$0xff]
      %v3454 = vld [vmem:[%s3368 + $0xfa] sm:$0xff]
      %v3455 = vld [vmem:[%s3368 + $0x10a] sm:$0xff]
      %v3456 = vld [vmem:[%s3368 + $0x112] sm:$0xff]
      %v3457 = vld [vmem:[%s3368 + $0x122] sm:$0xff]
      %v3458 = vld [vmem:[%s3368 + $0x12a] sm:$0xff]
      %v3459 = vld [vmem:[%s3368 + $0x13a] sm:$0xff]
      %v3460 = vld [vmem:[%s3368 + $0x142] sm:$0xff]
      %v3461 = vld [vmem:[%s3368 + $0x152] sm:$0xff]
      %v3462 = vld [vmem:[%s3368 + $0x15a] sm:$0xff]
      %v3463 = vld [vmem:[%s3368 + $0x16a] sm:$0xff]
      %v3464 = vld [vmem:[%s3368 + $0x172] sm:$0xff]
      %3497 = vrot.lane.b32.xlu0 %v3208, 4
      %v3498 = vpop.permute.xlu0 %3497
      %3499 = vrot.lane.b32.xlu0 %v3209, 4
      %v3500 = vpop.permute.xlu0 %3499
      %3501 = vrot.lane.b32.xlu0 %v3210, 4
      %v3502 = vpop.permute.xlu0 %3501
      %3503 = vrot.lane.b32.xlu0 %v3211, 4
      %v3504 = vpop.permute.xlu0 %3503
      %3505 = vrot.lane.b32.xlu0 %v3212, 4
      %v3506 = vpop.permute.xlu0 %3505
      %3507 = vrot.lane.b32.xlu0 %v3213, 4
      %v3508 = vpop.permute.xlu0 %3507
      %3509 = vrot.lane.b32.xlu0 %v3214, 4
      %v3510 = vpop.permute.xlu0 %3509
      %3511 = vrot.lane.b32.xlu0 %v3215, 4
      %v3512 = vpop.permute.xlu0 %3511
      %3513 = vrot.lane.b32.xlu0 %v3216, 4
      %v3514 = vpop.permute.xlu0 %3513
      %3515 = vrot.lane.b32.xlu0 %v3217, 4
      %v3516 = vpop.permute.xlu0 %3515
      %3517 = vrot.lane.b32.xlu0 %v3218, 4
      %v3518 = vpop.permute.xlu0 %3517
      %3519 = vrot.lane.b32.xlu0 %v3219, 4
      %v3520 = vpop.permute.xlu0 %3519
      %3521 = vrot.lane.b32.xlu0 %v3220, 4
      %v3522 = vpop.permute.xlu0 %3521
      %3523 = vrot.lane.b32.xlu0 %v3221, 4
      %v3524 = vpop.permute.xlu0 %3523
      %3525 = vrot.lane.b32.xlu0 %v3222, 4
      %v3526 = vpop.permute.xlu0 %3525
      %3527 = vrot.lane.b32.xlu0 %v3223, 4
      %v3528 = vpop.permute.xlu0 %3527
      %3529 = vrot.lane.b32.xlu0 %v3224, 4
      %v3530 = vpop.permute.xlu0 %3529
      %3531 = vrot.lane.b32.xlu0 %v3225, 4
      %v3532 = vpop.permute.xlu0 %3531
      %3533 = vrot.lane.b32.xlu0 %v3226, 4
      %v3534 = vpop.permute.xlu0 %3533
      %3535 = vrot.lane.b32.xlu0 %v3227, 4
      %v3536 = vpop.permute.xlu0 %3535
      %3537 = vrot.lane.b32.xlu0 %v3228, 4
      %v3538 = vpop.permute.xlu0 %3537
      %3539 = vrot.lane.b32.xlu0 %v3229, 4
      %v3540 = vpop.permute.xlu0 %3539
      %3541 = vrot.lane.b32.xlu0 %v3230, 4
      %v3542 = vpop.permute.xlu0 %3541
      %3543 = vrot.lane.b32.xlu0 %v3231, 4
      %v3544 = vpop.permute.xlu0 %3543
      %3545 = vrot.lane.b32.xlu0 %v3232, 4
      %v3546 = vpop.permute.xlu0 %3545
      %3547 = vrot.lane.b32.xlu0 %v3233, 4
      %v3548 = vpop.permute.xlu0 %3547
      %3549 = vrot.lane.b32.xlu0 %v3234, 4
      %v3550 = vpop.permute.xlu0 %3549
      %3551 = vrot.lane.b32.xlu0 %v3235, 4
      %v3552 = vpop.permute.xlu0 %3551
      %3553 = vrot.lane.b32.xlu0 %v3236, 4
      %v3554 = vpop.permute.xlu0 %3553
      %3555 = vrot.lane.b32.xlu0 %v3237, 4
      %v3556 = vpop.permute.xlu0 %3555
      %3557 = vrot.lane.b32.xlu0 %v3238, 4
      %v3558 = vpop.permute.xlu0 %3557
      %3559 = vrot.lane.b32.xlu0 %v3239, 4
      %v3560 = vpop.permute.xlu0 %3559
      %3625 = vrot.lane.b32.xlu0 %v3240, 8
      %v3626 = vpop.permute.xlu0 %3625
      %3627 = vrot.lane.b32.xlu0 %v3241, 8
      %v3628 = vpop.permute.xlu0 %3627
      %3629 = vrot.lane.b32.xlu0 %v3242, 8
      %v3630 = vpop.permute.xlu0 %3629
      %3631 = vrot.lane.b32.xlu0 %v3243, 8
      %v3632 = vpop.permute.xlu0 %3631
      %3633 = vrot.lane.b32.xlu0 %v3244, 8
      %v3634 = vpop.permute.xlu0 %3633
      %3635 = vrot.lane.b32.xlu0 %v3245, 8
      %v3636 = vpop.permute.xlu0 %3635
      %3637 = vrot.lane.b32.xlu0 %v3246, 8
      %v3638 = vpop.permute.xlu0 %3637
      %3639 = vrot.lane.b32.xlu0 %v3247, 8
      %v3640 = vpop.permute.xlu0 %3639
      %3641 = vrot.lane.b32.xlu0 %v3248, 8
      %v3642 = vpop.permute.xlu0 %3641
      %3643 = vrot.lane.b32.xlu0 %v3249, 8
      %v3644 = vpop.permute.xlu0 %3643
      %3645 = vrot.lane.b32.xlu0 %v3250, 8
      %v3646 = vpop.permute.xlu0 %3645
      %3647 = vrot.lane.b32.xlu0 %v3251, 8
      %v3648 = vpop.permute.xlu0 %3647
      %3649 = vrot.lane.b32.xlu0 %v3252, 8
      %v3650 = vpop.permute.xlu0 %3649
      %3651 = vrot.lane.b32.xlu0 %v3253, 8
      %v3652 = vpop.permute.xlu0 %3651
      %3653 = vrot.lane.b32.xlu0 %v3254, 8
      %v3654 = vpop.permute.xlu0 %3653
      %3655 = vrot.lane.b32.xlu0 %v3255, 8
      %v3656 = vpop.permute.xlu0 %3655
      %3657 = vrot.lane.b32.xlu0 %v3256, 8
      %v3658 = vpop.permute.xlu0 %3657
      %3659 = vrot.lane.b32.xlu0 %v3257, 8
      %v3660 = vpop.permute.xlu0 %3659
      %3661 = vrot.lane.b32.xlu0 %v3258, 8
      %v3662 = vpop.permute.xlu0 %3661
      %3663 = vrot.lane.b32.xlu0 %v3259, 8
      %v3664 = vpop.permute.xlu0 %3663
      %3665 = vrot.lane.b32.xlu0 %v3260, 8
      %v3666 = vpop.permute.xlu0 %3665
      %3667 = vrot.lane.b32.xlu0 %v3261, 8
      %v3668 = vpop.permute.xlu0 %3667
      %3669 = vrot.lane.b32.xlu0 %v3262, 8
      %v3670 = vpop.permute.xlu0 %3669
      %3671 = vrot.lane.b32.xlu0 %v3263, 8
      %v3672 = vpop.permute.xlu0 %3671
      %3673 = vrot.lane.b32.xlu0 %v3264, 8
      %v3674 = vpop.permute.xlu0 %3673
      %3675 = vrot.lane.b32.xlu0 %v3265, 8
      %v3676 = vpop.permute.xlu0 %3675
      %3677 = vrot.lane.b32.xlu0 %v3266, 8
      %v3678 = vpop.permute.xlu0 %3677
      %3679 = vrot.lane.b32.xlu0 %v3267, 8
      %v3680 = vpop.permute.xlu0 %3679
      %3681 = vrot.lane.b32.xlu0 %v3268, 8
      %v3682 = vpop.permute.xlu0 %3681
      %3683 = vrot.lane.b32.xlu0 %v3269, 8
      %v3684 = vpop.permute.xlu0 %3683
      %3685 = vrot.lane.b32.xlu0 %v3270, 8
      %v3686 = vpop.permute.xlu0 %3685
      %3687 = vrot.lane.b32.xlu0 %v3271, 8
      %v3688 = vpop.permute.xlu0 %3687
      %3753 = vrot.lane.b32.xlu0 %v3272, 12
      %v3754 = vpop.permute.xlu0 %3753
      %3755 = vrot.lane.b32.xlu0 %v3273, 12
      %v3756 = vpop.permute.xlu0 %3755
      %3757 = vrot.lane.b32.xlu0 %v3274, 12
      %v3758 = vpop.permute.xlu0 %3757
      %3759 = vrot.lane.b32.xlu0 %v3275, 12
      %v3760 = vpop.permute.xlu0 %3759
      %3761 = vrot.lane.b32.xlu0 %v3276, 12
      %v3762 = vpop.permute.xlu0 %3761
      %3763 = vrot.lane.b32.xlu0 %v3277, 12
      %v3764 = vpop.permute.xlu0 %3763
      %3765 = vrot.lane.b32.xlu0 %v3278, 12
      %v3766 = vpop.permute.xlu0 %3765
      %3767 = vrot.lane.b32.xlu0 %v3279, 12
      %v3768 = vpop.permute.xlu0 %3767
      %3769 = vrot.lane.b32.xlu0 %v3280, 12
      %v3770 = vpop.permute.xlu0 %3769
      %3771 = vrot.lane.b32.xlu0 %v3281, 12
      %v3772 = vpop.permute.xlu0 %3771
      %3773 = vrot.lane.b32.xlu0 %v3282, 12
      %v3774 = vpop.permute.xlu0 %3773
      %3775 = vrot.lane.b32.xlu0 %v3283, 12
      %v3776 = vpop.permute.xlu0 %3775
      %3777 = vrot.lane.b32.xlu0 %v3284, 12
      %v3778 = vpop.permute.xlu0 %3777
      %3779 = vrot.lane.b32.xlu0 %v3285, 12
      %v3780 = vpop.permute.xlu0 %3779
      %3781 = vrot.lane.b32.xlu0 %v3286, 12
      %v3782 = vpop.permute.xlu0 %3781
      %3783 = vrot.lane.b32.xlu0 %v3287, 12
      %v3784 = vpop.permute.xlu0 %3783
      %3785 = vrot.lane.b32.xlu0 %v3288, 12
      %v3786 = vpop.permute.xlu0 %3785
      %3787 = vrot.lane.b32.xlu0 %v3289, 12
      %v3788 = vpop.permute.xlu0 %3787
      %3789 = vrot.lane.b32.xlu0 %v3290, 12
      %v3790 = vpop.permute.xlu0 %3789
      %3791 = vrot.lane.b32.xlu0 %v3291, 12
      %v3792 = vpop.permute.xlu0 %3791
      %3793 = vrot.lane.b32.xlu0 %v3292, 12
      %v3794 = vpop.permute.xlu0 %3793
      %3795 = vrot.lane.b32.xlu0 %v3293, 12
      %v3796 = vpop.permute.xlu0 %3795
      %3797 = vrot.lane.b32.xlu0 %v3294, 12
      %v3798 = vpop.permute.xlu0 %3797
      %3799 = vrot.lane.b32.xlu0 %v3295, 12
      %v3800 = vpop.permute.xlu0 %3799
      %3801 = vrot.lane.b32.xlu0 %v3296, 12
      %v3802 = vpop.permute.xlu0 %3801
      %3803 = vrot.lane.b32.xlu0 %v3297, 12
      %v3804 = vpop.permute.xlu0 %3803
      %3805 = vrot.lane.b32.xlu0 %v3298, 12
      %v3806 = vpop.permute.xlu0 %3805
      %3807 = vrot.lane.b32.xlu0 %v3299, 12
      %v3808 = vpop.permute.xlu0 %3807
      %3809 = vrot.lane.b32.xlu0 %v3300, 12
      %v3810 = vpop.permute.xlu0 %3809
      %3811 = vrot.lane.b32.xlu0 %v3301, 12
      %v3812 = vpop.permute.xlu0 %3811
      %3813 = vrot.lane.b32.xlu0 %v3302, 12
      %v3814 = vpop.permute.xlu0 %3813
      %3815 = vrot.lane.b32.xlu0 %v3303, 12
      %v3816 = vpop.permute.xlu0 %3815
      %3881 = vrot.lane.b32.xlu0 %v3304, 16
      %v3882 = vpop.permute.xlu0 %3881
      %3883 = vrot.lane.b32.xlu0 %v3305, 16
      %v3884 = vpop.permute.xlu0 %3883
      %3885 = vrot.lane.b32.xlu0 %v3306, 16
      %v3886 = vpop.permute.xlu0 %3885
      %3887 = vrot.lane.b32.xlu0 %v3307, 16
      %v3888 = vpop.permute.xlu0 %3887
      %3889 = vrot.lane.b32.xlu0 %v3308, 16
      %v3890 = vpop.permute.xlu0 %3889
      %3891 = vrot.lane.b32.xlu0 %v3309, 16
      %v3892 = vpop.permute.xlu0 %3891
      %3893 = vrot.lane.b32.xlu0 %v3310, 16
      %v3894 = vpop.permute.xlu0 %3893
      %3895 = vrot.lane.b32.xlu0 %v3311, 16
      %v3896 = vpop.permute.xlu0 %3895
      %3897 = vrot.lane.b32.xlu0 %v3312, 16
      %v3898 = vpop.permute.xlu0 %3897
      %3899 = vrot.lane.b32.xlu0 %v3313, 16
      %v3900 = vpop.permute.xlu0 %3899
      %3901 = vrot.lane.b32.xlu0 %v3314, 16
      %v3902 = vpop.permute.xlu0 %3901
      %3903 = vrot.lane.b32.xlu0 %v3315, 16
      %v3904 = vpop.permute.xlu0 %3903
      %3905 = vrot.lane.b32.xlu0 %v3316, 16
      %v3906 = vpop.permute.xlu0 %3905
      %3907 = vrot.lane.b32.xlu0 %v3317, 16
      %v3908 = vpop.permute.xlu0 %3907
      %3909 = vrot.lane.b32.xlu0 %v3318, 16
      %v3910 = vpop.permute.xlu0 %3909
      %3911 = vrot.lane.b32.xlu0 %v3319, 16
      %v3912 = vpop.permute.xlu0 %3911
      %3913 = vrot.lane.b32.xlu0 %v3320, 16
      %v3914 = vpop.permute.xlu0 %3913
      %3915 = vrot.lane.b32.xlu0 %v3321, 16
      %v3916 = vpop.permute.xlu0 %3915
      %3917 = vrot.lane.b32.xlu0 %v3322, 16
      %v3918 = vpop.permute.xlu0 %3917
      %3919 = vrot.lane.b32.xlu0 %v3323, 16
      %v3920 = vpop.permute.xlu0 %3919
      %3921 = vrot.lane.b32.xlu0 %v3324, 16
      %v3922 = vpop.permute.xlu0 %3921
      %3923 = vrot.lane.b32.xlu0 %v3325, 16
      %v3924 = vpop.permute.xlu0 %3923
      %3925 = vrot.lane.b32.xlu0 %v3326, 16
      %v3926 = vpop.permute.xlu0 %3925
      %3927 = vrot.lane.b32.xlu0 %v3327, 16
      %v3928 = vpop.permute.xlu0 %3927
      %3929 = vrot.lane.b32.xlu0 %v3328, 16
      %v3930 = vpop.permute.xlu0 %3929
      %3931 = vrot.lane.b32.xlu0 %v3329, 16
      %v3932 = vpop.permute.xlu0 %3931
      %3933 = vrot.lane.b32.xlu0 %v3330, 16
      %v3934 = vpop.permute.xlu0 %3933
      %3935 = vrot.lane.b32.xlu0 %v3331, 16
      %v3936 = vpop.permute.xlu0 %3935
      %3937 = vrot.lane.b32.xlu0 %v3332, 16
      %v3938 = vpop.permute.xlu0 %3937
      %3939 = vrot.lane.b32.xlu0 %v3333, 16
      %v3940 = vpop.permute.xlu0 %3939
      %3941 = vrot.lane.b32.xlu0 %v3334, 16
      %v3942 = vpop.permute.xlu0 %3941
      %3943 = vrot.lane.b32.xlu0 %v3335, 16
      %v3944 = vpop.permute.xlu0 %3943
      %4009 = vrot.lane.b32.xlu0 %v3336, 20
      %v4010 = vpop.permute.xlu0 %4009
      %4011 = vrot.lane.b32.xlu0 %v3337, 20
      %v4012 = vpop.permute.xlu0 %4011
      %4013 = vrot.lane.b32.xlu0 %v3338, 20
      %v4014 = vpop.permute.xlu0 %4013
      %4015 = vrot.lane.b32.xlu0 %v3339, 20
      %v4016 = vpop.permute.xlu0 %4015
      %4017 = vrot.lane.b32.xlu0 %v3340, 20
      %v4018 = vpop.permute.xlu0 %4017
      %4019 = vrot.lane.b32.xlu0 %v3341, 20
      %v4020 = vpop.permute.xlu0 %4019
      %4021 = vrot.lane.b32.xlu0 %v3342, 20
      %v4022 = vpop.permute.xlu0 %4021
      %4023 = vrot.lane.b32.xlu0 %v3343, 20
      %v4024 = vpop.permute.xlu0 %4023
      %4025 = vrot.lane.b32.xlu0 %v3344, 20
      %v4026 = vpop.permute.xlu0 %4025
      %4027 = vrot.lane.b32.xlu0 %v3345, 20
      %v4028 = vpop.permute.xlu0 %4027
      %4029 = vrot.lane.b32.xlu0 %v3346, 20
      %v4030 = vpop.permute.xlu0 %4029
      %4031 = vrot.lane.b32.xlu0 %v3347, 20
      %v4032 = vpop.permute.xlu0 %4031
      %4033 = vrot.lane.b32.xlu0 %v3348, 20
      %v4034 = vpop.permute.xlu0 %4033
      %4035 = vrot.lane.b32.xlu0 %v3349, 20
      %v4036 = vpop.permute.xlu0 %4035
      %4037 = vrot.lane.b32.xlu0 %v3350, 20
      %v4038 = vpop.permute.xlu0 %4037
      %4039 = vrot.lane.b32.xlu0 %v3351, 20
      %v4040 = vpop.permute.xlu0 %4039
      %4041 = vrot.lane.b32.xlu0 %v3352, 20
      %v4042 = vpop.permute.xlu0 %4041
      %4043 = vrot.lane.b32.xlu0 %v3353, 20
      %v4044 = vpop.permute.xlu0 %4043
      %4045 = vrot.lane.b32.xlu0 %v3354, 20
      %v4046 = vpop.permute.xlu0 %4045
      %4047 = vrot.lane.b32.xlu0 %v3355, 20
      %v4048 = vpop.permute.xlu0 %4047
      %4049 = vrot.lane.b32.xlu0 %v3356, 20
      %v4050 = vpop.permute.xlu0 %4049
      %4051 = vrot.lane.b32.xlu0 %v3357, 20
      %v4052 = vpop.permute.xlu0 %4051
      %4053 = vrot.lane.b32.xlu0 %v3358, 20
      %v4054 = vpop.permute.xlu0 %4053
      %4055 = vrot.lane.b32.xlu0 %v3359, 20
      %v4056 = vpop.permute.xlu0 %4055
      %4057 = vrot.lane.b32.xlu0 %v3360, 20
      %v4058 = vpop.permute.xlu0 %4057
      %4059 = vrot.lane.b32.xlu0 %v3361, 20
      %v4060 = vpop.permute.xlu0 %4059
      %4061 = vrot.lane.b32.xlu0 %v3362, 20
      %v4062 = vpop.permute.xlu0 %4061
      %4063 = vrot.lane.b32.xlu0 %v3363, 20
      %v4064 = vpop.permute.xlu0 %4063
      %4065 = vrot.lane.b32.xlu0 %v3364, 20
      %v4066 = vpop.permute.xlu0 %4065
      %4067 = vrot.lane.b32.xlu0 %v3365, 20
      %v4068 = vpop.permute.xlu0 %4067
      %4069 = vrot.lane.b32.xlu0 %v3366, 20
      %v4070 = vpop.permute.xlu0 %4069
      %4071 = vrot.lane.b32.xlu0 %v3367, 20
      %v4072 = vpop.permute.xlu0 %4071
      %4137 = vrot.lane.b32.xlu0 %v3369, 24
      %v4138 = vpop.permute.xlu0 %4137
      %4139 = vrot.lane.b32.xlu0 %v3370, 24
      %v4140 = vpop.permute.xlu0 %4139
      %4141 = vrot.lane.b32.xlu0 %v3371, 24
      %v4142 = vpop.permute.xlu0 %4141
      %4143 = vrot.lane.b32.xlu0 %v3372, 24
      %v4144 = vpop.permute.xlu0 %4143
      %4145 = vrot.lane.b32.xlu0 %v3373, 24
      %v4146 = vpop.permute.xlu0 %4145
      %4147 = vrot.lane.b32.xlu0 %v3374, 24
      %v4148 = vpop.permute.xlu0 %4147
      %4149 = vrot.lane.b32.xlu0 %v3375, 24
      %v4150 = vpop.permute.xlu0 %4149
      %4151 = vrot.lane.b32.xlu0 %v3376, 24
      %v4152 = vpop.permute.xlu0 %4151
      %4153 = vrot.lane.b32.xlu0 %v3377, 24
      %v4154 = vpop.permute.xlu0 %4153
      %4155 = vrot.lane.b32.xlu0 %v3378, 24
      %v4156 = vpop.permute.xlu0 %4155
      %4157 = vrot.lane.b32.xlu0 %v3379, 24
      %v4158 = vpop.permute.xlu0 %4157
      %4159 = vrot.lane.b32.xlu0 %v3380, 24
      %v4160 = vpop.permute.xlu0 %4159
      %4161 = vrot.lane.b32.xlu0 %v3381, 24
      %v4162 = vpop.permute.xlu0 %4161
      %4163 = vrot.lane.b32.xlu0 %v3382, 24
      %v4164 = vpop.permute.xlu0 %4163
      %4165 = vrot.lane.b32.xlu0 %v3383, 24
      %v4166 = vpop.permute.xlu0 %4165
      %4167 = vrot.lane.b32.xlu0 %v3384, 24
      %v4168 = vpop.permute.xlu0 %4167
      %4169 = vrot.lane.b32.xlu0 %v3385, 24
      %v4170 = vpop.permute.xlu0 %4169
      %4171 = vrot.lane.b32.xlu0 %v3386, 24
      %v4172 = vpop.permute.xlu0 %4171
      %4173 = vrot.lane.b32.xlu0 %v3387, 24
      %v4174 = vpop.permute.xlu0 %4173
      %4175 = vrot.lane.b32.xlu0 %v3388, 24
      %v4176 = vpop.permute.xlu0 %4175
      %4177 = vrot.lane.b32.xlu0 %v3389, 24
      %v4178 = vpop.permute.xlu0 %4177
      %4179 = vrot.lane.b32.xlu0 %v3390, 24
      %v4180 = vpop.permute.xlu0 %4179
      %4181 = vrot.lane.b32.xlu0 %v3391, 24
      %v4182 = vpop.permute.xlu0 %4181
      %4183 = vrot.lane.b32.xlu0 %v3392, 24
      %v4184 = vpop.permute.xlu0 %4183
      %4185 = vrot.lane.b32.xlu0 %v3393, 24
      %v4186 = vpop.permute.xlu0 %4185
      %4187 = vrot.lane.b32.xlu0 %v3394, 24
      %v4188 = vpop.permute.xlu0 %4187
      %4189 = vrot.lane.b32.xlu0 %v3395, 24
      %v4190 = vpop.permute.xlu0 %4189
      %4191 = vrot.lane.b32.xlu0 %v3396, 24
      %v4192 = vpop.permute.xlu0 %4191
      %4193 = vrot.lane.b32.xlu0 %v3397, 24
      %v4194 = vpop.permute.xlu0 %4193
      %4195 = vrot.lane.b32.xlu0 %v3398, 24
      %v4196 = vpop.permute.xlu0 %4195
      %4197 = vrot.lane.b32.xlu0 %v3399, 24
      %v4198 = vpop.permute.xlu0 %4197
      %4199 = vrot.lane.b32.xlu0 %v3400, 24
      %v4200 = vpop.permute.xlu0 %4199
      %4265 = vrot.lane.b32.xlu0 %v3401, 28
      %v4266 = vpop.permute.xlu0 %4265
      %4267 = vrot.lane.b32.xlu0 %v3402, 28
      %v4268 = vpop.permute.xlu0 %4267
      %4269 = vrot.lane.b32.xlu0 %v3403, 28
      %v4270 = vpop.permute.xlu0 %4269
      %4271 = vrot.lane.b32.xlu0 %v3404, 28
      %v4272 = vpop.permute.xlu0 %4271
      %4273 = vrot.lane.b32.xlu0 %v3405, 28
      %v4274 = vpop.permute.xlu0 %4273
      %4275 = vrot.lane.b32.xlu0 %v3406, 28
      %v4276 = vpop.permute.xlu0 %4275
      %4277 = vrot.lane.b32.xlu0 %v3407, 28
      %v4278 = vpop.permute.xlu0 %4277
      %4279 = vrot.lane.b32.xlu0 %v3408, 28
      %v4280 = vpop.permute.xlu0 %4279
      %4281 = vrot.lane.b32.xlu0 %v3409, 28
      %v4282 = vpop.permute.xlu0 %4281
      %4283 = vrot.lane.b32.xlu0 %v3410, 28
      %v4284 = vpop.permute.xlu0 %4283
      %4285 = vrot.lane.b32.xlu0 %v3411, 28
      %v4286 = vpop.permute.xlu0 %4285
      %4287 = vrot.lane.b32.xlu0 %v3412, 28
      %v4288 = vpop.permute.xlu0 %4287
      %4289 = vrot.lane.b32.xlu0 %v3413, 28
      %v4290 = vpop.permute.xlu0 %4289
      %4291 = vrot.lane.b32.xlu0 %v3414, 28
      %v4292 = vpop.permute.xlu0 %4291
      %4293 = vrot.lane.b32.xlu0 %v3415, 28
      %v4294 = vpop.permute.xlu0 %4293
      %4295 = vrot.lane.b32.xlu0 %v3416, 28
      %v4296 = vpop.permute.xlu0 %4295
      %4297 = vrot.lane.b32.xlu0 %v3417, 28
      %v4298 = vpop.permute.xlu0 %4297
      %4299 = vrot.lane.b32.xlu0 %v3418, 28
      %v4300 = vpop.permute.xlu0 %4299
      %4301 = vrot.lane.b32.xlu0 %v3419, 28
      %v4302 = vpop.permute.xlu0 %4301
      %4303 = vrot.lane.b32.xlu0 %v3420, 28
      %v4304 = vpop.permute.xlu0 %4303
      %4305 = vrot.lane.b32.xlu0 %v3421, 28
      %v4306 = vpop.permute.xlu0 %4305
      %4307 = vrot.lane.b32.xlu0 %v3422, 28
      %v4308 = vpop.permute.xlu0 %4307
      %4309 = vrot.lane.b32.xlu0 %v3423, 28
      %v4310 = vpop.permute.xlu0 %4309
      %4311 = vrot.lane.b32.xlu0 %v3424, 28
      %v4312 = vpop.permute.xlu0 %4311
      %4313 = vrot.lane.b32.xlu0 %v3425, 28
      %v4314 = vpop.permute.xlu0 %4313
      %4315 = vrot.lane.b32.xlu0 %v3426, 28
      %v4316 = vpop.permute.xlu0 %4315
      %4317 = vrot.lane.b32.xlu0 %v3427, 28
      %v4318 = vpop.permute.xlu0 %4317
      %4319 = vrot.lane.b32.xlu0 %v3428, 28
      %v4320 = vpop.permute.xlu0 %4319
      %4321 = vrot.lane.b32.xlu0 %v3429, 28
      %v4322 = vpop.permute.xlu0 %4321
      %4323 = vrot.lane.b32.xlu0 %v3430, 28
      %v4324 = vpop.permute.xlu0 %4323
      %4325 = vrot.lane.b32.xlu0 %v3431, 28
      %v4326 = vpop.permute.xlu0 %4325
      %4327 = vrot.lane.b32.xlu0 %v3432, 28
      %v4328 = vpop.permute.xlu0 %4327
      %4393 = vrot.lane.b32.xlu0 %v3433, 32
      %v4394 = vpop.permute.xlu0 %4393
      %4395 = vrot.lane.b32.xlu0 %v3434, 32
      %v4396 = vpop.permute.xlu0 %4395
      %4397 = vrot.lane.b32.xlu0 %v3435, 32
      %v4398 = vpop.permute.xlu0 %4397
      %4399 = vrot.lane.b32.xlu0 %v3436, 32
      %v4400 = vpop.permute.xlu0 %4399
      %4401 = vrot.lane.b32.xlu0 %v3437, 32
      %v4402 = vpop.permute.xlu0 %4401
      %4403 = vrot.lane.b32.xlu0 %v3438, 32
      %v4404 = vpop.permute.xlu0 %4403
      %4405 = vrot.lane.b32.xlu0 %v3439, 32
      %v4406 = vpop.permute.xlu0 %4405
      %4407 = vrot.lane.b32.xlu0 %v3440, 32
      %v4408 = vpop.permute.xlu0 %4407
      %4409 = vrot.lane.b32.xlu0 %v3441, 32
      %v4410 = vpop.permute.xlu0 %4409
      %4411 = vrot.lane.b32.xlu0 %v3442, 32
      %v4412 = vpop.permute.xlu0 %4411
      %4413 = vrot.lane.b32.xlu0 %v3443, 32
      %v4414 = vpop.permute.xlu0 %4413
      %4415 = vrot.lane.b32.xlu0 %v3444, 32
      %v4416 = vpop.permute.xlu0 %4415
      %4417 = vrot.lane.b32.xlu0 %v3445, 32
      %v4418 = vpop.permute.xlu0 %4417
      %4419 = vrot.lane.b32.xlu0 %v3446, 32
      %v4420 = vpop.permute.xlu0 %4419
      %4421 = vrot.lane.b32.xlu0 %v3447, 32
      %v4422 = vpop.permute.xlu0 %4421
      %4423 = vrot.lane.b32.xlu0 %v3448, 32
      %v4424 = vpop.permute.xlu0 %4423
      %4425 = vrot.lane.b32.xlu0 %v3449, 32
      %v4426 = vpop.permute.xlu0 %4425
      %4427 = vrot.lane.b32.xlu0 %v3450, 32
      %v4428 = vpop.permute.xlu0 %4427
      %4429 = vrot.lane.b32.xlu0 %v3451, 32
      %v4430 = vpop.permute.xlu0 %4429
      %4431 = vrot.lane.b32.xlu0 %v3452, 32
      %v4432 = vpop.permute.xlu0 %4431
      %4433 = vrot.lane.b32.xlu0 %v3453, 32
      %v4434 = vpop.permute.xlu0 %4433
      %4435 = vrot.lane.b32.xlu0 %v3454, 32
      %v4436 = vpop.permute.xlu0 %4435
      %4437 = vrot.lane.b32.xlu0 %v3455, 32
      %v4438 = vpop.permute.xlu0 %4437
      %4439 = vrot.lane.b32.xlu0 %v3456, 32
      %v4440 = vpop.permute.xlu0 %4439
      %4441 = vrot.lane.b32.xlu0 %v3457, 32
      %v4442 = vpop.permute.xlu0 %4441
      %4443 = vrot.lane.b32.xlu0 %v3458, 32
      %v4444 = vpop.permute.xlu0 %4443
      %4445 = vrot.lane.b32.xlu0 %v3459, 32
      %v4446 = vpop.permute.xlu0 %4445
      %4447 = vrot.lane.b32.xlu0 %v3460, 32
      %v4448 = vpop.permute.xlu0 %4447
      %4449 = vrot.lane.b32.xlu0 %v3461, 32
      %v4450 = vpop.permute.xlu0 %4449
      %4451 = vrot.lane.b32.xlu0 %v3462, 32
      %v4452 = vpop.permute.xlu0 %4451
      %4453 = vrot.lane.b32.xlu0 %v3463, 32
      %v4454 = vpop.permute.xlu0 %4453
      %4455 = vrot.lane.b32.xlu0 %v3464, 32
      %v4456 = vpop.permute.xlu0 %4455
      %v4489 = vsel %vm949, %v3176, %v3498
      %v4490 = vsel %vm949, %v3177, %v3500
      %v4491 = vsel %vm949, %v3178, %v3502
      %v4492 = vsel %vm949, %v3179, %v3504
      %v4493 = vsel %vm949, %v3180, %v3506
      %v4494 = vsel %vm949, %v3181, %v3508
      %v4495 = vsel %vm949, %v3182, %v3510
      %v4496 = vsel %vm949, %v3183, %v3512
      %v4497 = vsel %vm949, %v3184, %v3514
      %v4498 = vsel %vm949, %v3185, %v3516
      %v4499 = vsel %vm949, %v3186, %v3518
      %v4500 = vsel %vm949, %v3187, %v3520
      %v4501 = vsel %vm949, %v3188, %v3522
      %v4502 = vsel %vm949, %v3189, %v3524
      %v4503 = vsel %vm949, %v3190, %v3526
      %v4504 = vsel %vm949, %v3191, %v3528
      %v4505 = vsel %vm949, %v3192, %v3530
      %v4506 = vsel %vm949, %v3193, %v3532
      %v4507 = vsel %vm949, %v3194, %v3534
      %v4508 = vsel %vm949, %v3195, %v3536
      %v4509 = vsel %vm949, %v3196, %v3538
      %v4510 = vsel %vm949, %v3197, %v3540
      %v4511 = vsel %vm949, %v3198, %v3542
      %v4512 = vsel %vm949, %v3199, %v3544
      %v4513 = vsel %vm949, %v3200, %v3546
      %v4514 = vsel %vm949, %v3201, %v3548
      %v4515 = vsel %vm949, %v3202, %v3550
      %v4516 = vsel %vm949, %v3203, %v3552
      %v4517 = vsel %vm949, %v3204, %v3554
      %v4518 = vsel %vm949, %v3205, %v3556
      %v4519 = vsel %vm949, %v3206, %v3558
      %v4520 = vsel %vm949, %v3207, %v3560
      %v4521 = vsel %vm369, %v4489, %v3626
      %v4522 = vsel %vm369, %v4490, %v3628
      %v4523 = vsel %vm369, %v4491, %v3630
      %v4524 = vsel %vm369, %v4492, %v3632
      %v4525 = vsel %vm369, %v4493, %v3634
      %v4526 = vsel %vm369, %v4494, %v3636
      %v4527 = vsel %vm369, %v4495, %v3638
      %v4528 = vsel %vm369, %v4496, %v3640
      %v4529 = vsel %vm369, %v4497, %v3642
      %v4530 = vsel %vm369, %v4498, %v3644
      %v4531 = vsel %vm369, %v4499, %v3646
      %v4532 = vsel %vm369, %v4500, %v3648
      %v4533 = vsel %vm369, %v4501, %v3650
      %v4534 = vsel %vm369, %v4502, %v3652
      %v4535 = vsel %vm369, %v4503, %v3654
      %v4536 = vsel %vm369, %v4504, %v3656
      %v4537 = vsel %vm369, %v4505, %v3658
      %v4538 = vsel %vm369, %v4506, %v3660
      %v4539 = vsel %vm369, %v4507, %v3662
      %v4540 = vsel %vm369, %v4508, %v3664
      %v4541 = vsel %vm369, %v4509, %v3666
      %v4542 = vsel %vm369, %v4510, %v3668
      %v4543 = vsel %vm369, %v4511, %v3670
      %v4544 = vsel %vm369, %v4512, %v3672
      %v4545 = vsel %vm369, %v4513, %v3674
      %v4546 = vsel %vm369, %v4514, %v3676
      %v4547 = vsel %vm369, %v4515, %v3678
      %v4548 = vsel %vm369, %v4516, %v3680
      %v4549 = vsel %vm369, %v4517, %v3682
      %v4550 = vsel %vm369, %v4518, %v3684
      %v4551 = vsel %vm369, %v4519, %v3686
      %v4552 = vsel %vm369, %v4520, %v3688
      %vm4553 = vcmask 97280
      %v4554 = vsel %vm4553, %v4521, %v3754
      %v4555 = vsel %vm4553, %v4522, %v3756
      %v4556 = vsel %vm4553, %v4523, %v3758
      %v4557 = vsel %vm4553, %v4524, %v3760
      %v4558 = vsel %vm4553, %v4525, %v3762
      %v4559 = vsel %vm4553, %v4526, %v3764
      %v4560 = vsel %vm4553, %v4527, %v3766
      %v4561 = vsel %vm4553, %v4528, %v3768
      %v4562 = vsel %vm4553, %v4529, %v3770
      %v4563 = vsel %vm4553, %v4530, %v3772
      %v4564 = vsel %vm4553, %v4531, %v3774
      %v4565 = vsel %vm4553, %v4532, %v3776
      %v4566 = vsel %vm4553, %v4533, %v3778
      %v4567 = vsel %vm4553, %v4534, %v3780
      %v4568 = vsel %vm4553, %v4535, %v3782
      %v4569 = vsel %vm4553, %v4536, %v3784
      %v4570 = vsel %vm4553, %v4537, %v3786
      %v4571 = vsel %vm4553, %v4538, %v3788
      %v4572 = vsel %vm4553, %v4539, %v3790
      %v4573 = vsel %vm4553, %v4540, %v3792
      %v4574 = vsel %vm4553, %v4541, %v3794
      %v4575 = vsel %vm4553, %v4542, %v3796
      %v4576 = vsel %vm4553, %v4543, %v3798
      %v4577 = vsel %vm4553, %v4544, %v3800
      %v4578 = vsel %vm4553, %v4545, %v3802
      %v4579 = vsel %vm4553, %v4546, %v3804
      %v4580 = vsel %vm4553, %v4547, %v3806
      %v4581 = vsel %vm4553, %v4548, %v3808
      %v4582 = vsel %vm4553, %v4549, %v3810
      %v4583 = vsel %vm4553, %v4550, %v3812
      %v4584 = vsel %vm4553, %v4551, %v3814
      %v4585 = vsel %vm4553, %v4552, %v3816
      %v4586 = vsel %vm2488, %v4554, %v3882
      %v4587 = vsel %vm2488, %v4555, %v3884
      %v4588 = vsel %vm2488, %v4556, %v3886
      %v4589 = vsel %vm2488, %v4557, %v3888
      %v4590 = vsel %vm2488, %v4558, %v3890
      %v4591 = vsel %vm2488, %v4559, %v3892
      %v4592 = vsel %vm2488, %v4560, %v3894
      %v4593 = vsel %vm2488, %v4561, %v3896
      %v4594 = vsel %vm2488, %v4562, %v3898
      %v4595 = vsel %vm2488, %v4563, %v3900
      %v4596 = vsel %vm2488, %v4564, %v3902
      %v4597 = vsel %vm2488, %v4565, %v3904
      %v4598 = vsel %vm2488, %v4566, %v3906
      %v4599 = vsel %vm2488, %v4567, %v3908
      %v4600 = vsel %vm2488, %v4568, %v3910
      %v4601 = vsel %vm2488, %v4569, %v3912
      %v4602 = vsel %vm2488, %v4570, %v3914
      %v4603 = vsel %vm2488, %v4571, %v3916
      %v4604 = vsel %vm2488, %v4572, %v3918
      %v4605 = vsel %vm2488, %v4573, %v3920
      %v4606 = vsel %vm2488, %v4574, %v3922
      %v4607 = vsel %vm2488, %v4575, %v3924
      %v4608 = vsel %vm2488, %v4576, %v3926
      %v4609 = vsel %vm2488, %v4577, %v3928
      %v4610 = vsel %vm2488, %v4578, %v3930
      %v4611 = vsel %vm2488, %v4579, %v3932
      %v4612 = vsel %vm2488, %v4580, %v3934
      %v4613 = vsel %vm2488, %v4581, %v3936
      %v4614 = vsel %vm2488, %v4582, %v3938
      %v4615 = vsel %vm2488, %v4583, %v3940
      %v4616 = vsel %vm2488, %v4584, %v3942
      %v4617 = vsel %vm2488, %v4585, %v3944
      %vm4618 = vcmask 162816
      %v4619 = vsel %vm4618, %v4586, %v4010
      %v4620 = vsel %vm4618, %v4587, %v4012
      %v4621 = vsel %vm4618, %v4588, %v4014
      %v4622 = vsel %vm4618, %v4589, %v4016
      %v4623 = vsel %vm4618, %v4590, %v4018
      %v4624 = vsel %vm4618, %v4591, %v4020
      %v4625 = vsel %vm4618, %v4592, %v4022
      %v4626 = vsel %vm4618, %v4593, %v4024
      %v4627 = vsel %vm4618, %v4594, %v4026
      %v4628 = vsel %vm4618, %v4595, %v4028
      %v4629 = vsel %vm4618, %v4596, %v4030
      %v4630 = vsel %vm4618, %v4597, %v4032
      %v4631 = vsel %vm4618, %v4598, %v4034
      %v4632 = vsel %vm4618, %v4599, %v4036
      %v4633 = vsel %vm4618, %v4600, %v4038
      %v4634 = vsel %vm4618, %v4601, %v4040
      %v4635 = vsel %vm4618, %v4602, %v4042
      %v4636 = vsel %vm4618, %v4603, %v4044
      %v4637 = vsel %vm4618, %v4604, %v4046
      %v4638 = vsel %vm4618, %v4605, %v4048
      %v4639 = vsel %vm4618, %v4606, %v4050
      %v4640 = vsel %vm4618, %v4607, %v4052
      %v4641 = vsel %vm4618, %v4608, %v4054
      %v4642 = vsel %vm4618, %v4609, %v4056
      %v4643 = vsel %vm4618, %v4610, %v4058
      %v4644 = vsel %vm4618, %v4611, %v4060
      %v4645 = vsel %vm4618, %v4612, %v4062
      %v4646 = vsel %vm4618, %v4613, %v4064
      %v4647 = vsel %vm4618, %v4614, %v4066
      %v4648 = vsel %vm4618, %v4615, %v4068
      %v4649 = vsel %vm4618, %v4616, %v4070
      %v4650 = vsel %vm4618, %v4617, %v4072
      %v4651 = vsel %vm2521, %v4619, %v4138
      %v4652 = vsel %vm2521, %v4620, %v4140
      %v4653 = vsel %vm2521, %v4621, %v4142
      %v4654 = vsel %vm2521, %v4622, %v4144
      %v4655 = vsel %vm2521, %v4623, %v4146
      %v4656 = vsel %vm2521, %v4624, %v4148
      %v4657 = vsel %vm2521, %v4625, %v4150
      %v4658 = vsel %vm2521, %v4626, %v4152
      %v4659 = vsel %vm2521, %v4627, %v4154
      %v4660 = vsel %vm2521, %v4628, %v4156
      %v4661 = vsel %vm2521, %v4629, %v4158
      %v4662 = vsel %vm2521, %v4630, %v4160
      %v4663 = vsel %vm2521, %v4631, %v4162
      %v4664 = vsel %vm2521, %v4632, %v4164
      %v4665 = vsel %vm2521, %v4633, %v4166
      %v4666 = vsel %vm2521, %v4634, %v4168
      %v4667 = vsel %vm2521, %v4635, %v4170
      %v4668 = vsel %vm2521, %v4636, %v4172
      %v4669 = vsel %vm2521, %v4637, %v4174
      %v4670 = vsel %vm2521, %v4638, %v4176
      %v4671 = vsel %vm2521, %v4639, %v4178
      %v4672 = vsel %vm2521, %v4640, %v4180
      %v4673 = vsel %vm2521, %v4641, %v4182
      %v4674 = vsel %vm2521, %v4642, %v4184
      %v4675 = vsel %vm2521, %v4643, %v4186
      %v4676 = vsel %vm2521, %v4644, %v4188
      %v4677 = vsel %vm2521, %v4645, %v4190
      %v4678 = vsel %vm2521, %v4646, %v4192
      %v4679 = vsel %vm2521, %v4647, %v4194
      %v4680 = vsel %vm2521, %v4648, %v4196
      %v4681 = vsel %vm2521, %v4649, %v4198
      %v4682 = vsel %vm2521, %v4650, %v4200
      %vm4683 = vcmask 228352
      %v4684 = vsel %vm4683, %v4651, %v4266
      %v4685 = vsel %vm4683, %v4652, %v4268
      %v4686 = vsel %vm4683, %v4653, %v4270
      %v4687 = vsel %vm4683, %v4654, %v4272
      %v4688 = vsel %vm4683, %v4655, %v4274
      %v4689 = vsel %vm4683, %v4656, %v4276
      %v4690 = vsel %vm4683, %v4657, %v4278
      %v4691 = vsel %vm4683, %v4658, %v4280
      %v4692 = vsel %vm4683, %v4659, %v4282
      %v4693 = vsel %vm4683, %v4660, %v4284
      %v4694 = vsel %vm4683, %v4661, %v4286
      %v4695 = vsel %vm4683, %v4662, %v4288
      %v4696 = vsel %vm4683, %v4663, %v4290
      %v4697 = vsel %vm4683, %v4664, %v4292
      %v4698 = vsel %vm4683, %v4665, %v4294
      %v4699 = vsel %vm4683, %v4666, %v4296
      %v4700 = vsel %vm4683, %v4667, %v4298
      %v4701 = vsel %vm4683, %v4668, %v4300
      %v4702 = vsel %vm4683, %v4669, %v4302
      %v4703 = vsel %vm4683, %v4670, %v4304
      %v4704 = vsel %vm4683, %v4671, %v4306
      %v4705 = vsel %vm4683, %v4672, %v4308
      %v4706 = vsel %vm4683, %v4673, %v4310
      %v4707 = vsel %vm4683, %v4674, %v4312
      %v4708 = vsel %vm4683, %v4675, %v4314
      %v4709 = vsel %vm4683, %v4676, %v4316
      %v4710 = vsel %vm4683, %v4677, %v4318
      %v4711 = vsel %vm4683, %v4678, %v4320
      %v4712 = vsel %vm4683, %v4679, %v4322
      %v4713 = vsel %vm4683, %v4680, %v4324
      %v4714 = vsel %vm4683, %v4681, %v4326
      %v4715 = vsel %vm4683, %v4682, %v4328
      %v4716 = vsel %vm2554, %v4684, %v4394
      %v4717 = vsel %vm2554, %v4685, %v4396
      %v4718 = vsel %vm2554, %v4686, %v4398
      %v4719 = vsel %vm2554, %v4687, %v4400
      %v4720 = vsel %vm2554, %v4688, %v4402
      %v4721 = vsel %vm2554, %v4689, %v4404
      %v4722 = vsel %vm2554, %v4690, %v4406
      %v4723 = vsel %vm2554, %v4691, %v4408
      %v4724 = vsel %vm2554, %v4692, %v4410
      %v4725 = vsel %vm2554, %v4693, %v4412
      %v4726 = vsel %vm2554, %v4694, %v4414
      %v4727 = vsel %vm2554, %v4695, %v4416
      %v4728 = vsel %vm2554, %v4696, %v4418
      %v4729 = vsel %vm2554, %v4697, %v4420
      %v4730 = vsel %vm2554, %v4698, %v4422
      %v4731 = vsel %vm2554, %v4699, %v4424
      %v4732 = vsel %vm2554, %v4700, %v4426
      %v4733 = vsel %vm2554, %v4701, %v4428
      %v4734 = vsel %vm2554, %v4702, %v4430
      %v4735 = vsel %vm2554, %v4703, %v4432
      %v4736 = vsel %vm2554, %v4704, %v4434
      %v4737 = vsel %vm2554, %v4705, %v4436
      %v4738 = vsel %vm2554, %v4706, %v4438
      %v4739 = vsel %vm2554, %v4707, %v4440
      %v4740 = vsel %vm2554, %v4708, %v4442
      %v4741 = vsel %vm2554, %v4709, %v4444
      %v4742 = vsel %vm2554, %v4710, %v4446
      %v4743 = vsel %vm2554, %v4711, %v4448
      %v4744 = vsel %vm2554, %v4712, %v4450
      %v4745 = vsel %vm2554, %v4713, %v4452
      %v4746 = vsel %vm2554, %v4714, %v4454
      %v4747 = vsel %vm2554, %v4715, %v4456
      %v4748 = vld [vmem:[%s7] sm:$0xf]
      %v4749 = vld [vmem:[%s8] sm:$0xf]
      %4751 = vset.pattern.permute.xlu0 0
      %4752 = vperm.xlu0 %4751, %v4749
      %v4753 = vpop.permute.xlu0 %4752
      %vm4755 = vcmask 293888
      %v4757 = vsel %vm4755, %v4748, 0
      %v4760 = vsel %vm4755, %v4716, 0
      %v4763 = vsel %vm4755, %v4717, 0
      %v4766 = vsel %vm4755, %v4718, 0
      %v4769 = vsel %vm4755, %v4719, 0
      %v4772 = vsel %vm4755, %v4720, 0
      %v4775 = vsel %vm4755, %v4721, 0
      %v4778 = vsel %vm4755, %v4722, 0
      %v4781 = vsel %vm4755, %v4723, 0
      %v4784 = vsel %vm4755, %v4724, 0
      %v4787 = vsel %vm4755, %v4725, 0
      %v4790 = vsel %vm4755, %v4726, 0
      %v4793 = vsel %vm4755, %v4727, 0
      %v4796 = vsel %vm4755, %v4728, 0
      %v4799 = vsel %vm4755, %v4729, 0
      %v4802 = vsel %vm4755, %v4730, 0
      %v4805 = vsel %vm4755, %v4731, 0
      %v4808 = vsel %vm4755, %v4732, 0
      %v4811 = vsel %vm4755, %v4733, 0
      %v4814 = vsel %vm4755, %v4734, 0
      %v4817 = vsel %vm4755, %v4735, 0
      %v4820 = vsel %vm4755, %v4736, 0
      %v4823 = vsel %vm4755, %v4737, 0
      %v4826 = vsel %vm4755, %v4738, 0
      %v4829 = vsel %vm4755, %v4739, 0
      %v4832 = vsel %vm4755, %v4740, 0
      %v4835 = vsel %vm4755, %v4741, 0
      %v4838 = vsel %vm4755, %v4742, 0
      %v4841 = vsel %vm4755, %v4743, 0
      %v4844 = vsel %vm4755, %v4744, 0
      %v4847 = vsel %vm4755, %v4745, 0
      %v4850 = vsel %vm4755, %v4746, 0
      %v4853 = vsel %vm4755, %v4747, 0
      %4855 = vmatprep.subr.mxu0 0.0
      %4856 = vmatpush1.xpose.msra.mxu0 %v4760
      %4857 = vmatprep.subr.mxu0 0.0
      %4858 = vmatpush1.xpose.msra.mxu0 %v4763
      %4859 = vmatprep.subr.mxu0 0.0
      %4860 = vmatpush1.xpose.msra.mxu0 %v4766
      %4861 = vmatprep.subr.mxu0 0.0
      %4862 = vmatpush1.xpose.msra.mxu0 %v4769
      %4863 = vmatprep.subr.mxu0 0.0
      %4864 = vmatpush1.xpose.msra.mxu0 %v4772
      %4865 = vmatprep.subr.mxu0 0.0
      %4866 = vmatpush1.xpose.msra.mxu0 %v4775
      %4867 = vmatprep.subr.mxu0 0.0
      %4868 = vmatpush1.xpose.msra.mxu0 %v4778
      %4869 = vmatprep.subr.mxu0 0.0
      %4870 = vmatpush1.xpose.msra.mxu0 %v4781
      %4871 = vmatprep.subr.mxu0 0.0
      %4872 = vmatpush1.xpose.msra.mxu0 %v4784
      %4873 = vmatprep.subr.mxu0 0.0
      %4874 = vmatpush1.xpose.msra.mxu0 %v4787
      %4875 = vmatprep.subr.mxu0 0.0
      %4876 = vmatpush1.xpose.msra.mxu0 %v4790
      %4877 = vmatprep.subr.mxu0 0.0
      %4878 = vmatpush1.xpose.msra.mxu0 %v4793
      %4879 = vmatprep.subr.mxu0 0.0
      %4880 = vmatpush1.xpose.msra.mxu0 %v4796
      %4881 = vmatprep.subr.mxu0 0.0
      %4882 = vmatpush1.xpose.msra.mxu0 %v4799
      %4883 = vmatprep.subr.mxu0 0.0
      %4884 = vmatpush1.xpose.msra.mxu0 %v4802
      %4885 = vmatprep.subr.mxu0 0.0
      %4886 = vmatpush1.xpose.msra.mxu0 %v4805
      %4887 = vmatprep.subr.mxu0 0.0
      %4888 = vmatpush1.xpose.msra.mxu0 %v4808
      %4889 = vmatprep.subr.mxu0 0.0
      %4890 = vmatpush1.xpose.msra.mxu0 %v4811
      %4891 = vmatprep.subr.mxu0 0.0
      %4892 = vmatpush1.xpose.msra.mxu0 %v4814
      %4893 = vmatprep.subr.mxu0 0.0
      %4894 = vmatpush1.xpose.msra.mxu0 %v4817
      %4895 = vmatprep.subr.mxu0 0.0
      %4896 = vmatpush1.xpose.msra.mxu0 %v4820
      %4897 = vmatprep.subr.mxu0 0.0
      %4898 = vmatpush1.xpose.msra.mxu0 %v4823
      %4899 = vmatprep.subr.mxu0 0.0
      %4900 = vmatpush1.xpose.msra.mxu0 %v4826
      %4901 = vmatprep.subr.mxu0 0.0
      %4902 = vmatpush1.xpose.msra.mxu0 %v4829
      %4903 = vmatprep.subr.mxu0 0.0
      %4904 = vmatpush1.xpose.msra.mxu0 %v4832
      %4905 = vmatprep.subr.mxu0 0.0
      %4906 = vmatpush1.xpose.msra.mxu0 %v4835
      %4907 = vmatprep.subr.mxu0 0.0
      %4908 = vmatpush1.xpose.msra.mxu0 %v4838
      %4909 = vmatprep.subr.mxu0 0.0
      %4910 = vmatpush1.xpose.msra.mxu0 %v4841
      %4911 = vmatprep.subr.mxu0 0.0
      %4912 = vmatpush1.xpose.msra.mxu0 %v4844
      %4913 = vmatprep.subr.mxu0 0.0
      %4914 = vmatpush1.xpose.msra.mxu0 %v4847
      %4915 = vmatprep.subr.mxu0 0.0
      %4916 = vmatpush1.xpose.msra.mxu0 %v4850
      %4917 = vmatprep.subr.mxu0 0.0
      %4918 = vmatpush1.xpose.msra.mxu0 %v4853
      %4919 = vmatprep.mubr.f32.mxu0 0.0
      %4920 = vmatmul.mubr.f32.gmra.mrb[0].mxu0 %v4757
      %v4921 = vpop.f32.mrb[0].mxu0
      %v4922 = vadd.f32 %v4753, %v4921
      %v4923 = vpop.f32.mrb[0].mxu0
      %v4924 = vadd.f32 %v4753, %v4923
      %4925 = vdwg.mxu0
      %v4926 = vmax.f32 %v4922, 0.0
      %v4927 = vmax.f32 %v4924, 0.0
      %v4930 = vcombine.low %v4926, %v4927
      %4932 = vst [vmem:[%s352] sm:$0xff] %v4930
      %p4933 = scmp.lt.s32.totalorder %s20, 1
      %s4934 = scalar_select %p4933, %s20, 1
      %s4935 = smul.addr %s4934, 2
      %s4936 = smul.addr %s4935, 4
      %s4937 = scalar_lea.vmem %s9, %s4936
      // Predicated region
      $region57: #{upconv_forward.1} parent=55 // pred_check
        %p4938 = pneg %p237
      $region58: #{upconv_forward.1} parent=55 // pred_check_branch
        %4940 = sbr.rel (%p4938) target = $region60
      $region59: #{upconv_forward.1} parent=55 // pred_region
        _
      $region60: #{upconv_forward.1} parent=55 // pred_fallthru
        _
    $region56: #{upconv_forward.1} parent=5 // pred_fallthru
      _
    %p4941 = scmp.le.s32.totalorder 2, %s15
    // Predicated region
    $region61: #{upconv_forward.1} parent=5 // pred_check
      %p4942 = pneg %p4941
    $region62: #{upconv_forward.1} parent=5 // pred_check_branch
      %4944 = sbr.rel (%p4942) target = $region64
    $region63: #{upconv_forward.1} parent=5 // pred_region
      %s4945 = ssub.s32 %s15, 2
      // Predicated region
      $region65: #{upconv_forward.1} parent=63 // pred_check
        %p4946 = pneg %p243
      $region66: #{upconv_forward.1} parent=63 // pred_check_branch
        %4948 = sbr.rel (%p4946) target = $region68
      $region67: #{upconv_forward.1} parent=63 // pred_region
        %p4949 = scmp.lt.s32.totalorder %s21, 1
        %s4950 = scalar_select %p4949, %s21, 1
        %s4951 = smul.addr %s4950, 2
        %s4952 = smul.addr %s4951, 4
        %s4953 = scalar_lea.vmem %s9, %s4952
      $region68: #{upconv_forward.1} parent=63 // pred_fallthru
        _
    $region64: #{upconv_forward.1} parent=5 // pred_fallthru
      _
  $region6: #{upconv_forward.1} parent=0 // loop_footer
    %s19 = sadd.s32 1, %s15
  $region7: #{upconv_forward.1} parent=0 // loop_footer_branch
    %14 = sbr.rel target = $region3
  $region8: #{upconv_forward.1} parent=0 // loop_exit
    _

</llo_original>
